<compile_context>
chip_gen: v7x
topology: tpu7x:2x2x1
jax: 0.10.0
libtpu: 0.0.40
codegen_flags: <defaults>
</compile_context>

<pallas_src>
import functools

import jax
import jax.numpy as jnp
from jax import lax
from jax.experimental import pallas as pl
from jax.experimental.pallas import tpu as pltpu

C_CONV = 200   # conv channel count fixed by the module definition
CP = 256       # padded conv channel count (multiple of 128; pad channels are 0)


# ---------------------------------------------------------------------------
# Kernel 1: both conv branches
#   head = conv3(relu(conv1(x)))          -> (L, CP)  bf16
#   tail = conv4(relu(conv2(x)))          -> emitted transposed (CP, L) bf16
# Each Conv1d(k=3, pad=1) is ONE matmul with the 3 taps unrolled along N;
# the +/-1 sequence shift of each tap is applied to the per-tap result with
# pltpu.roll (XLU slot) + a single-row boundary mask.  Stage 1 of both
# branches is fused into one wide matmul.
# ---------------------------------------------------------------------------
def conv_kernel(x_ref, wa_ref, ba_ref, w3_ref, b3_ref, w4_ref, b4_ref,
                head_ref, tailt_ref):
    L = head_ref.shape[1]
    x = x_ref[0]                                                    # (L, H) bf16

    row = lax.broadcasted_iota(jnp.int32, (L, 1), 0)

    def shift_prev(z):  # result row l <- z[l-1]; row 0 <- 0   (conv tap k=0)
        r = pltpu.roll(z, shift=1, axis=0)
        return jnp.where(row == 0, 0.0, r)

    def shift_next(z):  # result row l <- z[l+1]; row L-1 <- 0 (conv tap k=2)
        r = pltpu.roll(z, shift=L - 1, axis=0)
        return jnp.where(row == L - 1, 0.0, r)

    # ---- stage 1: conv1 & conv2 fused; taps unrolled along N ----
    z1 = jnp.dot(x, wa_ref[...], preferred_element_type=jnp.float32)  # (L, 6CP)
    y1 = (shift_prev(z1[:, 0:2 * CP]) + z1[:, 2 * CP:4 * CP]
          + shift_next(z1[:, 4 * CP:6 * CP]) + ba_ref[...])
    y1 = jnp.maximum(y1, 0.0).astype(jnp.bfloat16)                    # (L, 2CP)

    yh = y1[:, 0:CP]        # relu(conv1)   (L, CP) bf16
    yt = y1[:, CP:2 * CP]   # relu(conv2)

    # ---- stage 2: conv3 (head) ----
    zh = jnp.dot(yh, w3_ref[...], preferred_element_type=jnp.float32)  # (L, 3CP)
    head = (shift_prev(zh[:, 0:CP]) + zh[:, CP:2 * CP]
            + shift_next(zh[:, 2 * CP:3 * CP]) + b3_ref[...])
    head_ref[0] = head.astype(head_ref.dtype)                          # bf16

    # ---- stage 2: conv4 (tail), emitted already transposed ----
    zt = jnp.dot(yt, w4_ref[...], preferred_element_type=jnp.float32)
    tail = (shift_prev(zt[:, 0:CP]) + zt[:, CP:2 * CP]
            + shift_next(zt[:, 2 * CP:3 * CP]) + b4_ref[...])
    tailt_ref[0] = jnp.transpose(tail).astype(tailt_ref.dtype)         # (CP, L)


# ---------------------------------------------------------------------------
# Kernel 2: biaffine scores + logsumexp, tiled over labels.
#   affine = head @ W_tile              (one wide MXU matmul per label tile)
#   s_n    = affine[:, n*CP:(n+1)*CP] @ tail^T
#   lm     = s_n + ep_dist              (stored bf16, L lane-dense)
#   lse    = logsumexp(lm) per label    (computed from the f32 values)
# The global linear head is added in the wrapper.
# ---------------------------------------------------------------------------
def biaffine_kernel(head_ref, tailt_ref, ep_ref, w_ref, lse_ref, lm_ref,
                    *, tl, cp, label_axis):
    head = head_ref[0]                   # (L, CP)  bf16
    tailt = tailt_ref[0]                 # (CP, L)  bf16 (already transposed)
    ep = ep_ref[0]                       # (L, L)   f32

    if label_axis is None:
        w_tile = w_ref[...]                                  # (CP, tl*CP)
    else:
        t = pl.program_id(label_axis)
        off = pl.multiple_of(t * (tl * cp), tl * cp)
        w_tile = w_ref[:, pl.ds(off, tl * cp)]               # resident W slice

    affine = jnp.dot(head, w_tile, preferred_element_type=jnp.float32)
    affine = affine.astype(jnp.bfloat16)                     # (L, tl*CP)

    lane = lax.broadcasted_iota(jnp.int32, (1, tl), 1)
    lse_row = jnp.zeros((1, tl), jnp.float32)

    for n in range(tl):
        a_n = affine[:, n * cp:(n + 1) * cp]                           # (L, CP)
        s = jnp.dot(a_n, tailt, preferred_element_type=jnp.float32)    # (L, L)
        lm = s + ep
        lm_ref[0, n] = lm.astype(lm_ref.dtype)                         # bf16 out

        # stable logsumexp over both axes (f32)
        m = jnp.max(lm, axis=1, keepdims=True)
        m = jnp.max(m, axis=0, keepdims=True)                          # (1, 1)
        e = jnp.exp(lm - m)
        tot = jnp.sum(jnp.sum(e, axis=1, keepdims=True), axis=0, keepdims=True)
        lse = m + jnp.log(tot)
        lse_row = lse_row + jnp.where(lane == n, lse, 0.0)

    lse_ref[0, 0] = lse_row


# ---------------------------------------------------------------------------
# VMEM-aware label tile selection (v7x: 64 MiB physical VMEM per TensorCore)
# ---------------------------------------------------------------------------
def _pick_label_tile(L, label_num, batch, requested):
    tl = max(1, min(requested, label_num))
    budget = 28 << 20   # ~half of the 56 MiB request ceiling

    def tile_bytes(t):
        return (2 * t * L * L * 2          # double-buffered bf16 lm out block
                + t * CP * CP * 2          # per-tile W slab (bf16)
                + L * t * CP * 6)          # affine intermediate (f32 + bf16)

    while tl > 1 and tile_bytes(tl) > budget:
        tl = (tl + 1) // 2
    # With a single batch element keep >=2 label tiles so both v7x TensorCores
    # (and the software pipeline) get parallel grid steps.
    while batch == 1 and tl > 1 and -(-label_num // tl) < 2:
        tl = (tl + 1) // 2
    return tl


# ---------------------------------------------------------------------------
# Wrapper (padding, weight packing, pallas_call plumbing)
# ---------------------------------------------------------------------------
def biaffine_pairwise_forward(seq, cls_token, ep_dist, params, *, label_tile=8):
    B, L, H = seq.shape
    label_num = params["linear_b"].shape[0]
    f32 = jnp.float32
    bf16 = jnp.bfloat16

    tl = _pick_label_tile(L, label_num, B, label_tile)
    nlt = (label_num + tl - 1) // tl
    label_pad = nlt * tl

    # ----------------------------- conv inputs ------------------------------
    seq_bf = seq.astype(bf16)                                       # (B, L, H)

    def taps(w, cin_pad, cout_pad):
        # torch (Cout, Cin, 3) -> (cin_pad, 3, cout_pad); pads are zero.
        wt = jnp.transpose(w.astype(f32), (1, 2, 0))                # (Cin, 3, Cout)
        return jnp.pad(wt, ((0, cin_pad - wt.shape[0]), (0, 0),
                            (0, cout_pad - wt.shape[2])))

    w1t = taps(params["conv1_w"], H, CP)                            # (H, 3, CP)
    w2t = taps(params["conv2_w"], H, CP)
    wa = jnp.concatenate([w1t, w2t], axis=2).reshape(H, 6 * CP).astype(bf16)
    ba = jnp.concatenate(
        [jnp.pad(params["conv1_b"].astype(f32), (0, CP - C_CONV)),
         jnp.pad(params["conv2_b"].astype(f32), (0, CP - C_CONV))]).reshape(1, 2 * CP)

    w3 = taps(params["conv3_w"], CP, CP).reshape(CP, 3 * CP).astype(bf16)
    b3 = jnp.pad(params["conv3_b"].astype(f32), (0, CP - C_CONV)).reshape(1, CP)
    w4 = taps(params["conv4_w"], CP, CP).reshape(CP, 3 * CP).astype(bf16)
    b4 = jnp.pad(params["conv4_b"].astype(f32), (0, CP - C_CONV)).reshape(1, CP)

    conv_est = (2 * L * H * 2 + 2 * H * 6 * CP * 2 + 2 * 2 * CP * 3 * CP * 2
                + 2 * 4 * CP * 4 + 2 * 2 * L * CP * 2
                + L * 6 * CP * 4 + L * 2 * CP * 6 + 2 * L * 3 * CP * 4
                + 2 * L * CP * 4)
    conv_vmem = int(min(56 << 20, max(16 << 20, 2 * conv_est)))
    conv_cost = pl.CostEstimate(
        flops=int(2 * B * L * (H * 6 * CP + 2 * CP * 3 * CP)),
        transcendentals=0,
        bytes_accessed=int(B * L * H * 2 + (H * 6 * CP + 2 * CP * 3 * CP) * 2
                           + 2 * B * L * CP * 2))

    head, tailt = pl.pallas_call(
        conv_kernel,
        out_shape=(jax.ShapeDtypeStruct((B, L, CP), bf16),
                   jax.ShapeDtypeStruct((B, CP, L), bf16)),
        grid_spec=pltpu.PrefetchScalarGridSpec(
            num_scalar_prefetch=0, grid=(B,),
            in_specs=[
                pl.BlockSpec((1, L, H), lambda b: (b, 0, 0)),
                pl.BlockSpec((H, 6 * CP), lambda b: (0, 0)),
                pl.BlockSpec((1, 2 * CP), lambda b: (0, 0)),
                pl.BlockSpec((CP, 3 * CP), lambda b: (0, 0)),
                pl.BlockSpec((1, CP), lambda b: (0, 0)),
                pl.BlockSpec((CP, 3 * CP), lambda b: (0, 0)),
                pl.BlockSpec((1, CP), lambda b: (0, 0)),
            ],
            out_specs=[pl.BlockSpec((1, L, CP), lambda b: (b, 0, 0)),
                       pl.BlockSpec((1, CP, L), lambda b: (b, 0, 0))]),
        compiler_params=pltpu.CompilerParams(
            dimension_semantics=("parallel",), vmem_limit_bytes=conv_vmem),
        cost_estimate=conv_cost,
    )(seq_bf, wa, ba, w3, b3, w4, b4)

    # ----------------------------- biaffine ---------------------------------
    # weight (200, label*200): slab W_n = weight[:, n*200:(n+1)*200].  Pad each
    # slab to CP columns (and K to CP rows) so lane slices are 128-aligned.
    w3d = params["weight"].astype(f32).reshape(C_CONV, label_num, C_CONV)
    w3d = jnp.pad(w3d, ((0, CP - C_CONV), (0, label_pad - label_num),
                        (0, CP - C_CONV)))
    w_pad = w3d.reshape(CP, label_pad * CP).astype(bf16)

    w_full_bytes = CP * label_pad * CP * 2
    w_resident = w_full_bytes <= (8 << 20)

    if w_resident:
        # Whole padded W stays resident in VMEM (constant index_map -> one DMA);
        # the kernel slices the tl*CP-wide slab with pl.ds.
        grid = (B, nlt)
        act_map = lambda b, t: (b, 0, 0)
        w_spec = pl.BlockSpec((CP, label_pad * CP), lambda b, t: (0, 0))
        out_map = lambda b, t: (b, t, 0, 0)
        label_axis = 1
    else:
        # Stream W per label tile but put batch on the inner grid axis so each
        # W tile is DMA'd once (no B x multiplier on W HBM traffic).
        grid = (nlt, B)
        act_map = lambda t, b: (b, 0, 0)
        w_spec = pl.BlockSpec((CP, tl * CP), lambda t, b: (0, t))
        out_map = lambda t, b: (b, t, 0, 0)
        label_axis = None

    w_block_bytes = (label_pad * CP if w_resident else tl * CP) * CP * 2
    bi_est = (2 * 2 * L * CP * 2 + 2 * L * L * 4 + 2 * w_block_bytes
              + 2 * tl * L * L * 2 + 2 * tl * 4
              + L * tl * CP * 6 + 3 * L * L * 4)
    bi_vmem = int(min(56 << 20, max(16 << 20, 2 * bi_est)))
    bi_cost = pl.CostEstimate(
        flops=int(2 * B * label_pad * L * CP * (CP + L)),
        transcendentals=int(B * label_pad * L * L),
        bytes_accessed=int(B * (2 * L * CP * 2 + L * L * 4)
                           + (1 if w_resident else nlt) * label_pad * CP * CP * 2
                           + B * label_pad * (L * L * 2 + 4)))

    lse4, lm_out = pl.pallas_call(
        functools.partial(biaffine_kernel, tl=tl, cp=CP, label_axis=label_axis),
        out_shape=(jax.ShapeDtypeStruct((B, nlt, 1, tl), f32),
                   jax.ShapeDtypeStruct((B, label_pad, L, L), bf16)),
        grid_spec=pltpu.PrefetchScalarGridSpec(
            num_scalar_prefetch=0, grid=grid,
            in_specs=[
                pl.BlockSpec((1, L, CP), act_map),
                pl.BlockSpec((1, CP, L), act_map),
                pl.BlockSpec((1, L, L), act_map),
                w_spec,
            ],
            out_specs=[pl.BlockSpec((1, 1, 1, tl), out_map),
                       pl.BlockSpec((1, tl, L, L), out_map)]),
        compiler_params=pltpu.CompilerParams(
            dimension_semantics=("parallel", "parallel"),
            vmem_limit_bytes=bi_vmem),
        cost_estimate=bi_cost,
    )(head, tailt, ep_dist.astype(f32), w_pad)

    # Global linear head: one fused XLA matmul (hoisted out of the kernel).
    glob = jnp.dot(cls_token.astype(f32), params["linear_w"].astype(f32).T,
                   precision=lax.Precision.HIGHEST) + params["linear_b"].astype(f32)
    output = lse4.reshape(B, label_pad)[:, :label_num] + glob

    # Relayout to the PyTorch output contract (B, L, L, label) in bf16; the
    # kernel keeps L lane-dense and a consumer could read (B, label, L, L).
    local_matrix = jnp.transpose(lm_out[:, :label_num], (0, 2, 3, 1))
    return output, local_matrix


# ---------------------------------------------------------------------------
# Deterministic parameter init (PyTorch parameter shapes; synthetic values)
# ---------------------------------------------------------------------------
def init_params(key, hidden_size, label_num):
    ks = jax.random.split(key, 11)

    def uniform(k, shape, fan_in):
        bound = (1.0 / fan_in) ** 0.5
        return jax.random.uniform(k, shape, jnp.float32, -bound, bound)

    return {
        "conv1_w": uniform(ks[0], (C_CONV, hidden_size, 3), hidden_size * 3),
        "conv1_b": uniform(ks[1], (C_CONV,), hidden_size * 3),
        "conv2_w": uniform(ks[2], (C_CONV, hidden_size, 3), hidden_size * 3),
        "conv2_b": uniform(ks[3], (C_CONV,), hidden_size * 3),
        "conv3_w": uniform(ks[4], (C_CONV, C_CONV, 3), C_CONV * 3),
        "conv3_b": uniform(ks[5], (C_CONV,), C_CONV * 3),
        "conv4_w": uniform(ks[6], (C_CONV, C_CONV, 3), C_CONV * 3),
        "conv4_b": uniform(ks[7], (C_CONV,), C_CONV * 3),
        "linear_w": uniform(ks[8], (label_num, hidden_size), hidden_size),
        "linear_b": uniform(ks[9], (label_num,), hidden_size),
        # self.weight: (200, label_num*200), kaiming_uniform-like
        "weight": jax.random.uniform(
            ks[10], (C_CONV, label_num * C_CONV), jnp.float32,
            -(6.0 / C_CONV) ** 0.5, (6.0 / C_CONV) ** 0.5),
    }


# ---------------------------------------------------------------------------
# Pure-JAX reference (mirrors the PyTorch forward) for correctness check
# ---------------------------------------------------------------------------
def reference_forward(seq, cls_token, ep_dist, p):
    B, L, H = seq.shape
    label_num = p["linear_b"].shape[0]

    def conv1d(x, w, b):  # x: (B, C, L), w: (O, I, 3)
        y = lax.conv_general_dilated(
            x, w, window_strides=(1,), padding=[(1, 1)],
            dimension_numbers=("NCH", "OIH", "NCH"),
            precision=lax.Precision.HIGHEST)
        return y + b[None, :, None]

    x = jnp.transpose(seq, (0, 2, 1))                     # (B, H, L)
    head = conv1d(jax.nn.relu(conv1d(x, p["conv1_w"], p["conv1_b"])),
                  p["conv3_w"], p["conv3_b"])
    tail = conv1d(jax.nn.relu(conv1d(x, p["conv2_w"], p["conv2_b"])),
                  p["conv4_w"], p["conv4_b"])             # (B, 200, L)
    head = jnp.transpose(head, (0, 2, 1))                 # (B, L, 200)

    affine = jnp.matmul(head, p["weight"], precision=lax.Precision.HIGHEST)
    bi = jnp.matmul(affine.reshape(B, L * label_num, C_CONV), tail,
                    precision=lax.Precision.HIGHEST)      # (B, L*label, L)
    bi = bi.reshape(B, L, label_num, L).transpose(0, 1, 3, 2)
    local_matrix = bi + ep_dist[:, :, :, None]
    local_result = jax.nn.logsumexp(local_matrix, axis=(1, 2))
    global_result = jnp.matmul(cls_token, p["linear_w"].T,
                               precision=lax.Precision.HIGHEST) + p["linear_b"]
    return local_result + global_result, local_matrix


if __name__ == "__main__":
    B, L, H, LABELS = 2, 8, 32, 4

    key = jax.random.PRNGKey(0)
    k_seq, k_cls, k_ep, k_par = jax.random.split(key, 4)
    seq = jax.random.normal(k_seq, (B, L, H), jnp.float32)
    cls_token = jax.random.normal(k_cls, (B, H), jnp.float32)
    ep_dist = jax.random.normal(k_ep, (B, L, L), jnp.float32)
    params = init_params(k_par, H, LABELS)

    fwd = jax.jit(biaffine_pairwise_forward)
    output, local_matrix = fwd(seq, cls_token, ep_dist, params)
    jax.block_until_ready((output, local_matrix))

    ref_out, ref_lm = reference_forward(seq, cls_token, ep_dist, params)
    assert output.shape == (B, LABELS) and local_matrix.shape == (B, L, L, LABELS)
    assert jnp.allclose(output, ref_out, rtol=5e-2, atol=5e-2), (
        float(jnp.max(jnp.abs(output - ref_out))))
    assert jnp.allclose(local_matrix.astype(jnp.float32), ref_lm,
                        rtol=5e-2, atol=5e-2), (
        float(jnp.max(jnp.abs(local_matrix.astype(jnp.float32) - ref_lm))))

    print("KERNEL_OK")
</pallas_src>

<mosaic_0001>
module attributes {stable_mosaic.version = 11 : i64} {
  func.func @conv_kernel(%arg0: i32, %arg1: memref<1x8x32xbf16, #tpu.memory_space<vmem>>, %arg2: memref<32x1536xbf16, #tpu.memory_space<vmem>>, %arg3: memref<1x512xf32, #tpu.memory_space<vmem>>, %arg4: memref<256x768xbf16, #tpu.memory_space<vmem>>, %arg5: memref<1x256xf32, #tpu.memory_space<vmem>>, %arg6: memref<256x768xbf16, #tpu.memory_space<vmem>>, %arg7: memref<1x256xf32, #tpu.memory_space<vmem>>, %arg8: memref<1x8x256xbf16, #tpu.memory_space<vmem>>, %arg9: memref<1x256x8xbf16, #tpu.memory_space<vmem>>) attributes {dimension_semantics = [#tpu.dimension_semantics<parallel>], iteration_bounds = array<i64: 2>, scalar_prefetch = 0 : i64, scratch_operands = 0 : i64, tpu.core_type = #tpu.core_type<tc>, window_params = [{transform_indices = @transform_0, window_bounds = array<i64: 1, 8, 32>}, {pipeline_mode = #tpu.pipeline_mode<synchronous>, transform_indices = @transform_1, window_bounds = array<i64: 32, 1536>}, {pipeline_mode = #tpu.pipeline_mode<synchronous>, transform_indices = @transform_2, window_bounds = array<i64: 1, 512>}, {pipeline_mode = #tpu.pipeline_mode<synchronous>, transform_indices = @transform_3, window_bounds = array<i64: 256, 768>}, {pipeline_mode = #tpu.pipeline_mode<synchronous>, transform_indices = @transform_4, window_bounds = array<i64: 1, 256>}, {pipeline_mode = #tpu.pipeline_mode<synchronous>, transform_indices = @transform_5, window_bounds = array<i64: 256, 768>}, {pipeline_mode = #tpu.pipeline_mode<synchronous>, transform_indices = @transform_6, window_bounds = array<i64: 1, 256>}, {transform_indices = @transform_7, window_bounds = array<i64: 1, 8, 256>}, {transform_indices = @transform_8, window_bounds = array<i64: 1, 256, 8>}]} {
    %c0 = arith.constant 0 : index
    %c0_0 = arith.constant 0 : index
    %c0_1 = arith.constant 0 : index
    %0 = vector.load %arg1[%c0, %c0_0, %c0_1] : memref<1x8x32xbf16, #tpu.memory_space<vmem>>, vector<1x8x32xbf16>
    %1 = vector.shape_cast %0 : vector<1x8x32xbf16> to vector<8x32xbf16>
    %2 = tpu.iota {dimensions = array<i32: 0>} : vector<8x1xi32>
    %c0_2 = arith.constant 0 : index
    %c0_3 = arith.constant 0 : index
    %3 = vector.load %arg2[%c0_2, %c0_3] : memref<32x1536xbf16, #tpu.memory_space<vmem>>, vector<32x1536xbf16>
    %cst = arith.constant dense<0.000000e+00> : vector<8x1536xf32>
    %4 = tpu.matmul %1, %3, %cst {dimension_numbers = #tpu.dot_dimension_numbers<[1], [0], [0], [1], [0, 0, 1, 1], [], []>} : vector<8x32xbf16>, vector<32x1536xbf16>, vector<8x1536xf32> -> vector<8x1536xf32>
    %5 = vector.extract_strided_slice %4 {offsets = [0, 0], sizes = [8, 512], strides = [1, 1]} : vector<8x1536xf32> to vector<8x512xf32>
    %c1_i32 = arith.constant 1 : i32
    %6 = tpu.dynamic_rotate %5 by %c1_i32 dim 0 : vector<8x512xf32>, i32 -> vector<8x512xf32>
    %c0_i32 = arith.constant 0 : i32
    %7 = vector.broadcast %c0_i32 : i32 to vector<8x1xi32>
    %8 = arith.cmpi eq, %2, %7 : vector<8x1xi32>
    %cst_4 = arith.constant 0.000000e+00 : f32
    %9 = vector.shape_cast %8 : vector<8x1xi1> to vector<8x1xi1>
    %10 = vector.broadcast %9 : vector<8x1xi1> to vector<8x512xi1>
    %11 = vector.broadcast %cst_4 : f32 to vector<8x512xf32>
    %12 = arith.select %10, %11, %6 : vector<8x512xi1>, vector<8x512xf32>
    %13 = vector.extract_strided_slice %4 {offsets = [0, 512], sizes = [8, 512], strides = [1, 1]} : vector<8x1536xf32> to vector<8x512xf32>
    %14 = arith.addf %12, %13 : vector<8x512xf32>
    %15 = vector.extract_strided_slice %4 {offsets = [0, 1024], sizes = [8, 512], strides = [1, 1]} : vector<8x1536xf32> to vector<8x512xf32>
    %c7_i32 = arith.constant 7 : i32
    %16 = tpu.dynamic_rotate %15 by %c7_i32 dim 0 : vector<8x512xf32>, i32 -> vector<8x512xf32>
    %c7_i32_5 = arith.constant 7 : i32
    %17 = vector.broadcast %c7_i32_5 : i32 to vector<8x1xi32>
    %18 = arith.cmpi eq, %2, %17 : vector<8x1xi32>
    %cst_6 = arith.constant 0.000000e+00 : f32
    %19 = vector.shape_cast %18 : vector<8x1xi1> to vector<8x1xi1>
    %20 = vector.broadcast %19 : vector<8x1xi1> to vector<8x512xi1>
    %21 = vector.broadcast %cst_6 : f32 to vector<8x512xf32>
    %22 = arith.select %20, %21, %16 : vector<8x512xi1>, vector<8x512xf32>
    %23 = arith.addf %14, %22 : vector<8x512xf32>
    %c0_7 = arith.constant 0 : index
    %c0_8 = arith.constant 0 : index
    %24 = vector.load %arg3[%c0_7, %c0_8] : memref<1x512xf32, #tpu.memory_space<vmem>>, vector<1x512xf32>
    %25 = vector.broadcast %24 : vector<1x512xf32> to vector<8x512xf32>
    %26 = arith.addf %23, %25 : vector<8x512xf32>
    %cst_9 = arith.constant 0.000000e+00 : f32
    %27 = vector.broadcast %cst_9 : f32 to vector<8x512xf32>
    %28 = arith.maximumf %26, %27 : vector<8x512xf32>
    %29 = arith.truncf %28 : vector<8x512xf32> to vector<8x512xbf16>
    %30 = vector.extract_strided_slice %29 {offsets = [0, 0], sizes = [8, 256], strides = [1, 1]} : vector<8x512xbf16> to vector<8x256xbf16>
    %31 = vector.extract_strided_slice %29 {offsets = [0, 256], sizes = [8, 256], strides = [1, 1]} : vector<8x512xbf16> to vector<8x256xbf16>
    %c0_10 = arith.constant 0 : index
    %c0_11 = arith.constant 0 : index
    %32 = vector.load %arg4[%c0_10, %c0_11] : memref<256x768xbf16, #tpu.memory_space<vmem>>, vector<256x768xbf16>
    %cst_12 = arith.constant dense<0.000000e+00> : vector<8x768xf32>
    %33 = tpu.matmul %30, %32, %cst_12 {dimension_numbers = #tpu.dot_dimension_numbers<[1], [0], [0], [1], [0, 0, 1, 1], [], []>} : vector<8x256xbf16>, vector<256x768xbf16>, vector<8x768xf32> -> vector<8x768xf32>
    %34 = vector.extract_strided_slice %33 {offsets = [0, 0], sizes = [8, 256], strides = [1, 1]} : vector<8x768xf32> to vector<8x256xf32>
    %c1_i32_13 = arith.constant 1 : i32
    %35 = tpu.dynamic_rotate %34 by %c1_i32_13 dim 0 : vector<8x256xf32>, i32 -> vector<8x256xf32>
    %c0_i32_14 = arith.constant 0 : i32
    %36 = vector.broadcast %c0_i32_14 : i32 to vector<8x1xi32>
    %37 = arith.cmpi eq, %2, %36 : vector<8x1xi32>
    %cst_15 = arith.constant 0.000000e+00 : f32
    %38 = vector.shape_cast %37 : vector<8x1xi1> to vector<8x1xi1>
    %39 = vector.broadcast %38 : vector<8x1xi1> to vector<8x256xi1>
    %40 = vector.broadcast %cst_15 : f32 to vector<8x256xf32>
    %41 = arith.select %39, %40, %35 : vector<8x256xi1>, vector<8x256xf32>
    %42 = vector.extract_strided_slice %33 {offsets = [0, 256], sizes = [8, 256], strides = [1, 1]} : vector<8x768xf32> to vector<8x256xf32>
    %43 = arith.addf %41, %42 : vector<8x256xf32>
    %44 = vector.extract_strided_slice %33 {offsets = [0, 512], sizes = [8, 256], strides = [1, 1]} : vector<8x768xf32> to vector<8x256xf32>
    %c7_i32_16 = arith.constant 7 : i32
    %45 = tpu.dynamic_rotate %44 by %c7_i32_16 dim 0 : vector<8x256xf32>, i32 -> vector<8x256xf32>
    %c7_i32_17 = arith.constant 7 : i32
    %46 = vector.broadcast %c7_i32_17 : i32 to vector<8x1xi32>
    %47 = arith.cmpi eq, %2, %46 : vector<8x1xi32>
    %cst_18 = arith.constant 0.000000e+00 : f32
    %48 = vector.shape_cast %47 : vector<8x1xi1> to vector<8x1xi1>
    %49 = vector.broadcast %48 : vector<8x1xi1> to vector<8x256xi1>
    %50 = vector.broadcast %cst_18 : f32 to vector<8x256xf32>
    %51 = arith.select %49, %50, %45 : vector<8x256xi1>, vector<8x256xf32>
    %52 = arith.addf %43, %51 : vector<8x256xf32>
    %c0_19 = arith.constant 0 : index
    %c0_20 = arith.constant 0 : index
    %53 = vector.load %arg5[%c0_19, %c0_20] : memref<1x256xf32, #tpu.memory_space<vmem>>, vector<1x256xf32>
    %54 = vector.broadcast %53 : vector<1x256xf32> to vector<8x256xf32>
    %55 = arith.addf %52, %54 : vector<8x256xf32>
    %56 = arith.truncf %55 : vector<8x256xf32> to vector<8x256xbf16>
    %c0_21 = arith.constant 0 : index
    %c0_22 = arith.constant 0 : index
    %c0_23 = arith.constant 0 : index
    %57 = vector.load %arg8[%c0_21, %c0_22, %c0_23] : memref<1x8x256xbf16, #tpu.memory_space<vmem>>, vector<1x8x256xbf16>
    %58 = vector.shape_cast %57 : vector<1x8x256xbf16> to vector<8x256xbf16>
    %59 = vector.shape_cast %56 : vector<8x256xbf16> to vector<1x8x256xbf16>
    tpu.vector_store %arg8[%c0_21, %c0_22, %c0_23], %59 {strides = array<i32>} : memref<1x8x256xbf16, #tpu.memory_space<vmem>>, vector<1x8x256xbf16>,
    %c0_24 = arith.constant 0 : index
    %c0_25 = arith.constant 0 : index
    %60 = vector.load %arg6[%c0_24, %c0_25] : memref<256x768xbf16, #tpu.memory_space<vmem>>, vector<256x768xbf16>
    %cst_26 = arith.constant dense<0.000000e+00> : vector<8x768xf32>
    %61 = tpu.matmul %31, %60, %cst_26 {dimension_numbers = #tpu.dot_dimension_numbers<[1], [0], [0], [1], [0, 0, 1, 1], [], []>} : vector<8x256xbf16>, vector<256x768xbf16>, vector<8x768xf32> -> vector<8x768xf32>
    %62 = vector.extract_strided_slice %61 {offsets = [0, 0], sizes = [8, 256], strides = [1, 1]} : vector<8x768xf32> to vector<8x256xf32>
    %c1_i32_27 = arith.constant 1 : i32
    %63 = tpu.dynamic_rotate %62 by %c1_i32_27 dim 0 : vector<8x256xf32>, i32 -> vector<8x256xf32>
    %c0_i32_28 = arith.constant 0 : i32
    %64 = vector.broadcast %c0_i32_28 : i32 to vector<8x1xi32>
    %65 = arith.cmpi eq, %2, %64 : vector<8x1xi32>
    %cst_29 = arith.constant 0.000000e+00 : f32
    %66 = vector.shape_cast %65 : vector<8x1xi1> to vector<8x1xi1>
    %67 = vector.broadcast %66 : vector<8x1xi1> to vector<8x256xi1>
    %68 = vector.broadcast %cst_29 : f32 to vector<8x256xf32>
    %69 = arith.select %67, %68, %63 : vector<8x256xi1>, vector<8x256xf32>
    %70 = vector.extract_strided_slice %61 {offsets = [0, 256], sizes = [8, 256], strides = [1, 1]} : vector<8x768xf32> to vector<8x256xf32>
    %71 = arith.addf %69, %70 : vector<8x256xf32>
    %72 = vector.extract_strided_slice %61 {offsets = [0, 512], sizes = [8, 256], strides = [1, 1]} : vector<8x768xf32> to vector<8x256xf32>
    %c7_i32_30 = arith.constant 7 : i32
    %73 = tpu.dynamic_rotate %72 by %c7_i32_30 dim 0 : vector<8x256xf32>, i32 -> vector<8x256xf32>
    %c7_i32_31 = arith.constant 7 : i32
    %74 = vector.broadcast %c7_i32_31 : i32 to vector<8x1xi32>
    %75 = arith.cmpi eq, %2, %74 : vector<8x1xi32>
    %cst_32 = arith.constant 0.000000e+00 : f32
    %76 = vector.shape_cast %75 : vector<8x1xi1> to vector<8x1xi1>
    %77 = vector.broadcast %76 : vector<8x1xi1> to vector<8x256xi1>
    %78 = vector.broadcast %cst_32 : f32 to vector<8x256xf32>
    %79 = arith.select %77, %78, %73 : vector<8x256xi1>, vector<8x256xf32>
    %80 = arith.addf %71, %79 : vector<8x256xf32>
    %c0_33 = arith.constant 0 : index
    %c0_34 = arith.constant 0 : index
    %81 = vector.load %arg7[%c0_33, %c0_34] : memref<1x256xf32, #tpu.memory_space<vmem>>, vector<1x256xf32>
    %82 = vector.broadcast %81 : vector<1x256xf32> to vector<8x256xf32>
    %83 = arith.addf %80, %82 : vector<8x256xf32>
    %84 = tpu.transpose %83, [1, 0] : vector<8x256xf32> -> vector<256x8xf32>
    %85 = arith.truncf %84 : vector<256x8xf32> to vector<256x8xbf16>
    %c0_35 = arith.constant 0 : index
    %c0_36 = arith.constant 0 : index
    %c0_37 = arith.constant 0 : index
    %86 = vector.load %arg9[%c0_35, %c0_36, %c0_37] : memref<1x256x8xbf16, #tpu.memory_space<vmem>>, vector<1x256x8xbf16>
    %87 = vector.shape_cast %86 : vector<1x256x8xbf16> to vector<256x8xbf16>
    %88 = vector.shape_cast %85 : vector<256x8xbf16> to vector<1x256x8xbf16>
    tpu.vector_store %arg9[%c0_35, %c0_36, %c0_37], %88 {strides = array<i32>} : memref<1x256x8xbf16, #tpu.memory_space<vmem>>, vector<1x256x8xbf16>,
    return
  }
  func.func @transform_0(%arg0: i32) -> (i32, i32, i32) {
    %c0_i32 = arith.constant 0 : i32
    %c0_i32_0 = arith.constant 0 : i32
    %c0_i32_1 = arith.constant 0 : i32
    return %arg0, %c0_i32, %c0_i32_0 : i32, i32, i32
  }
  func.func @transform_1(%arg0: i32) -> (i32, i32) {
    %c0_i32 = arith.constant 0 : i32
    %c0_i32_0 = arith.constant 0 : i32
    %c0_i32_1 = arith.constant 0 : i32
    return %c0_i32, %c0_i32_0 : i32, i32
  }
  func.func @transform_2(%arg0: i32) -> (i32, i32) {
    %c0_i32 = arith.constant 0 : i32
    %c0_i32_0 = arith.constant 0 : i32
    %c0_i32_1 = arith.constant 0 : i32
    return %c0_i32, %c0_i32_0 : i32, i32
  }
  func.func @transform_3(%arg0: i32) -> (i32, i32) {
    %c0_i32 = arith.constant 0 : i32
    %c0_i32_0 = arith.constant 0 : i32
    %c0_i32_1 = arith.constant 0 : i32
    return %c0_i32, %c0_i32_0 : i32, i32
  }
  func.func @transform_4(%arg0: i32) -> (i32, i32) {
    %c0_i32 = arith.constant 0 : i32
    %c0_i32_0 = arith.constant 0 : i32
    %c0_i32_1 = arith.constant 0 : i32
    return %c0_i32, %c0_i32_0 : i32, i32
  }
  func.func @transform_5(%arg0: i32) -> (i32, i32) {
    %c0_i32 = arith.constant 0 : i32
    %c0_i32_0 = arith.constant 0 : i32
    %c0_i32_1 = arith.constant 0 : i32
    return %c0_i32, %c0_i32_0 : i32, i32
  }
  func.func @transform_6(%arg0: i32) -> (i32, i32) {
    %c0_i32 = arith.constant 0 : i32
    %c0_i32_0 = arith.constant 0 : i32
    %c0_i32_1 = arith.constant 0 : i32
    return %c0_i32, %c0_i32_0 : i32, i32
  }
  func.func @transform_7(%arg0: i32) -> (i32, i32, i32) {
    %c0_i32 = arith.constant 0 : i32
    %c0_i32_0 = arith.constant 0 : i32
    %c0_i32_1 = arith.constant 0 : i32
    return %arg0, %c0_i32, %c0_i32_0 : i32, i32, i32
  }
  func.func @transform_8(%arg0: i32) -> (i32, i32, i32) {
    %c0_i32 = arith.constant 0 : i32
    %c0_i32_0 = arith.constant 0 : i32
    %c0_i32_1 = arith.constant 0 : i32
    return %arg0, %c0_i32, %c0_i32_0 : i32, i32, i32
  }
}

module attributes {stable_mosaic.version = 11 : i64} {
  func.func @biaffine_kernel(%arg0: i32, %arg1: i32, %arg2: memref<1x8x256xbf16, #tpu.memory_space<vmem>>, %arg3: memref<1x256x8xbf16, #tpu.memory_space<vmem>>, %arg4: memref<1x8x8xf32, #tpu.memory_space<vmem>>, %arg5: memref<256x1024xbf16, #tpu.memory_space<vmem>>, %arg6: memref<1x1x1x4xf32, #tpu.memory_space<vmem>>, %arg7: memref<1x4x8x8xbf16, #tpu.memory_space<vmem>>) attributes {dimension_semantics = [#tpu.dimension_semantics<parallel>, #tpu.dimension_semantics<parallel>], iteration_bounds = array<i64: 2, 1>, scalar_prefetch = 0 : i64, scratch_operands = 0 : i64, tpu.core_type = #tpu.core_type<tc>, window_params = [{transform_indices = @transform_0, window_bounds = array<i64: 1, 8, 256>}, {transform_indices = @transform_1, window_bounds = array<i64: 1, 256, 8>}, {transform_indices = @transform_2, window_bounds = array<i64: 1, 8, 8>}, {pipeline_mode = #tpu.pipeline_mode<synchronous>, transform_indices = @transform_3, window_bounds = array<i64: 256, 1024>}, {transform_indices = @transform_4, window_bounds = array<i64: 1, 1, 1, 4>}, {transform_indices = @transform_5, window_bounds = array<i64: 1, 4, 8, 8>}]} {
    %c0 = arith.constant 0 : index
    %c0_0 = arith.constant 0 : index
    %c0_1 = arith.constant 0 : index
    %0 = vector.load %arg2[%c0, %c0_0, %c0_1] : memref<1x8x256xbf16, #tpu.memory_space<vmem>>, vector<1x8x256xbf16>
    %1 = vector.shape_cast %0 : vector<1x8x256xbf16> to vector<8x256xbf16>
    %c0_2 = arith.constant 0 : index
    %c0_3 = arith.constant 0 : index
    %c0_4 = arith.constant 0 : index
    %2 = vector.load %arg3[%c0_2, %c0_3, %c0_4] : memref<1x256x8xbf16, #tpu.memory_space<vmem>>, vector<1x256x8xbf16>
    %3 = vector.shape_cast %2 : vector<1x256x8xbf16> to vector<256x8xbf16>
    %c0_5 = arith.constant 0 : index
    %c0_6 = arith.constant 0 : index
    %c0_7 = arith.constant 0 : index
    %4 = vector.load %arg4[%c0_5, %c0_6, %c0_7] : memref<1x8x8xf32, #tpu.memory_space<vmem>>, vector<1x8x8xf32>
    %5 = vector.shape_cast %4 : vector<1x8x8xf32> to vector<8x8xf32>
    %c1024_i32 = arith.constant 1024 : i32
    %6 = arith.muli %arg1, %c1024_i32 : i32
    %7 = tpu.assume_multiple %6, 1024 : i32
    %c0_8 = arith.constant 0 : index
    %8 = arith.index_cast %7 : i32 to index
    %9 = vector.load %arg5[%c0_8, %8] : memref<256x1024xbf16, #tpu.memory_space<vmem>>, vector<256x1024xbf16>
    %cst = arith.constant dense<0.000000e+00> : vector<8x1024xf32>
    %10 = tpu.matmul %1, %9, %cst {dimension_numbers = #tpu.dot_dimension_numbers<[1], [0], [0], [1], [0, 0, 1, 1], [], []>} : vector<8x256xbf16>, vector<256x1024xbf16>, vector<8x1024xf32> -> vector<8x1024xf32>
    %11 = arith.truncf %10 : vector<8x1024xf32> to vector<8x1024xbf16>
    %12 = tpu.iota {dimensions = array<i32: 1>} : vector<1x4xi32>
    %cst_9 = arith.constant 0.000000e+00 : f32
    %13 = vector.broadcast %cst_9 : f32 to vector<1x4xf32>
    %14 = vector.extract_strided_slice %11 {offsets = [0, 0], sizes = [8, 256], strides = [1, 1]} : vector<8x1024xbf16> to vector<8x256xbf16>
    %cst_10 = arith.constant dense<0.000000e+00> : vector<8x8xf32>
    %15 = tpu.matmul %14, %3, %cst_10 {dimension_numbers = #tpu.dot_dimension_numbers<[1], [0], [0], [1], [0, 0, 1, 1], [], []>} : vector<8x256xbf16>, vector<256x8xbf16>, vector<8x8xf32> -> vector<8x8xf32>
    %16 = arith.addf %15, %5 : vector<8x8xf32>
    %17 = arith.truncf %16 : vector<8x8xf32> to vector<8x8xbf16>
    %c0_11 = arith.constant 0 : index
    %c0_12 = arith.constant 0 : index
    %c0_13 = arith.constant 0 : index
    %c0_14 = arith.constant 0 : index
    %18 = vector.load %arg7[%c0_11, %c0_12, %c0_13, %c0_14] : memref<1x4x8x8xbf16, #tpu.memory_space<vmem>>, vector<1x1x8x8xbf16>
    %19 = vector.shape_cast %18 : vector<1x1x8x8xbf16> to vector<8x8xbf16>
    %20 = vector.shape_cast %17 : vector<8x8xbf16> to vector<1x1x8x8xbf16>
    tpu.vector_store %arg7[%c0_11, %c0_12, %c0_13, %c0_14], %20 {strides = array<i32>} : memref<1x4x8x8xbf16, #tpu.memory_space<vmem>>, vector<1x1x8x8xbf16>,
    %cst_15 = arith.constant dense<0xFF800000> : vector<8xf32>
    %21 = vector.multi_reduction <maximumf>, %16, %cst_15 [1] : vector<8x8xf32> to vector<8xf32>
    %22 = vector.shape_cast %21 : vector<8xf32> to vector<8x1xf32>
    %cst_16 = arith.constant dense<0xFF800000> : vector<1xf32>
    %23 = vector.multi_reduction <maximumf>, %22, %cst_16 [0] : vector<8x1xf32> to vector<1xf32>
    %24 = vector.shape_cast %23 : vector<1xf32> to vector<1x1xf32>
    %25 = vector.broadcast %24 : vector<1x1xf32> to vector<8x8xf32>
    %26 = arith.subf %16, %25 : vector<8x8xf32>
    %27 = math.exp %26 : vector<8x8xf32>
    %cst_17 = arith.constant dense<0.000000e+00> : vector<8xf32>
    %28 = vector.multi_reduction <add>, %27, %cst_17 [1] : vector<8x8xf32> to vector<8xf32>
    %29 = vector.shape_cast %28 : vector<8xf32> to vector<8x1xf32>
    %cst_18 = arith.constant dense<0.000000e+00> : vector<1xf32>
    %30 = vector.multi_reduction <add>, %29, %cst_18 [0] : vector<8x1xf32> to vector<1xf32>
    %31 = vector.shape_cast %30 : vector<1xf32> to vector<1x1xf32>
    %32 = math.log %31 : vector<1x1xf32>
    %33 = arith.addf %24, %32 : vector<1x1xf32>
    %c0_i32 = arith.constant 0 : i32
    %34 = vector.broadcast %c0_i32 : i32 to vector<1x4xi32>
    %35 = arith.cmpi eq, %12, %34 : vector<1x4xi32>
    %cst_19 = arith.constant 0.000000e+00 : f32
    %36 = vector.shape_cast %33 : vector<1x1xf32> to vector<1x1xf32>
    %37 = vector.broadcast %36 : vector<1x1xf32> to vector<1x4xf32>
    %38 = vector.broadcast %cst_19 : f32 to vector<1x4xf32>
    %39 = arith.select %35, %37, %38 : vector<1x4xi1>, vector<1x4xf32>
    %40 = arith.addf %13, %39 : vector<1x4xf32>
    %41 = vector.extract_strided_slice %11 {offsets = [0, 256], sizes = [8, 256], strides = [1, 1]} : vector<8x1024xbf16> to vector<8x256xbf16>
    %cst_20 = arith.constant dense<0.000000e+00> : vector<8x8xf32>
    %42 = tpu.matmul %41, %3, %cst_20 {dimension_numbers = #tpu.dot_dimension_numbers<[1], [0], [0], [1], [0, 0, 1, 1], [], []>} : vector<8x256xbf16>, vector<256x8xbf16>, vector<8x8xf32> -> vector<8x8xf32>
    %43 = arith.addf %42, %5 : vector<8x8xf32>
    %44 = arith.truncf %43 : vector<8x8xf32> to vector<8x8xbf16>
    %c0_21 = arith.constant 0 : index
    %c1 = arith.constant 1 : index
    %c0_22 = arith.constant 0 : index
    %c0_23 = arith.constant 0 : index
    %45 = vector.load %arg7[%c0_21, %c1, %c0_22, %c0_23] : memref<1x4x8x8xbf16, #tpu.memory_space<vmem>>, vector<1x1x8x8xbf16>
    %46 = vector.shape_cast %45 : vector<1x1x8x8xbf16> to vector<8x8xbf16>
    %47 = vector.shape_cast %44 : vector<8x8xbf16> to vector<1x1x8x8xbf16>
    tpu.vector_store %arg7[%c0_21, %c1, %c0_22, %c0_23], %47 {strides = array<i32>} : memref<1x4x8x8xbf16, #tpu.memory_space<vmem>>, vector<1x1x8x8xbf16>,
    %cst_24 = arith.constant dense<0xFF800000> : vector<8xf32>
    %48 = vector.multi_reduction <maximumf>, %43, %cst_24 [1] : vector<8x8xf32> to vector<8xf32>
    %49 = vector.shape_cast %48 : vector<8xf32> to vector<8x1xf32>
    %cst_25 = arith.constant dense<0xFF800000> : vector<1xf32>
    %50 = vector.multi_reduction <maximumf>, %49, %cst_25 [0] : vector<8x1xf32> to vector<1xf32>
    %51 = vector.shape_cast %50 : vector<1xf32> to vector<1x1xf32>
    %52 = vector.broadcast %51 : vector<1x1xf32> to vector<8x8xf32>
    %53 = arith.subf %43, %52 : vector<8x8xf32>
    %54 = math.exp %53 : vector<8x8xf32>
    %cst_26 = arith.constant dense<0.000000e+00> : vector<8xf32>
    %55 = vector.multi_reduction <add>, %54, %cst_26 [1] : vector<8x8xf32> to vector<8xf32>
    %56 = vector.shape_cast %55 : vector<8xf32> to vector<8x1xf32>
    %cst_27 = arith.constant dense<0.000000e+00> : vector<1xf32>
    %57 = vector.multi_reduction <add>, %56, %cst_27 [0] : vector<8x1xf32> to vector<1xf32>
    %58 = vector.shape_cast %57 : vector<1xf32> to vector<1x1xf32>
    %59 = math.log %58 : vector<1x1xf32>
    %60 = arith.addf %51, %59 : vector<1x1xf32>
    %c1_i32 = arith.constant 1 : i32
    %61 = vector.broadcast %c1_i32 : i32 to vector<1x4xi32>
    %62 = arith.cmpi eq, %12, %61 : vector<1x4xi32>
    %cst_28 = arith.constant 0.000000e+00 : f32
    %63 = vector.shape_cast %60 : vector<1x1xf32> to vector<1x1xf32>
    %64 = vector.broadcast %63 : vector<1x1xf32> to vector<1x4xf32>
    %65 = vector.broadcast %cst_28 : f32 to vector<1x4xf32>
    %66 = arith.select %62, %64, %65 : vector<1x4xi1>, vector<1x4xf32>
    %67 = arith.addf %40, %66 : vector<1x4xf32>
    %68 = vector.extract_strided_slice %11 {offsets = [0, 512], sizes = [8, 256], strides = [1, 1]} : vector<8x1024xbf16> to vector<8x256xbf16>
    %cst_29 = arith.constant dense<0.000000e+00> : vector<8x8xf32>
    %69 = tpu.matmul %68, %3, %cst_29 {dimension_numbers = #tpu.dot_dimension_numbers<[1], [0], [0], [1], [0, 0, 1, 1], [], []>} : vector<8x256xbf16>, vector<256x8xbf16>, vector<8x8xf32> -> vector<8x8xf32>
    %70 = arith.addf %69, %5 : vector<8x8xf32>
    %71 = arith.truncf %70 : vector<8x8xf32> to vector<8x8xbf16>
    %c0_30 = arith.constant 0 : index
    %c2 = arith.constant 2 : index
    %c0_31 = arith.constant 0 : index
    %c0_32 = arith.constant 0 : index
    %72 = vector.load %arg7[%c0_30, %c2, %c0_31, %c0_32] : memref<1x4x8x8xbf16, #tpu.memory_space<vmem>>, vector<1x1x8x8xbf16>
    %73 = vector.shape_cast %72 : vector<1x1x8x8xbf16> to vector<8x8xbf16>
    %74 = vector.shape_cast %71 : vector<8x8xbf16> to vector<1x1x8x8xbf16>
    tpu.vector_store %arg7[%c0_30, %c2, %c0_31, %c0_32], %74 {strides = array<i32>} : memref<1x4x8x8xbf16, #tpu.memory_space<vmem>>, vector<1x1x8x8xbf16>,
    %cst_33 = arith.constant dense<0xFF800000> : vector<8xf32>
    %75 = vector.multi_reduction <maximumf>, %70, %cst_33 [1] : vector<8x8xf32> to vector<8xf32>
    %76 = vector.shape_cast %75 : vector<8xf32> to vector<8x1xf32>
    %cst_34 = arith.constant dense<0xFF800000> : vector<1xf32>
    %77 = vector.multi_reduction <maximumf>, %76, %cst_34 [0] : vector<8x1xf32> to vector<1xf32>
    %78 = vector.shape_cast %77 : vector<1xf32> to vector<1x1xf32>
    %79 = vector.broadcast %78 : vector<1x1xf32> to vector<8x8xf32>
    %80 = arith.subf %70, %79 : vector<8x8xf32>
    %81 = math.exp %80 : vector<8x8xf32>
    %cst_35 = arith.constant dense<0.000000e+00> : vector<8xf32>
    %82 = vector.multi_reduction <add>, %81, %cst_35 [1] : vector<8x8xf32> to vector<8xf32>
    %83 = vector.shape_cast %82 : vector<8xf32> to vector<8x1xf32>
    %cst_36 = arith.constant dense<0.000000e+00> : vector<1xf32>
    %84 = vector.multi_reduction <add>, %83, %cst_36 [0] : vector<8x1xf32> to vector<1xf32>
    %85 = vector.shape_cast %84 : vector<1xf32> to vector<1x1xf32>
    %86 = math.log %85 : vector<1x1xf32>
    %87 = arith.addf %78, %86 : vector<1x1xf32>
    %c2_i32 = arith.constant 2 : i32
    %88 = vector.broadcast %c2_i32 : i32 to vector<1x4xi32>
    %89 = arith.cmpi eq, %12, %88 : vector<1x4xi32>
    %cst_37 = arith.constant 0.000000e+00 : f32
    %90 = vector.shape_cast %87 : vector<1x1xf32> to vector<1x1xf32>
    %91 = vector.broadcast %90 : vector<1x1xf32> to vector<1x4xf32>
    %92 = vector.broadcast %cst_37 : f32 to vector<1x4xf32>
    %93 = arith.select %89, %91, %92 : vector<1x4xi1>, vector<1x4xf32>
    %94 = arith.addf %67, %93 : vector<1x4xf32>
    %95 = vector.extract_strided_slice %11 {offsets = [0, 768], sizes = [8, 256], strides = [1, 1]} : vector<8x1024xbf16> to vector<8x256xbf16>
    %cst_38 = arith.constant dense<0.000000e+00> : vector<8x8xf32>
    %96 = tpu.matmul %95, %3, %cst_38 {dimension_numbers = #tpu.dot_dimension_numbers<[1], [0], [0], [1], [0, 0, 1, 1], [], []>} : vector<8x256xbf16>, vector<256x8xbf16>, vector<8x8xf32> -> vector<8x8xf32>
    %97 = arith.addf %96, %5 : vector<8x8xf32>
    %98 = arith.truncf %97 : vector<8x8xf32> to vector<8x8xbf16>
    %c0_39 = arith.constant 0 : index
    %c3 = arith.constant 3 : index
    %c0_40 = arith.constant 0 : index
    %c0_41 = arith.constant 0 : index
    %99 = vector.load %arg7[%c0_39, %c3, %c0_40, %c0_41] : memref<1x4x8x8xbf16, #tpu.memory_space<vmem>>, vector<1x1x8x8xbf16>
    %100 = vector.shape_cast %99 : vector<1x1x8x8xbf16> to vector<8x8xbf16>
    %101 = vector.shape_cast %98 : vector<8x8xbf16> to vector<1x1x8x8xbf16>
    tpu.vector_store %arg7[%c0_39, %c3, %c0_40, %c0_41], %101 {strides = array<i32>} : memref<1x4x8x8xbf16, #tpu.memory_space<vmem>>, vector<1x1x8x8xbf16>,
    %cst_42 = arith.constant dense<0xFF800000> : vector<8xf32>
    %102 = vector.multi_reduction <maximumf>, %97, %cst_42 [1] : vector<8x8xf32> to vector<8xf32>
    %103 = vector.shape_cast %102 : vector<8xf32> to vector<8x1xf32>
    %cst_43 = arith.constant dense<0xFF800000> : vector<1xf32>
    %104 = vector.multi_reduction <maximumf>, %103, %cst_43 [0] : vector<8x1xf32> to vector<1xf32>
    %105 = vector.shape_cast %104 : vector<1xf32> to vector<1x1xf32>
    %106 = vector.broadcast %105 : vector<1x1xf32> to vector<8x8xf32>
    %107 = arith.subf %97, %106 : vector<8x8xf32>
    %108 = math.exp %107 : vector<8x8xf32>
    %cst_44 = arith.constant dense<0.000000e+00> : vector<8xf32>
    %109 = vector.multi_reduction <add>, %108, %cst_44 [1] : vector<8x8xf32> to vector<8xf32>
    %110 = vector.shape_cast %109 : vector<8xf32> to vector<8x1xf32>
    %cst_45 = arith.constant dense<0.000000e+00> : vector<1xf32>
    %111 = vector.multi_reduction <add>, %110, %cst_45 [0] : vector<8x1xf32> to vector<1xf32>
    %112 = vector.shape_cast %111 : vector<1xf32> to vector<1x1xf32>
    %113 = math.log %112 : vector<1x1xf32>
    %114 = arith.addf %105, %113 : vector<1x1xf32>
    %c3_i32 = arith.constant 3 : i32
    %115 = vector.broadcast %c3_i32 : i32 to vector<1x4xi32>
    %116 = arith.cmpi eq, %12, %115 : vector<1x4xi32>
    %cst_46 = arith.constant 0.000000e+00 : f32
    %117 = vector.shape_cast %114 : vector<1x1xf32> to vector<1x1xf32>
    %118 = vector.broadcast %117 : vector<1x1xf32> to vector<1x4xf32>
    %119 = vector.broadcast %cst_46 : f32 to vector<1x4xf32>
    %120 = arith.select %116, %118, %119 : vector<1x4xi1>, vector<1x4xf32>
    %121 = arith.addf %94, %120 : vector<1x4xf32>
    %c0_47 = arith.constant 0 : index
    %c0_48 = arith.constant 0 : index
    %c0_49 = arith.constant 0 : index
    %c0_50 = arith.constant 0 : index
    %122 = vector.load %arg6[%c0_47, %c0_48, %c0_49, %c0_50] : memref<1x1x1x4xf32, #tpu.memory_space<vmem>>, vector<1x1x1x4xf32>
    %123 = vector.shape_cast %122 : vector<1x1x1x4xf32> to vector<1x4xf32>
    %124 = vector.shape_cast %121 : vector<1x4xf32> to vector<1x1x1x4xf32>
    tpu.vector_store %arg6[%c0_47, %c0_48, %c0_49, %c0_50], %124 {strides = array<i32>} : memref<1x1x1x4xf32, #tpu.memory_space<vmem>>, vector<1x1x1x4xf32>,
    return
  }
  func.func @transform_0(%arg0: i32, %arg1: i32) -> (i32, i32, i32) {
    %c0_i32 = arith.constant 0 : i32
    %c0_i32_0 = arith.constant 0 : i32
    %c0_i32_1 = arith.constant 0 : i32
    return %arg0, %c0_i32, %c0_i32_0 : i32, i32, i32
  }
  func.func @transform_1(%arg0: i32, %arg1: i32) -> (i32, i32, i32) {
    %c0_i32 = arith.constant 0 : i32
    %c0_i32_0 = arith.constant 0 : i32
    %c0_i32_1 = arith.constant 0 : i32
    return %arg0, %c0_i32, %c0_i32_0 : i32, i32, i32
  }
  func.func @transform_2(%arg0: i32, %arg1: i32) -> (i32, i32, i32) {
    %c0_i32 = arith.constant 0 : i32
    %c0_i32_0 = arith.constant 0 : i32
    %c0_i32_1 = arith.constant 0 : i32
    return %arg0, %c0_i32, %c0_i32_0 : i32, i32, i32
  }
  func.func @transform_3(%arg0: i32, %arg1: i32) -> (i32, i32) {
    %c0_i32 = arith.constant 0 : i32
    %c0_i32_0 = arith.constant 0 : i32
    %c0_i32_1 = arith.constant 0 : i32
    return %c0_i32, %c0_i32_0 : i32, i32
  }
  func.func @transform_4(%arg0: i32, %arg1: i32) -> (i32, i32, i32, i32) {
    %c0_i32 = arith.constant 0 : i32
    %c0_i32_0 = arith.constant 0 : i32
    %c0_i32_1 = arith.constant 0 : i32
    return %arg0, %arg1, %c0_i32, %c0_i32_0 : i32, i32, i32, i32
  }
  func.func @transform_5(%arg0: i32, %arg1: i32) -> (i32, i32, i32, i32) {
    %c0_i32 = arith.constant 0 : i32
    %c0_i32_0 = arith.constant 0 : i32
    %c0_i32_1 = arith.constant 0 : i32
    return %arg0, %arg1, %c0_i32, %c0_i32_0 : i32, i32, i32, i32
  }
}

</mosaic_0001>

<llo_original>
// kernel: biaffine_pairwise_forward.2
$region0: #{biaffine_pairwise_forward.2}
  #allocation0 [shape = 'u32[]', space=smem, size = 0x4, offset = 0x4, fixed_abs, tag = 'smem constant byte address 0x4 - core index']
  #allocation1 [shape = 'u32[144,128]{1,0:T(1,128)}', space=vmem, size = 0x12000, scoped, tag = 'internal scratch']
  %s0 = inlined_call_operand.vmem [shape: bf16[2,8,32], index: 0, kind: input, shape index: {}]
  %s1 = inlined_call_operand.vmem [shape: bf16[32,1536], index: 1, kind: input, shape index: {}]
  %s2 = inlined_call_operand.vmem [shape: f32[1,512], index: 2, kind: input, shape index: {}]
  %s3 = inlined_call_operand.vmem [shape: bf16[256,768], index: 3, kind: input, shape index: {}]
  %s4 = inlined_call_operand.vmem [shape: f32[1,256], index: 4, kind: input, shape index: {}]
  %s5 = inlined_call_operand.vmem [shape: bf16[256,768], index: 5, kind: input, shape index: {}]
  %s6 = inlined_call_operand.vmem [shape: f32[1,256], index: 6, kind: input, shape index: {}]
  %s7 = inlined_call_operand.vmem [shape: bf16[2,8,256], index: 7, kind: output, shape index: {0}]
  %s8 = inlined_call_operand.vmem [shape: bf16[2,256,8], index: 8, kind: output, shape index: {1}]
  %9 = xla_tuple %s7, %s8
  %s10 = sld [smem:[#allocation0]]
  $region69: #{biaffine_pairwise_forward.2} parent=0
    _
  %s12 = ssub.s32 1, %s10
  %s13 = scalar_select 0, %s12, %s10
  loop: start=0, step=1, limit=4
  $region2: #{biaffine_pairwise_forward.2} parent=0 // loop_pre_header
    _
  $region3: #{biaffine_pairwise_forward.2} parent=0 // loop_header
    %s15 = sphi 0, %s19
    %p16 = scmp.ge.s32.totalorder %s15, 4
    %s25 = sphi 0, %s27
    %s28 = sphi 0, %s25
    %s29 = sphi 0, %s28
    %s45 = sphi 0, %s29
    %s49 = sphi 0, %s49
    %s51 = sphi 0, %s49
    %s52 = sphi 0, %s51
    %s66 = sphi 0, %s52
    %s70 = sphi 0, %s70
    %s72 = sphi 0, %s70
    %s73 = sphi 0, %s72
    %s87 = sphi 0, %s73
    %s91 = sphi 0, %s91
    %s93 = sphi 0, %s91
    %s94 = sphi 0, %s93
    %s108 = sphi 0, %s94
    %s112 = sphi 0, %s112
    %s114 = sphi 0, %s112
    %s115 = sphi 0, %s114
    %s129 = sphi 0, %s115
    %s133 = sphi 0, %s133
    %s135 = sphi 0, %s133
    %s136 = sphi 0, %s135
    %s150 = sphi 0, %s136
    %s154 = sphi 0, %s154
    %s156 = sphi 0, %s154
    %s157 = sphi 0, %s156
    %s171 = sphi 0, %s157
    %s177 = sphi 0, %s179
    %s180 = sphi 0, %s177
    %s181 = sphi 0, %s180
    %s197 = sphi 0, %s181
    %s203 = sphi 0, %s205
    %s206 = sphi 0, %s203
    %s207 = sphi 0, %s206
    %s223 = sphi 0, %s207
  $region4: #{biaffine_pairwise_forward.2} parent=0 // loop_header_branch
    %18 = sbr.rel (%p16) target = $region8
  $region5: #{biaffine_pairwise_forward.2} parent=0 // loop_body
    %s20 = ssub.s32 %s15, 1
    %s21 = ssub.s32 %s15, 2
    %s22 = sadd.s32 %s15, 1
    %s23 = ssub.s32 %s15, %s22
    %p24 = scmp.eq.s32.totalorder %s23, 0
    %s26 = sadd.s32 %s25, 1
    %s27 = scalar_select %p24, %s25, %s26
    %p30 = pneg %p24
    %p31 = scmp.eq.s32.totalorder %s15, 1
    %p32 = por %p30, %p31
    %p33 = scmp.ne.s32.totalorder %s25, %s28
    %p34 = scmp.eq.s32.totalorder %s15, 0
    %p35 = por %p33, %p34
    %p36 = scmp.ne.s32.totalorder %s25, %s28
    %p37 = scmp.eq.s32.totalorder %s20, 1
    %p38 = por %p36, %p37
    %p39 = scmp.ne.s32.totalorder %s28, %s29
    %p40 = scmp.eq.s32.totalorder %s20, 0
    %p41 = por %p39, %p40
    %p42 = scmp.ne.s32.totalorder %s28, %s29
    %p43 = scmp.eq.s32.totalorder %s21, 1
    %p44 = por %p42, %p43
    %p46 = scmp.ne.s32.totalorder %s29, %s45
    %p47 = scmp.eq.s32.totalorder %s21, 0
    %p48 = por %p46, %p47
    %s50 = sadd.s32 %s49, 1
    %p53 = scmp.eq.s32.totalorder %s15, 1
    %p54 = scmp.ne.s32.totalorder %s49, %s51
    %p55 = scmp.eq.s32.totalorder %s15, 0
    %p56 = por %p54, %p55
    %p57 = scmp.ne.s32.totalorder %s49, %s51
    %p58 = scmp.eq.s32.totalorder %s20, 1
    %p59 = por %p57, %p58
    %p60 = scmp.ne.s32.totalorder %s51, %s52
    %p61 = scmp.eq.s32.totalorder %s20, 0
    %p62 = por %p60, %p61
    %p63 = scmp.ne.s32.totalorder %s51, %s52
    %p64 = scmp.eq.s32.totalorder %s21, 1
    %p65 = por %p63, %p64
    %p67 = scmp.ne.s32.totalorder %s52, %s66
    %p68 = scmp.eq.s32.totalorder %s21, 0
    %p69 = por %p67, %p68
    %s71 = sadd.s32 %s70, 1
    %p74 = scmp.eq.s32.totalorder %s15, 1
    %p75 = scmp.ne.s32.totalorder %s70, %s72
    %p76 = scmp.eq.s32.totalorder %s15, 0
    %p77 = por %p75, %p76
    %p78 = scmp.ne.s32.totalorder %s70, %s72
    %p79 = scmp.eq.s32.totalorder %s20, 1
    %p80 = por %p78, %p79
    %p81 = scmp.ne.s32.totalorder %s72, %s73
    %p82 = scmp.eq.s32.totalorder %s20, 0
    %p83 = por %p81, %p82
    %p84 = scmp.ne.s32.totalorder %s72, %s73
    %p85 = scmp.eq.s32.totalorder %s21, 1
    %p86 = por %p84, %p85
    %p88 = scmp.ne.s32.totalorder %s73, %s87
    %p89 = scmp.eq.s32.totalorder %s21, 0
    %p90 = por %p88, %p89
    %s92 = sadd.s32 %s91, 1
    %p95 = scmp.eq.s32.totalorder %s15, 1
    %p96 = scmp.ne.s32.totalorder %s91, %s93
    %p97 = scmp.eq.s32.totalorder %s15, 0
    %p98 = por %p96, %p97
    %p99 = scmp.ne.s32.totalorder %s91, %s93
    %p100 = scmp.eq.s32.totalorder %s20, 1
    %p101 = por %p99, %p100
    %p102 = scmp.ne.s32.totalorder %s93, %s94
    %p103 = scmp.eq.s32.totalorder %s20, 0
    %p104 = por %p102, %p103
    %p105 = scmp.ne.s32.totalorder %s93, %s94
    %p106 = scmp.eq.s32.totalorder %s21, 1
    %p107 = por %p105, %p106
    %p109 = scmp.ne.s32.totalorder %s94, %s108
    %p110 = scmp.eq.s32.totalorder %s21, 0
    %p111 = por %p109, %p110
    %s113 = sadd.s32 %s112, 1
    %p116 = scmp.eq.s32.totalorder %s15, 1
    %p117 = scmp.ne.s32.totalorder %s112, %s114
    %p118 = scmp.eq.s32.totalorder %s15, 0
    %p119 = por %p117, %p118
    %p120 = scmp.ne.s32.totalorder %s112, %s114
    %p121 = scmp.eq.s32.totalorder %s20, 1
    %p122 = por %p120, %p121
    %p123 = scmp.ne.s32.totalorder %s114, %s115
    %p124 = scmp.eq.s32.totalorder %s20, 0
    %p125 = por %p123, %p124
    %p126 = scmp.ne.s32.totalorder %s114, %s115
    %p127 = scmp.eq.s32.totalorder %s21, 1
    %p128 = por %p126, %p127
    %p130 = scmp.ne.s32.totalorder %s115, %s129
    %p131 = scmp.eq.s32.totalorder %s21, 0
    %p132 = por %p130, %p131
    %s134 = sadd.s32 %s133, 1
    %p137 = scmp.eq.s32.totalorder %s15, 1
    %p138 = scmp.ne.s32.totalorder %s133, %s135
    %p139 = scmp.eq.s32.totalorder %s15, 0
    %p140 = por %p138, %p139
    %p141 = scmp.ne.s32.totalorder %s133, %s135
    %p142 = scmp.eq.s32.totalorder %s20, 1
    %p143 = por %p141, %p142
    %p144 = scmp.ne.s32.totalorder %s135, %s136
    %p145 = scmp.eq.s32.totalorder %s20, 0
    %p146 = por %p144, %p145
    %p147 = scmp.ne.s32.totalorder %s135, %s136
    %p148 = scmp.eq.s32.totalorder %s21, 1
    %p149 = por %p147, %p148
    %p151 = scmp.ne.s32.totalorder %s136, %s150
    %p152 = scmp.eq.s32.totalorder %s21, 0
    %p153 = por %p151, %p152
    %s155 = sadd.s32 %s154, 1
    %p158 = scmp.eq.s32.totalorder %s15, 1
    %p159 = scmp.ne.s32.totalorder %s154, %s156
    %p160 = scmp.eq.s32.totalorder %s15, 0
    %p161 = por %p159, %p160
    %p162 = scmp.ne.s32.totalorder %s154, %s156
    %p163 = scmp.eq.s32.totalorder %s20, 1
    %p164 = por %p162, %p163
    %p165 = scmp.ne.s32.totalorder %s156, %s157
    %p166 = scmp.eq.s32.totalorder %s20, 0
    %p167 = por %p165, %p166
    %p168 = scmp.ne.s32.totalorder %s156, %s157
    %p169 = scmp.eq.s32.totalorder %s21, 1
    %p170 = por %p168, %p169
    %p172 = scmp.ne.s32.totalorder %s157, %s171
    %p173 = scmp.eq.s32.totalorder %s21, 0
    %p174 = por %p172, %p173
    %s175 = ssub.s32 %s15, %s22
    %p176 = scmp.eq.s32.totalorder %s175, 0
    %s178 = sadd.s32 %s177, 1
    %s179 = scalar_select %p176, %s177, %s178
    %p182 = pneg %p176
    %p183 = scmp.eq.s32.totalorder %s15, 1
    %p184 = por %p182, %p183
    %p185 = scmp.ne.s32.totalorder %s177, %s180
    %p186 = scmp.eq.s32.totalorder %s15, 0
    %p187 = por %p185, %p186
    %p188 = scmp.ne.s32.totalorder %s177, %s180
    %p189 = scmp.eq.s32.totalorder %s20, 1
    %p190 = por %p188, %p189
    %p191 = scmp.ne.s32.totalorder %s180, %s181
    %p192 = scmp.eq.s32.totalorder %s20, 0
    %p193 = por %p191, %p192
    %p194 = scmp.ne.s32.totalorder %s180, %s181
    %p195 = scmp.eq.s32.totalorder %s21, 1
    %p196 = por %p194, %p195
    %p198 = scmp.ne.s32.totalorder %s181, %s197
    %p199 = scmp.eq.s32.totalorder %s21, 0
    %p200 = por %p198, %p199
    %s201 = ssub.s32 %s15, %s22
    %p202 = scmp.eq.s32.totalorder %s201, 0
    %s204 = sadd.s32 %s203, 1
    %s205 = scalar_select %p202, %s203, %s204
    %p208 = pneg %p202
    %p209 = scmp.eq.s32.totalorder %s15, 1
    %p210 = por %p208, %p209
    %p211 = scmp.ne.s32.totalorder %s203, %s206
    %p212 = scmp.eq.s32.totalorder %s15, 0
    %p213 = por %p211, %p212
    %p214 = scmp.ne.s32.totalorder %s203, %s206
    %p215 = scmp.eq.s32.totalorder %s20, 1
    %p216 = por %p214, %p215
    %p217 = scmp.ne.s32.totalorder %s206, %s207
    %p218 = scmp.eq.s32.totalorder %s20, 0
    %p219 = por %p217, %p218
    %p220 = scmp.ne.s32.totalorder %s206, %s207
    %p221 = scmp.eq.s32.totalorder %s21, 1
    %p222 = por %p220, %p221
    %p224 = scmp.ne.s32.totalorder %s207, %s223
    %p225 = scmp.eq.s32.totalorder %s21, 0
    %p226 = por %p224, %p225
    %p227 = scmp.le.s32.totalorder 1, %s15
    %p228 = scmp.lt.s32.totalorder %s15, 3
    %p229 = pnand %p227, %p228
    %p230 = pneg %p229
    // Predicated region
    $region9: #{biaffine_pairwise_forward.2} parent=5 // pred_check
      _
    $region10: #{biaffine_pairwise_forward.2} parent=5 // pred_check_branch
      %232 = sbr.rel (%p229) target = $region12
    $region11: #{biaffine_pairwise_forward.2} parent=5 // pred_region
      %s233 = ssub.s32 %s15, 1
      // Predicated region
      $region13: #{biaffine_pairwise_forward.2} parent=11 // pred_check
        %p234 = pneg %p62
      $region14: #{biaffine_pairwise_forward.2} parent=11 // pred_check_branch
        %236 = sbr.rel (%p234) target = $region16
      $region15: #{biaffine_pairwise_forward.2} parent=11 // pred_region
        _
      $region16: #{biaffine_pairwise_forward.2} parent=11 // pred_fallthru
        _
      // Predicated region
      $region17: #{biaffine_pairwise_forward.2} parent=11 // pred_check
        %p237 = pneg %p83
      $region18: #{biaffine_pairwise_forward.2} parent=11 // pred_check_branch
        %239 = sbr.rel (%p237) target = $region20
      $region19: #{biaffine_pairwise_forward.2} parent=11 // pred_region
        _
      $region20: #{biaffine_pairwise_forward.2} parent=11 // pred_fallthru
        _
      // Predicated region
      $region21: #{biaffine_pairwise_forward.2} parent=11 // pred_check
        %p240 = pneg %p104
      $region22: #{biaffine_pairwise_forward.2} parent=11 // pred_check_branch
        %242 = sbr.rel (%p240) target = $region24
      $region23: #{biaffine_pairwise_forward.2} parent=11 // pred_region
        _
      $region24: #{biaffine_pairwise_forward.2} parent=11 // pred_fallthru
        _
      // Predicated region
      $region25: #{biaffine_pairwise_forward.2} parent=11 // pred_check
        %p243 = pneg %p125
      $region26: #{biaffine_pairwise_forward.2} parent=11 // pred_check_branch
        %245 = sbr.rel (%p243) target = $region28
      $region27: #{biaffine_pairwise_forward.2} parent=11 // pred_region
        _
      $region28: #{biaffine_pairwise_forward.2} parent=11 // pred_fallthru
        _
      // Predicated region
      $region29: #{biaffine_pairwise_forward.2} parent=11 // pred_check
        %p246 = pneg %p146
      $region30: #{biaffine_pairwise_forward.2} parent=11 // pred_check_branch
        %248 = sbr.rel (%p246) target = $region32
      $region31: #{biaffine_pairwise_forward.2} parent=11 // pred_region
        _
      $region32: #{biaffine_pairwise_forward.2} parent=11 // pred_fallthru
        _
      // Predicated region
      $region33: #{biaffine_pairwise_forward.2} parent=11 // pred_check
        %p249 = pneg %p167
      $region34: #{biaffine_pairwise_forward.2} parent=11 // pred_check_branch
        %251 = sbr.rel (%p249) target = $region36
      $region35: #{biaffine_pairwise_forward.2} parent=11 // pred_region
        _
      $region36: #{biaffine_pairwise_forward.2} parent=11 // pred_fallthru
        _
    $region12: #{biaffine_pairwise_forward.2} parent=5 // pred_fallthru
      _
    %p252 = scmp.lt.s32.totalorder %s15, 2
    // Predicated region
    $region37: #{biaffine_pairwise_forward.2} parent=5 // pred_check
      %p253 = pneg %p252
    $region38: #{biaffine_pairwise_forward.2} parent=5 // pred_check_branch
      %255 = sbr.rel (%p253) target = $region40
    $region39: #{biaffine_pairwise_forward.2} parent=5 // pred_region
      // Predicated region
      $region41: #{biaffine_pairwise_forward.2} parent=39 // pred_check
        %p256 = pneg %p35
      $region42: #{biaffine_pairwise_forward.2} parent=39 // pred_check_branch
        %258 = sbr.rel (%p256) target = $region44
      $region43: #{biaffine_pairwise_forward.2} parent=39 // pred_region
        %p259 = scmp.lt.s32.totalorder %s15, 1
        %s260 = scalar_select %p259, %s15, 1
        %s261 = smul.addr %s260, 4
        %s262 = scalar_lea.vmem %s0, %s261
      $region44: #{biaffine_pairwise_forward.2} parent=39 // pred_fallthru
        _
    $region40: #{biaffine_pairwise_forward.2} parent=5 // pred_fallthru
      _
    %p263 = scmp.le.s32.totalorder 1, %s15
    %p264 = scmp.lt.s32.totalorder %s15, 3
    %p265 = pnand %p263, %p264
    %p266 = pneg %p265
    // Predicated region
    $region45: #{biaffine_pairwise_forward.2} parent=5 // pred_check
      _
    $region46: #{biaffine_pairwise_forward.2} parent=5 // pred_check_branch
      %268 = sbr.rel (%p265) target = $region48
    $region47: #{biaffine_pairwise_forward.2} parent=5 // pred_region
      %s269 = ssub.s32 %s15, 1
      %p270 = scmp.lt.s32.totalorder %s20, 1
      %s271 = scalar_select %p270, %s20, 1
      %s272 = smul.addr %s271, 4
      %s273 = scalar_lea.vmem %s0, %s272
      %p274 = pneg %p41
      %p275 = pneg %p38
      %p276 = pneg %p62
      %p277 = pneg %p59
      %p278 = pneg %p83
      %p279 = pneg %p80
      %p280 = pneg %p104
      %p281 = pneg %p101
      %p282 = pneg %p125
      %p283 = pneg %p122
      %p284 = pneg %p146
      %p285 = pneg %p143
      %p286 = pneg %p167
      %p287 = pneg %p164
      %p288 = pneg %p193
      %p289 = pneg %p190
      %p290 = scmp.lt.s32.totalorder %s20, 1
      %s291 = scalar_select %p290, %s20, 1
      %s292 = smul.addr %s291, 2
      %s293 = smul.addr %s292, 4
      %s294 = scalar_lea.vmem %s7, %s293
      %p295 = pneg %p219
      %p296 = pneg %p216
      %p297 = scmp.lt.s32.totalorder %s20, 1
      %s298 = scalar_select %p297, %s20, 1
      %s299 = smul.addr %s298, 32
      %s300 = smul.addr %s299, 4
      %s301 = scalar_lea.vmem %s8, %s300
      %p302 = scmp.lt.s32.totalorder %s20, 1
      %s303 = scalar_select %p302, %s20, 1
      %s304 = smul.addr %s303, 4
      %s305 = scalar_lea.vmem %s0, %s304
      %p306 = scmp.lt.s32.totalorder %s20, 1
      %s307 = scalar_select %p306, %s20, 1
      %s308 = smul.addr %s307, 2
      %s309 = smul.addr %s308, 4
      %s310 = scalar_lea.vmem %s7, %s309
      %p311 = scmp.lt.s32.totalorder %s20, 1
      %s312 = scalar_select %p311, %s20, 1
      %s313 = smul.addr %s312, 32
      %s314 = smul.addr %s313, 4
      %s315 = scalar_lea.vmem %s8, %s314
      %v317 = vld [vmem:[%s305] sm:$0xf]
      %v318 = vlaneseq
      %v319 = vshrl.u32 %v318, 7
      %v320 = vld [vmem:[%s1] sm:$0xff]
      %v321 = vld [vmem:[%s1 + $0x8] sm:$0xff]
      %v322 = vld [vmem:[%s1 + $0x10] sm:$0xff]
      %v323 = vld [vmem:[%s1 + $0x18] sm:$0xff]
      %v324 = vld [vmem:[%s1 + $0x20] sm:$0xff]
      %v325 = vld [vmem:[%s1 + $0x28] sm:$0xff]
      %v326 = vld [vmem:[%s1 + $0x30] sm:$0xff]
      %v327 = vld [vmem:[%s1 + $0x38] sm:$0xff]
      %v328 = vld [vmem:[%s1 + $0x40] sm:$0xff]
      %v329 = vld [vmem:[%s1 + $0x48] sm:$0xff]
      %v330 = vld [vmem:[%s1 + $0x50] sm:$0xff]
      %v331 = vld [vmem:[%s1 + $0x58] sm:$0xff]
      %v332 = vld [vmem:[%s1 + $0x60] sm:$0xff]
      %v333 = vld [vmem:[%s1 + $0x68] sm:$0xff]
      %v334 = vld [vmem:[%s1 + $0x70] sm:$0xff]
      %v335 = vld [vmem:[%s1 + $0x78] sm:$0xff]
      %v336 = vld [vmem:[%s1 + $0x80] sm:$0xff]
      %v337 = vld [vmem:[%s1 + $0x88] sm:$0xff]
      %v338 = vld [vmem:[%s1 + $0x90] sm:$0xff]
      %v339 = vld [vmem:[%s1 + $0x98] sm:$0xff]
      %v340 = vld [vmem:[%s1 + $0xa0] sm:$0xff]
      %v341 = vld [vmem:[%s1 + $0xa8] sm:$0xff]
      %v342 = vld [vmem:[%s1 + $0xb0] sm:$0xff]
      %v343 = vld [vmem:[%s1 + $0xb8] sm:$0xff]
      %v368 = vunpack.c.l.b16 %v320
      %v369 = vunpack.c.h.b16 %v320
      %v370 = vunpack.c.l.b16 %v321
      %v371 = vunpack.c.h.b16 %v321
      %v372 = vunpack.c.l.b16 %v322
      %v373 = vunpack.c.h.b16 %v322
      %v374 = vunpack.c.l.b16 %v323
      %v375 = vunpack.c.h.b16 %v323
      %v376 = vunpack.c.l.b16 %v324
      %v377 = vunpack.c.h.b16 %v324
      %v378 = vunpack.c.l.b16 %v325
      %v379 = vunpack.c.h.b16 %v325
      %v380 = vunpack.c.l.b16 %v326
      %v381 = vunpack.c.h.b16 %v326
      %v382 = vunpack.c.l.b16 %v327
      %v383 = vunpack.c.h.b16 %v327
      %v384 = vunpack.c.l.b16 %v328
      %v385 = vunpack.c.h.b16 %v328
      %v386 = vunpack.c.l.b16 %v329
      %v387 = vunpack.c.h.b16 %v329
      %v388 = vunpack.c.l.b16 %v330
      %v389 = vunpack.c.h.b16 %v330
      %v390 = vunpack.c.l.b16 %v331
      %v391 = vunpack.c.h.b16 %v331
      %v392 = vunpack.c.l.b16 %v332
      %v393 = vunpack.c.h.b16 %v332
      %v394 = vunpack.c.l.b16 %v333
      %v395 = vunpack.c.h.b16 %v333
      %v396 = vunpack.c.l.b16 %v334
      %v397 = vunpack.c.h.b16 %v334
      %v398 = vunpack.c.l.b16 %v335
      %v399 = vunpack.c.h.b16 %v335
      %v400 = vunpack.c.l.b16 %v336
      %v401 = vunpack.c.h.b16 %v336
      %v402 = vunpack.c.l.b16 %v337
      %v403 = vunpack.c.h.b16 %v337
      %v404 = vunpack.c.l.b16 %v338
      %v405 = vunpack.c.h.b16 %v338
      %v406 = vunpack.c.l.b16 %v339
      %v407 = vunpack.c.h.b16 %v339
      %v408 = vunpack.c.l.b16 %v340
      %v409 = vunpack.c.h.b16 %v340
      %v410 = vunpack.c.l.b16 %v341
      %v411 = vunpack.c.h.b16 %v341
      %v412 = vunpack.c.l.b16 %v342
      %v413 = vunpack.c.h.b16 %v342
      %v414 = vunpack.c.l.b16 %v343
      %v415 = vunpack.c.h.b16 %v343
      %v416 = vpack.c.b16 %v380, %v368
      %v417 = vpack.c.b16 %v381, %v369
      %v418 = vpack.c.b16 %v382, %v370
      %v419 = vpack.c.b16 %v383, %v371
      %v420 = vpack.c.b16 %v384, %v372
      %v421 = vpack.c.b16 %v385, %v373
      %v422 = vpack.c.b16 %v386, %v374
      %v423 = vpack.c.b16 %v387, %v375
      %v424 = vpack.c.b16 %v388, %v376
      %v425 = vpack.c.b16 %v389, %v377
      %v426 = vpack.c.b16 %v390, %v378
      %v427 = vpack.c.b16 %v391, %v379
      %v428 = vpack.c.b16 %v404, %v392
      %v429 = vpack.c.b16 %v405, %v393
      %v430 = vpack.c.b16 %v406, %v394
      %v431 = vpack.c.b16 %v407, %v395
      %v432 = vpack.c.b16 %v408, %v396
      %v433 = vpack.c.b16 %v409, %v397
      %v434 = vpack.c.b16 %v410, %v398
      %v435 = vpack.c.b16 %v411, %v399
      %v436 = vpack.c.b16 %v412, %v400
      %v437 = vpack.c.b16 %v413, %v401
      %v438 = vpack.c.b16 %v414, %v402
      %v439 = vpack.c.b16 %v415, %v403
      %vm464 = vcmask 261120
      %v466 = vsel %vm464, %v317, 0
      %468 = vmatprep.subr.bf16.mxu0 %v417
      %469 = vmatpush1.bf16.msra.mxu0 %v416
      %470 = vmatprep.subr.bf16.mxu0 %v429
      %471 = vmatpush1.bf16.msra.mxu0 %v428
      %472 = vmatprep.subr.bf16.mxu0 0
      %473 = vmatpush1.bf16.msra.mxu0 0
      %474 = vmatprep.subr.bf16.mxu0 0
      %475 = vmatpush1.bf16.msra.mxu0 0
      %476 = vmatprep.subr.bf16.mxu0 0
      %477 = vmatpush1.bf16.msra.mxu0 0
      %478 = vmatprep.subr.bf16.mxu0 0
      %479 = vmatpush1.bf16.msra.mxu0 0
      %480 = vmatprep.subr.bf16.mxu0 0
      %481 = vmatpush1.bf16.msra.mxu0 0
      %482 = vmatprep.subr.bf16.mxu0 0
      %483 = vmatpush1.bf16.msra.mxu0 0
      %484 = vmatprep.subr.bf16.mxu0 0
      %485 = vmatpush1.bf16.msra.mxu0 0
      %486 = vmatprep.subr.bf16.mxu0 0
      %487 = vmatpush1.bf16.msra.mxu0 0
      %488 = vmatprep.subr.bf16.mxu0 0
      %489 = vmatpush1.bf16.msra.mxu0 0
      %490 = vmatprep.subr.bf16.mxu0 0
      %491 = vmatpush1.bf16.msra.mxu0 0
      %492 = vmatprep.subr.bf16.mxu0 0
      %493 = vmatpush1.bf16.msra.mxu0 0
      %494 = vmatprep.subr.bf16.mxu0 0
      %495 = vmatpush1.bf16.msra.mxu0 0
      %496 = vmatprep.subr.bf16.mxu0 0
      %497 = vmatpush1.bf16.msra.mxu0 0
      %498 = vmatprep.subr.bf16.mxu0 0
      %499 = vmatpush1.bf16.msra.mxu0 0
      %500 = vmatprep.mubr.bf16.mxu0 0
      %501 = vmatmul.mubr.bf16.gmra.mrb[0].mxu0 %v466
      %v502 = vpop.f32.mrb[0].mxu0
      %v503 = vadd.f32 0.0, %v502
      %v504 = vpop.f32.mrb[0].mxu0
      %v505 = vadd.f32 0.0, %v504
      %v506 = vpop.f32.mrb[0].mxu0
      %v507 = vpop.f32.mrb[0].mxu0
      %508 = vdwg.mxu0
      %509 = vmatprep.subr.bf16.mxu0 %v419
      %510 = vmatpush1.bf16.msra.mxu0 %v418
      %511 = vmatprep.subr.bf16.mxu0 %v431
      %512 = vmatpush1.bf16.msra.mxu0 %v430
      %513 = vmatprep.subr.bf16.mxu0 0
      %514 = vmatpush1.bf16.msra.mxu0 0
      %515 = vmatprep.subr.bf16.mxu0 0
      %516 = vmatpush1.bf16.msra.mxu0 0
      %517 = vmatprep.subr.bf16.mxu0 0
      %518 = vmatpush1.bf16.msra.mxu0 0
      %519 = vmatprep.subr.bf16.mxu0 0
      %520 = vmatpush1.bf16.msra.mxu0 0
      %521 = vmatprep.subr.bf16.mxu0 0
      %522 = vmatpush1.bf16.msra.mxu0 0
      %523 = vmatprep.subr.bf16.mxu0 0
      %524 = vmatpush1.bf16.msra.mxu0 0
      %525 = vmatprep.subr.bf16.mxu0 0
      %526 = vmatpush1.bf16.msra.mxu0 0
      %527 = vmatprep.subr.bf16.mxu0 0
      %528 = vmatpush1.bf16.msra.mxu0 0
      %529 = vmatprep.subr.bf16.mxu0 0
      %530 = vmatpush1.bf16.msra.mxu0 0
      %531 = vmatprep.subr.bf16.mxu0 0
      %532 = vmatpush1.bf16.msra.mxu0 0
      %533 = vmatprep.subr.bf16.mxu0 0
      %534 = vmatpush1.bf16.msra.mxu0 0
      %535 = vmatprep.subr.bf16.mxu0 0
      %536 = vmatpush1.bf16.msra.mxu0 0
      %537 = vmatprep.subr.bf16.mxu0 0
      %538 = vmatpush1.bf16.msra.mxu0 0
      %539 = vmatprep.subr.bf16.mxu0 0
      %540 = vmatpush1.bf16.msra.mxu0 0
      %541 = vmatprep.mubr.bf16.mxu0 0
      %542 = vmatmul.mubr.bf16.gmra.mrb[0].mxu0 %v466
      %v543 = vpop.f32.mrb[0].mxu0
      %v544 = vadd.f32 0.0, %v543
      %v545 = vpop.f32.mrb[0].mxu0
      %v546 = vadd.f32 0.0, %v545
      %v547 = vpop.f32.mrb[0].mxu0
      %v548 = vpop.f32.mrb[0].mxu0
      %549 = vdwg.mxu0
      %550 = vmatprep.subr.bf16.mxu0 %v421
      %551 = vmatpush1.bf16.msra.mxu0 %v420
      %552 = vmatprep.subr.bf16.mxu0 %v433
      %553 = vmatpush1.bf16.msra.mxu0 %v432
      %554 = vmatprep.subr.bf16.mxu0 0
      %555 = vmatpush1.bf16.msra.mxu0 0
      %556 = vmatprep.subr.bf16.mxu0 0
      %557 = vmatpush1.bf16.msra.mxu0 0
      %558 = vmatprep.subr.bf16.mxu0 0
      %559 = vmatpush1.bf16.msra.mxu0 0
      %560 = vmatprep.subr.bf16.mxu0 0
      %561 = vmatpush1.bf16.msra.mxu0 0
      %562 = vmatprep.subr.bf16.mxu0 0
      %563 = vmatpush1.bf16.msra.mxu0 0
      %564 = vmatprep.subr.bf16.mxu0 0
      %565 = vmatpush1.bf16.msra.mxu0 0
      %566 = vmatprep.subr.bf16.mxu0 0
      %567 = vmatpush1.bf16.msra.mxu0 0
      %568 = vmatprep.subr.bf16.mxu0 0
      %569 = vmatpush1.bf16.msra.mxu0 0
      %570 = vmatprep.subr.bf16.mxu0 0
      %571 = vmatpush1.bf16.msra.mxu0 0
      %572 = vmatprep.subr.bf16.mxu0 0
      %573 = vmatpush1.bf16.msra.mxu0 0
      %574 = vmatprep.subr.bf16.mxu0 0
      %575 = vmatpush1.bf16.msra.mxu0 0
      %576 = vmatprep.subr.bf16.mxu0 0
      %577 = vmatpush1.bf16.msra.mxu0 0
      %578 = vmatprep.subr.bf16.mxu0 0
      %579 = vmatpush1.bf16.msra.mxu0 0
      %580 = vmatprep.subr.bf16.mxu0 0
      %581 = vmatpush1.bf16.msra.mxu0 0
      %582 = vmatprep.mubr.bf16.mxu0 0
      %583 = vmatmul.mubr.bf16.gmra.mrb[0].mxu0 %v466
      %v584 = vpop.f32.mrb[0].mxu0
      %v585 = vadd.f32 0.0, %v584
      %v586 = vpop.f32.mrb[0].mxu0
      %v587 = vadd.f32 0.0, %v586
      %v588 = vpop.f32.mrb[0].mxu0
      %v589 = vpop.f32.mrb[0].mxu0
      %590 = vdwg.mxu0
      %591 = vmatprep.subr.bf16.mxu0 %v423
      %592 = vmatpush1.bf16.msra.mxu0 %v422
      %593 = vmatprep.subr.bf16.mxu0 %v435
      %594 = vmatpush1.bf16.msra.mxu0 %v434
      %595 = vmatprep.subr.bf16.mxu0 0
      %596 = vmatpush1.bf16.msra.mxu0 0
      %597 = vmatprep.subr.bf16.mxu0 0
      %598 = vmatpush1.bf16.msra.mxu0 0
      %599 = vmatprep.subr.bf16.mxu0 0
      %600 = vmatpush1.bf16.msra.mxu0 0
      %601 = vmatprep.subr.bf16.mxu0 0
      %602 = vmatpush1.bf16.msra.mxu0 0
      %603 = vmatprep.subr.bf16.mxu0 0
      %604 = vmatpush1.bf16.msra.mxu0 0
      %605 = vmatprep.subr.bf16.mxu0 0
      %606 = vmatpush1.bf16.msra.mxu0 0
      %607 = vmatprep.subr.bf16.mxu0 0
      %608 = vmatpush1.bf16.msra.mxu0 0
      %609 = vmatprep.subr.bf16.mxu0 0
      %610 = vmatpush1.bf16.msra.mxu0 0
      %611 = vmatprep.subr.bf16.mxu0 0
      %612 = vmatpush1.bf16.msra.mxu0 0
      %613 = vmatprep.subr.bf16.mxu0 0
      %614 = vmatpush1.bf16.msra.mxu0 0
      %615 = vmatprep.subr.bf16.mxu0 0
      %616 = vmatpush1.bf16.msra.mxu0 0
      %617 = vmatprep.subr.bf16.mxu0 0
      %618 = vmatpush1.bf16.msra.mxu0 0
      %619 = vmatprep.subr.bf16.mxu0 0
      %620 = vmatpush1.bf16.msra.mxu0 0
      %621 = vmatprep.subr.bf16.mxu0 0
      %622 = vmatpush1.bf16.msra.mxu0 0
      %623 = vmatprep.mubr.bf16.mxu0 0
      %624 = vmatmul.mubr.bf16.gmra.mrb[0].mxu0 %v466
      %v625 = vpop.f32.mrb[0].mxu0
      %v626 = vadd.f32 0.0, %v625
      %v627 = vpop.f32.mrb[0].mxu0
      %v628 = vadd.f32 0.0, %v627
      %v629 = vpop.f32.mrb[0].mxu0
      %v630 = vpop.f32.mrb[0].mxu0
      %631 = vdwg.mxu0
      %632 = vmatprep.subr.bf16.mxu0 %v425
      %633 = vmatpush1.bf16.msra.mxu0 %v424
      %634 = vmatprep.subr.bf16.mxu0 %v437
      %635 = vmatpush1.bf16.msra.mxu0 %v436
      %636 = vmatprep.subr.bf16.mxu0 0
      %637 = vmatpush1.bf16.msra.mxu0 0
      %638 = vmatprep.subr.bf16.mxu0 0
      %639 = vmatpush1.bf16.msra.mxu0 0
      %640 = vmatprep.subr.bf16.mxu0 0
      %641 = vmatpush1.bf16.msra.mxu0 0
      %642 = vmatprep.subr.bf16.mxu0 0
      %643 = vmatpush1.bf16.msra.mxu0 0
      %644 = vmatprep.subr.bf16.mxu0 0
      %645 = vmatpush1.bf16.msra.mxu0 0
      %646 = vmatprep.subr.bf16.mxu0 0
      %647 = vmatpush1.bf16.msra.mxu0 0
      %648 = vmatprep.subr.bf16.mxu0 0
      %649 = vmatpush1.bf16.msra.mxu0 0
      %650 = vmatprep.subr.bf16.mxu0 0
      %651 = vmatpush1.bf16.msra.mxu0 0
      %652 = vmatprep.subr.bf16.mxu0 0
      %653 = vmatpush1.bf16.msra.mxu0 0
      %654 = vmatprep.subr.bf16.mxu0 0
      %655 = vmatpush1.bf16.msra.mxu0 0
      %656 = vmatprep.subr.bf16.mxu0 0
      %657 = vmatpush1.bf16.msra.mxu0 0
      %658 = vmatprep.subr.bf16.mxu0 0
      %659 = vmatpush1.bf16.msra.mxu0 0
      %660 = vmatprep.subr.bf16.mxu0 0
      %661 = vmatpush1.bf16.msra.mxu0 0
      %662 = vmatprep.subr.bf16.mxu0 0
      %663 = vmatpush1.bf16.msra.mxu0 0
      %664 = vmatprep.mubr.bf16.mxu0 0
      %665 = vmatmul.mubr.bf16.gmra.mrb[0].mxu0 %v466
      %v666 = vpop.f32.mrb[0].mxu0
      %v667 = vadd.f32 0.0, %v666
      %v668 = vpop.f32.mrb[0].mxu0
      %v669 = vadd.f32 0.0, %v668
      %v670 = vpop.f32.mrb[0].mxu0
      %v671 = vpop.f32.mrb[0].mxu0
      %672 = vdwg.mxu0
      %673 = vmatprep.subr.bf16.mxu0 %v427
      %674 = vmatpush1.bf16.msra.mxu0 %v426
      %675 = vmatprep.subr.bf16.mxu0 %v439
      %676 = vmatpush1.bf16.msra.mxu0 %v438
      %677 = vmatprep.subr.bf16.mxu0 0
      %678 = vmatpush1.bf16.msra.mxu0 0
      %679 = vmatprep.subr.bf16.mxu0 0
      %680 = vmatpush1.bf16.msra.mxu0 0
      %681 = vmatprep.subr.bf16.mxu0 0
      %682 = vmatpush1.bf16.msra.mxu0 0
      %683 = vmatprep.subr.bf16.mxu0 0
      %684 = vmatpush1.bf16.msra.mxu0 0
      %685 = vmatprep.subr.bf16.mxu0 0
      %686 = vmatpush1.bf16.msra.mxu0 0
      %687 = vmatprep.subr.bf16.mxu0 0
      %688 = vmatpush1.bf16.msra.mxu0 0
      %689 = vmatprep.subr.bf16.mxu0 0
      %690 = vmatpush1.bf16.msra.mxu0 0
      %691 = vmatprep.subr.bf16.mxu0 0
      %692 = vmatpush1.bf16.msra.mxu0 0
      %693 = vmatprep.subr.bf16.mxu0 0
      %694 = vmatpush1.bf16.msra.mxu0 0
      %695 = vmatprep.subr.bf16.mxu0 0
      %696 = vmatpush1.bf16.msra.mxu0 0
      %697 = vmatprep.subr.bf16.mxu0 0
      %698 = vmatpush1.bf16.msra.mxu0 0
      %699 = vmatprep.subr.bf16.mxu0 0
      %700 = vmatpush1.bf16.msra.mxu0 0
      %701 = vmatprep.subr.bf16.mxu0 0
      %702 = vmatpush1.bf16.msra.mxu0 0
      %703 = vmatprep.subr.bf16.mxu0 0
      %704 = vmatpush1.bf16.msra.mxu0 0
      %705 = vmatprep.mubr.bf16.mxu0 0
      %706 = vmatmul.mubr.bf16.gmra.mrb[0].mxu0 %v466
      %v707 = vpop.f32.mrb[0].mxu0
      %v708 = vadd.f32 0.0, %v707
      %v709 = vpop.f32.mrb[0].mxu0
      %v710 = vadd.f32 0.0, %v709
      %v711 = vpop.f32.mrb[0].mxu0
      %v712 = vpop.f32.mrb[0].mxu0
      %713 = vdwg.mxu0
      %v714 = vrot.slane %v503, 7
      %v715 = vrot.slane %v505, 7
      %v716 = vrot.slane %v544, 7
      %v717 = vrot.slane %v546, 7
      %vm718 = vcmp.eq.s32.totalorder %v319, 0
      %v719 = vsel %vm718, 1, 0
      %vm720 = vcmp.eq.s32.totalorder %v719, 1
      %v721 = vsel %vm720, 0.0, %v714
      %v722 = vsel %vm720, 0.0, %v715
      %v723 = vsel %vm720, 0.0, %v716
      %v724 = vsel %vm720, 0.0, %v717
      %v725 = vadd.f32 %v721, %v585
      %v726 = vadd.f32 %v722, %v587
      %v727 = vadd.f32 %v723, %v626
      %v728 = vadd.f32 %v724, %v628
      %v729 = vrot.slane %v667, 1
      %v730 = vrot.slane %v669, 1
      %v731 = vrot.slane %v708, 1
      %v732 = vrot.slane %v710, 1
      %vm733 = vcmp.eq.s32.totalorder %v319, 7
      %v734 = vsel %vm733, 1, 0
      %vm735 = vcmp.eq.s32.totalorder %v734, 1
      %v736 = vsel %vm735, 0.0, %v729
      %v737 = vsel %vm735, 0.0, %v730
      %v738 = vsel %vm735, 0.0, %v731
      %v739 = vsel %vm735, 0.0, %v732
      %v740 = vadd.f32 %v725, %v736
      %v741 = vadd.f32 %v726, %v737
      %v742 = vadd.f32 %v727, %v738
      %v743 = vadd.f32 %v728, %v739
      %v744 = vld [vmem:[%s2] sm:$0xf]
      %v746 = vlaneseq
      %v747 = vshrl.u32 %v746, 7
      %v748 = vsub.s32 0, %v747
      %v749 = vrot.slane %v744, %v748
      %v750 = vlaneseq
      %v751 = vshrl.u32 %v750, 7
      %v752 = vsub.s32 1, %v751
      %v753 = vrot.slane %v744, %v752
      %v754 = vlaneseq
      %v755 = vshrl.u32 %v754, 7
      %v756 = vsub.s32 2, %v755
      %v757 = vrot.slane %v744, %v756
      %v758 = vlaneseq
      %v759 = vshrl.u32 %v758, 7
      %v760 = vsub.s32 3, %v759
      %v761 = vrot.slane %v744, %v760
      %v766 = vadd.f32 %v740, %v749
      %v767 = vadd.f32 %v741, %v753
      %v768 = vadd.f32 %v742, %v757
      %v769 = vadd.f32 %v743, %v761
      %v770 = vmax.f32 %v766, 0.0
      %v771 = vmax.f32 %v767, 0.0
      %v772 = vmax.f32 %v768, 0.0
      %v773 = vmax.f32 %v769, 0.0
      %v774 = vpack.c.bf16 %v770, %v770
      %v775 = vpack.c.bf16 %v771, %v771
      %v776 = vpack.c.bf16 %v772, %v772
      %v777 = vpack.c.bf16 %v773, %v773
      %v778 = vld [vmem:[%s3] sm:$0xff]
      %v779 = vld [vmem:[%s3 + $0x8] sm:$0xff]
      %v780 = vld [vmem:[%s3 + $0x10] sm:$0xff]
      %v781 = vld [vmem:[%s3 + $0x18] sm:$0xff]
      %v782 = vld [vmem:[%s3 + $0x20] sm:$0xff]
      %v783 = vld [vmem:[%s3 + $0x28] sm:$0xff]
      %v784 = vld [vmem:[%s3 + $0x30] sm:$0xff]
      %v785 = vld [vmem:[%s3 + $0x38] sm:$0xff]
      %v786 = vld [vmem:[%s3 + $0x40] sm:$0xff]
      %v787 = vld [vmem:[%s3 + $0x48] sm:$0xff]
      %v788 = vld [vmem:[%s3 + $0x50] sm:$0xff]
      %v789 = vld [vmem:[%s3 + $0x58] sm:$0xff]
      %v790 = vld [vmem:[%s3 + $0x60] sm:$0xff]
      %v791 = vld [vmem:[%s3 + $0x68] sm:$0xff]
      %v792 = vld [vmem:[%s3 + $0x70] sm:$0xff]
      %v793 = vld [vmem:[%s3 + $0x78] sm:$0xff]
      %v794 = vld [vmem:[%s3 + $0x80] sm:$0xff]
      %v795 = vld [vmem:[%s3 + $0x88] sm:$0xff]
      %v796 = vld [vmem:[%s3 + $0x90] sm:$0xff]
      %v797 = vld [vmem:[%s3 + $0x98] sm:$0xff]
      %v798 = vld [vmem:[%s3 + $0xa0] sm:$0xff]
      %v799 = vld [vmem:[%s3 + $0xa8] sm:$0xff]
      %v800 = vld [vmem:[%s3 + $0xb0] sm:$0xff]
      %v801 = vld [vmem:[%s3 + $0xb8] sm:$0xff]
      %v802 = vld [vmem:[%s3 + $0xc0] sm:$0xff]
      %v803 = vld [vmem:[%s3 + $0xc8] sm:$0xff]
      %v804 = vld [vmem:[%s3 + $0xd0] sm:$0xff]
      %v805 = vld [vmem:[%s3 + $0xd8] sm:$0xff]
      %v806 = vld [vmem:[%s3 + $0xe0] sm:$0xff]
      %v807 = vld [vmem:[%s3 + $0xe8] sm:$0xff]
      %v808 = vld [vmem:[%s3 + $0xf0] sm:$0xff]
      %v809 = vld [vmem:[%s3 + $0xf8] sm:$0xff]
      %v810 = vld [vmem:[%s3 + $0x100] sm:$0xff]
      %v811 = vld [vmem:[%s3 + $0x108] sm:$0xff]
      %v812 = vld [vmem:[%s3 + $0x110] sm:$0xff]
      %v813 = vld [vmem:[%s3 + $0x118] sm:$0xff]
      %v814 = vld [vmem:[%s3 + $0x120] sm:$0xff]
      %v815 = vld [vmem:[%s3 + $0x128] sm:$0xff]
      %v816 = vld [vmem:[%s3 + $0x130] sm:$0xff]
      %v817 = vld [vmem:[%s3 + $0x138] sm:$0xff]
      %v818 = vld [vmem:[%s3 + $0x140] sm:$0xff]
      %v819 = vld [vmem:[%s3 + $0x148] sm:$0xff]
      %v820 = vld [vmem:[%s3 + $0x150] sm:$0xff]
      %v821 = vld [vmem:[%s3 + $0x158] sm:$0xff]
      %v822 = vld [vmem:[%s3 + $0x160] sm:$0xff]
      %v823 = vld [vmem:[%s3 + $0x168] sm:$0xff]
      %v824 = vld [vmem:[%s3 + $0x170] sm:$0xff]
      %v825 = vld [vmem:[%s3 + $0x178] sm:$0xff]
      %v826 = vld [vmem:[%s3 + $0x180] sm:$0xff]
      %v827 = vld [vmem:[%s3 + $0x188] sm:$0xff]
      %v828 = vld [vmem:[%s3 + $0x190] sm:$0xff]
      %v829 = vld [vmem:[%s3 + $0x198] sm:$0xff]
      %v830 = vld [vmem:[%s3 + $0x1a0] sm:$0xff]
      %v831 = vld [vmem:[%s3 + $0x1a8] sm:$0xff]
      %v832 = vld [vmem:[%s3 + $0x1b0] sm:$0xff]
      %v833 = vld [vmem:[%s3 + $0x1b8] sm:$0xff]
      %v834 = vld [vmem:[%s3 + $0x1c0] sm:$0xff]
      %v835 = vld [vmem:[%s3 + $0x1c8] sm:$0xff]
      %v836 = vld [vmem:[%s3 + $0x1d0] sm:$0xff]
      %v837 = vld [vmem:[%s3 + $0x1d8] sm:$0xff]
      %v838 = vld [vmem:[%s3 + $0x1e0] sm:$0xff]
      %v839 = vld [vmem:[%s3 + $0x1e8] sm:$0xff]
      %v840 = vld [vmem:[%s3 + $0x1f0] sm:$0xff]
      %v841 = vld [vmem:[%s3 + $0x1f8] sm:$0xff]
      %v842 = vld [vmem:[%s3 + $0x200] sm:$0xff]
      %v843 = vld [vmem:[%s3 + $0x208] sm:$0xff]
      %v844 = vld [vmem:[%s3 + $0x210] sm:$0xff]
      %v845 = vld [vmem:[%s3 + $0x218] sm:$0xff]
      %v846 = vld [vmem:[%s3 + $0x220] sm:$0xff]
      %v847 = vld [vmem:[%s3 + $0x228] sm:$0xff]
      %v848 = vld [vmem:[%s3 + $0x230] sm:$0xff]
      %v849 = vld [vmem:[%s3 + $0x238] sm:$0xff]
      %v850 = vld [vmem:[%s3 + $0x240] sm:$0xff]
      %v851 = vld [vmem:[%s3 + $0x248] sm:$0xff]
      %v852 = vld [vmem:[%s3 + $0x250] sm:$0xff]
      %v853 = vld [vmem:[%s3 + $0x258] sm:$0xff]
      %v854 = vld [vmem:[%s3 + $0x260] sm:$0xff]
      %v855 = vld [vmem:[%s3 + $0x268] sm:$0xff]
      %v856 = vld [vmem:[%s3 + $0x270] sm:$0xff]
      %v857 = vld [vmem:[%s3 + $0x278] sm:$0xff]
      %v858 = vld [vmem:[%s3 + $0x280] sm:$0xff]
      %v859 = vld [vmem:[%s3 + $0x288] sm:$0xff]
      %v860 = vld [vmem:[%s3 + $0x290] sm:$0xff]
      %v861 = vld [vmem:[%s3 + $0x298] sm:$0xff]
      %v862 = vld [vmem:[%s3 + $0x2a0] sm:$0xff]
      %v863 = vld [vmem:[%s3 + $0x2a8] sm:$0xff]
      %v864 = vld [vmem:[%s3 + $0x2b0] sm:$0xff]
      %v865 = vld [vmem:[%s3 + $0x2b8] sm:$0xff]
      %v866 = vld [vmem:[%s3 + $0x2c0] sm:$0xff]
      %v867 = vld [vmem:[%s3 + $0x2c8] sm:$0xff]
      %v868 = vld [vmem:[%s3 + $0x2d0] sm:$0xff]
      %v869 = vld [vmem:[%s3 + $0x2d8] sm:$0xff]
      %v870 = vld [vmem:[%s3 + $0x2e0] sm:$0xff]
      %v871 = vld [vmem:[%s3 + $0x2e8] sm:$0xff]
      %v872 = vld [vmem:[%s3 + $0x2f0] sm:$0xff]
      %v873 = vld [vmem:[%s3 + $0x2f8] sm:$0xff]
      %v970 = vunpack.c.l.b16 %v778
      %v971 = vunpack.c.h.b16 %v778
      %v972 = vunpack.c.l.b16 %v779
      %v973 = vunpack.c.h.b16 %v779
      %v974 = vunpack.c.l.b16 %v780
      %v975 = vunpack.c.h.b16 %v780
      %v976 = vunpack.c.l.b16 %v781
      %v977 = vunpack.c.h.b16 %v781
      %v978 = vunpack.c.l.b16 %v782
      %v979 = vunpack.c.h.b16 %v782
      %v980 = vunpack.c.l.b16 %v783
      %v981 = vunpack.c.h.b16 %v783
      %v982 = vunpack.c.l.b16 %v784
      %v983 = vunpack.c.h.b16 %v784
      %v984 = vunpack.c.l.b16 %v785
      %v985 = vunpack.c.h.b16 %v785
      %v986 = vunpack.c.l.b16 %v786
      %v987 = vunpack.c.h.b16 %v786
      %v988 = vunpack.c.l.b16 %v787
      %v989 = vunpack.c.h.b16 %v787
      %v990 = vunpack.c.l.b16 %v788
      %v991 = vunpack.c.h.b16 %v788
      %v992 = vunpack.c.l.b16 %v789
      %v993 = vunpack.c.h.b16 %v789
      %v994 = vunpack.c.l.b16 %v790
      %v995 = vunpack.c.h.b16 %v790
      %v996 = vunpack.c.l.b16 %v791
      %v997 = vunpack.c.h.b16 %v791
      %v998 = vunpack.c.l.b16 %v792
      %v999 = vunpack.c.h.b16 %v792
      %v1000 = vunpack.c.l.b16 %v793
      %v1001 = vunpack.c.h.b16 %v793
      %v1002 = vunpack.c.l.b16 %v794
      %v1003 = vunpack.c.h.b16 %v794
      %v1004 = vunpack.c.l.b16 %v795
      %v1005 = vunpack.c.h.b16 %v795
      %v1006 = vunpack.c.l.b16 %v796
      %v1007 = vunpack.c.h.b16 %v796
      %v1008 = vunpack.c.l.b16 %v797
      %v1009 = vunpack.c.h.b16 %v797
      %v1010 = vunpack.c.l.b16 %v798
      %v1011 = vunpack.c.h.b16 %v798
      %v1012 = vunpack.c.l.b16 %v799
      %v1013 = vunpack.c.h.b16 %v799
      %v1014 = vunpack.c.l.b16 %v800
      %v1015 = vunpack.c.h.b16 %v800
      %v1016 = vunpack.c.l.b16 %v801
      %v1017 = vunpack.c.h.b16 %v801
      %v1018 = vunpack.c.l.b16 %v802
      %v1019 = vunpack.c.h.b16 %v802
      %v1020 = vunpack.c.l.b16 %v803
      %v1021 = vunpack.c.h.b16 %v803
      %v1022 = vunpack.c.l.b16 %v804
      %v1023 = vunpack.c.h.b16 %v804
      %v1024 = vunpack.c.l.b16 %v805
      %v1025 = vunpack.c.h.b16 %v805
      %v1026 = vunpack.c.l.b16 %v806
      %v1027 = vunpack.c.h.b16 %v806
      %v1028 = vunpack.c.l.b16 %v807
      %v1029 = vunpack.c.h.b16 %v807
      %v1030 = vunpack.c.l.b16 %v808
      %v1031 = vunpack.c.h.b16 %v808
      %v1032 = vunpack.c.l.b16 %v809
      %v1033 = vunpack.c.h.b16 %v809
      %v1034 = vunpack.c.l.b16 %v810
      %v1035 = vunpack.c.h.b16 %v810
      %v1036 = vunpack.c.l.b16 %v811
      %v1037 = vunpack.c.h.b16 %v811
      %v1038 = vunpack.c.l.b16 %v812
      %v1039 = vunpack.c.h.b16 %v812
      %v1040 = vunpack.c.l.b16 %v813
      %v1041 = vunpack.c.h.b16 %v813
      %v1042 = vunpack.c.l.b16 %v814
      %v1043 = vunpack.c.h.b16 %v814
      %v1044 = vunpack.c.l.b16 %v815
      %v1045 = vunpack.c.h.b16 %v815
      %v1046 = vunpack.c.l.b16 %v816
      %v1047 = vunpack.c.h.b16 %v816
      %v1048 = vunpack.c.l.b16 %v817
      %v1049 = vunpack.c.h.b16 %v817
      %v1050 = vunpack.c.l.b16 %v818
      %v1051 = vunpack.c.h.b16 %v818
      %v1052 = vunpack.c.l.b16 %v819
      %v1053 = vunpack.c.h.b16 %v819
      %v1054 = vunpack.c.l.b16 %v820
      %v1055 = vunpack.c.h.b16 %v820
      %v1056 = vunpack.c.l.b16 %v821
      %v1057 = vunpack.c.h.b16 %v821
      %v1058 = vunpack.c.l.b16 %v822
      %v1059 = vunpack.c.h.b16 %v822
      %v1060 = vunpack.c.l.b16 %v823
      %v1061 = vunpack.c.h.b16 %v823
      %v1062 = vunpack.c.l.b16 %v824
      %v1063 = vunpack.c.h.b16 %v824
      %v1064 = vunpack.c.l.b16 %v825
      %v1065 = vunpack.c.h.b16 %v825
      %v1066 = vunpack.c.l.b16 %v826
      %v1067 = vunpack.c.h.b16 %v826
      %v1068 = vunpack.c.l.b16 %v827
      %v1069 = vunpack.c.h.b16 %v827
      %v1070 = vunpack.c.l.b16 %v828
      %v1071 = vunpack.c.h.b16 %v828
      %v1072 = vunpack.c.l.b16 %v829
      %v1073 = vunpack.c.h.b16 %v829
      %v1074 = vunpack.c.l.b16 %v830
      %v1075 = vunpack.c.h.b16 %v830
      %v1076 = vunpack.c.l.b16 %v831
      %v1077 = vunpack.c.h.b16 %v831
      %v1078 = vunpack.c.l.b16 %v832
      %v1079 = vunpack.c.h.b16 %v832
      %v1080 = vunpack.c.l.b16 %v833
      %v1081 = vunpack.c.h.b16 %v833
      %v1082 = vunpack.c.l.b16 %v834
      %v1083 = vunpack.c.h.b16 %v834
      %v1084 = vunpack.c.l.b16 %v835
      %v1085 = vunpack.c.h.b16 %v835
      %v1086 = vunpack.c.l.b16 %v836
      %v1087 = vunpack.c.h.b16 %v836
      %v1088 = vunpack.c.l.b16 %v837
      %v1089 = vunpack.c.h.b16 %v837
      %v1090 = vunpack.c.l.b16 %v838
      %v1091 = vunpack.c.h.b16 %v838
      %v1092 = vunpack.c.l.b16 %v839
      %v1093 = vunpack.c.h.b16 %v839
      %v1094 = vunpack.c.l.b16 %v840
      %v1095 = vunpack.c.h.b16 %v840
      %v1096 = vunpack.c.l.b16 %v841
      %v1097 = vunpack.c.h.b16 %v841
      %v1098 = vunpack.c.l.b16 %v842
      %v1099 = vunpack.c.h.b16 %v842
      %v1100 = vunpack.c.l.b16 %v843
      %v1101 = vunpack.c.h.b16 %v843
      %v1102 = vunpack.c.l.b16 %v844
      %v1103 = vunpack.c.h.b16 %v844
      %v1104 = vunpack.c.l.b16 %v845
      %v1105 = vunpack.c.h.b16 %v845
      %v1106 = vunpack.c.l.b16 %v846
      %v1107 = vunpack.c.h.b16 %v846
      %v1108 = vunpack.c.l.b16 %v847
      %v1109 = vunpack.c.h.b16 %v847
      %v1110 = vunpack.c.l.b16 %v848
      %v1111 = vunpack.c.h.b16 %v848
      %v1112 = vunpack.c.l.b16 %v849
      %v1113 = vunpack.c.h.b16 %v849
      %v1114 = vunpack.c.l.b16 %v850
      %v1115 = vunpack.c.h.b16 %v850
      %v1116 = vunpack.c.l.b16 %v851
      %v1117 = vunpack.c.h.b16 %v851
      %v1118 = vunpack.c.l.b16 %v852
      %v1119 = vunpack.c.h.b16 %v852
      %v1120 = vunpack.c.l.b16 %v853
      %v1121 = vunpack.c.h.b16 %v853
      %v1122 = vunpack.c.l.b16 %v854
      %v1123 = vunpack.c.h.b16 %v854
      %v1124 = vunpack.c.l.b16 %v855
      %v1125 = vunpack.c.h.b16 %v855
      %v1126 = vunpack.c.l.b16 %v856
      %v1127 = vunpack.c.h.b16 %v856
      %v1128 = vunpack.c.l.b16 %v857
      %v1129 = vunpack.c.h.b16 %v857
      %v1130 = vunpack.c.l.b16 %v858
      %v1131 = vunpack.c.h.b16 %v858
      %v1132 = vunpack.c.l.b16 %v859
      %v1133 = vunpack.c.h.b16 %v859
      %v1134 = vunpack.c.l.b16 %v860
      %v1135 = vunpack.c.h.b16 %v860
      %v1136 = vunpack.c.l.b16 %v861
      %v1137 = vunpack.c.h.b16 %v861
      %v1138 = vunpack.c.l.b16 %v862
      %v1139 = vunpack.c.h.b16 %v862
      %v1140 = vunpack.c.l.b16 %v863
      %v1141 = vunpack.c.h.b16 %v863
      %v1142 = vunpack.c.l.b16 %v864
      %v1143 = vunpack.c.h.b16 %v864
      %v1144 = vunpack.c.l.b16 %v865
      %v1145 = vunpack.c.h.b16 %v865
      %v1146 = vunpack.c.l.b16 %v866
      %v1147 = vunpack.c.h.b16 %v866
      %v1148 = vunpack.c.l.b16 %v867
      %v1149 = vunpack.c.h.b16 %v867
      %v1150 = vunpack.c.l.b16 %v868
      %v1151 = vunpack.c.h.b16 %v868
      %v1152 = vunpack.c.l.b16 %v869
      %v1153 = vunpack.c.h.b16 %v869
      %v1154 = vunpack.c.l.b16 %v870
      %v1155 = vunpack.c.h.b16 %v870
      %v1156 = vunpack.c.l.b16 %v871
      %v1157 = vunpack.c.h.b16 %v871
      %v1158 = vunpack.c.l.b16 %v872
      %v1159 = vunpack.c.h.b16 %v872
      %v1160 = vunpack.c.l.b16 %v873
      %v1161 = vunpack.c.h.b16 %v873
      %v1162 = vpack.c.b16 %v976, %v970
      %v1163 = vpack.c.b16 %v977, %v971
      %v1164 = vpack.c.b16 %v978, %v972
      %v1165 = vpack.c.b16 %v979, %v973
      %v1166 = vpack.c.b16 %v980, %v974
      %v1167 = vpack.c.b16 %v981, %v975
      %v1168 = vpack.c.b16 %v988, %v982
      %v1169 = vpack.c.b16 %v989, %v983
      %v1170 = vpack.c.b16 %v990, %v984
      %v1171 = vpack.c.b16 %v991, %v985
      %v1172 = vpack.c.b16 %v992, %v986
      %v1173 = vpack.c.b16 %v993, %v987
      %v1174 = vpack.c.b16 %v1000, %v994
      %v1175 = vpack.c.b16 %v1001, %v995
      %v1176 = vpack.c.b16 %v1002, %v996
      %v1177 = vpack.c.b16 %v1003, %v997
      %v1178 = vpack.c.b16 %v1004, %v998
      %v1179 = vpack.c.b16 %v1005, %v999
      %v1180 = vpack.c.b16 %v1012, %v1006
      %v1181 = vpack.c.b16 %v1013, %v1007
      %v1182 = vpack.c.b16 %v1014, %v1008
      %v1183 = vpack.c.b16 %v1015, %v1009
      %v1184 = vpack.c.b16 %v1016, %v1010
      %v1185 = vpack.c.b16 %v1017, %v1011
      %v1186 = vpack.c.b16 %v1024, %v1018
      %v1187 = vpack.c.b16 %v1025, %v1019
      %v1188 = vpack.c.b16 %v1026, %v1020
      %v1189 = vpack.c.b16 %v1027, %v1021
      %v1190 = vpack.c.b16 %v1028, %v1022
      %v1191 = vpack.c.b16 %v1029, %v1023
      %v1192 = vpack.c.b16 %v1036, %v1030
      %v1193 = vpack.c.b16 %v1037, %v1031
      %v1194 = vpack.c.b16 %v1038, %v1032
      %v1195 = vpack.c.b16 %v1039, %v1033
      %v1196 = vpack.c.b16 %v1040, %v1034
      %v1197 = vpack.c.b16 %v1041, %v1035
      %v1198 = vpack.c.b16 %v1048, %v1042
      %v1199 = vpack.c.b16 %v1049, %v1043
      %v1200 = vpack.c.b16 %v1050, %v1044
      %v1201 = vpack.c.b16 %v1051, %v1045
      %v1202 = vpack.c.b16 %v1052, %v1046
      %v1203 = vpack.c.b16 %v1053, %v1047
      %v1204 = vpack.c.b16 %v1060, %v1054
      %v1205 = vpack.c.b16 %v1061, %v1055
      %v1206 = vpack.c.b16 %v1062, %v1056
      %v1207 = vpack.c.b16 %v1063, %v1057
      %v1208 = vpack.c.b16 %v1064, %v1058
      %v1209 = vpack.c.b16 %v1065, %v1059
      %v1210 = vpack.c.b16 %v1072, %v1066
      %v1211 = vpack.c.b16 %v1073, %v1067
      %v1212 = vpack.c.b16 %v1074, %v1068
      %v1213 = vpack.c.b16 %v1075, %v1069
      %v1214 = vpack.c.b16 %v1076, %v1070
      %v1215 = vpack.c.b16 %v1077, %v1071
      %v1216 = vpack.c.b16 %v1084, %v1078
      %v1217 = vpack.c.b16 %v1085, %v1079
      %v1218 = vpack.c.b16 %v1086, %v1080
      %v1219 = vpack.c.b16 %v1087, %v1081
      %v1220 = vpack.c.b16 %v1088, %v1082
      %v1221 = vpack.c.b16 %v1089, %v1083
      %v1222 = vpack.c.b16 %v1096, %v1090
      %v1223 = vpack.c.b16 %v1097, %v1091
      %v1224 = vpack.c.b16 %v1098, %v1092
      %v1225 = vpack.c.b16 %v1099, %v1093
      %v1226 = vpack.c.b16 %v1100, %v1094
      %v1227 = vpack.c.b16 %v1101, %v1095
      %v1228 = vpack.c.b16 %v1108, %v1102
      %v1229 = vpack.c.b16 %v1109, %v1103
      %v1230 = vpack.c.b16 %v1110, %v1104
      %v1231 = vpack.c.b16 %v1111, %v1105
      %v1232 = vpack.c.b16 %v1112, %v1106
      %v1233 = vpack.c.b16 %v1113, %v1107
      %v1234 = vpack.c.b16 %v1120, %v1114
      %v1235 = vpack.c.b16 %v1121, %v1115
      %v1236 = vpack.c.b16 %v1122, %v1116
      %v1237 = vpack.c.b16 %v1123, %v1117
      %v1238 = vpack.c.b16 %v1124, %v1118
      %v1239 = vpack.c.b16 %v1125, %v1119
      %v1240 = vpack.c.b16 %v1132, %v1126
      %v1241 = vpack.c.b16 %v1133, %v1127
      %v1242 = vpack.c.b16 %v1134, %v1128
      %v1243 = vpack.c.b16 %v1135, %v1129
      %v1244 = vpack.c.b16 %v1136, %v1130
      %v1245 = vpack.c.b16 %v1137, %v1131
      %v1246 = vpack.c.b16 %v1144, %v1138
      %v1247 = vpack.c.b16 %v1145, %v1139
      %v1248 = vpack.c.b16 %v1146, %v1140
      %v1249 = vpack.c.b16 %v1147, %v1141
      %v1250 = vpack.c.b16 %v1148, %v1142
      %v1251 = vpack.c.b16 %v1149, %v1143
      %v1252 = vpack.c.b16 %v1156, %v1150
      %v1253 = vpack.c.b16 %v1157, %v1151
      %v1254 = vpack.c.b16 %v1158, %v1152
      %v1255 = vpack.c.b16 %v1159, %v1153
      %v1256 = vpack.c.b16 %v1160, %v1154
      %v1257 = vpack.c.b16 %v1161, %v1155
      %1354 = vmatprep.subr.bf16.mxu0 %v1163
      %1355 = vmatpush1.bf16.msra.mxu0 %v1162
      %1356 = vmatprep.subr.bf16.mxu0 %v1169
      %1357 = vmatpush1.bf16.msra.mxu0 %v1168
      %1358 = vmatprep.subr.bf16.mxu0 %v1175
      %1359 = vmatpush1.bf16.msra.mxu0 %v1174
      %1360 = vmatprep.subr.bf16.mxu0 %v1181
      %1361 = vmatpush1.bf16.msra.mxu0 %v1180
      %1362 = vmatprep.subr.bf16.mxu0 %v1187
      %1363 = vmatpush1.bf16.msra.mxu0 %v1186
      %1364 = vmatprep.subr.bf16.mxu0 %v1193
      %1365 = vmatpush1.bf16.msra.mxu0 %v1192
      %1366 = vmatprep.subr.bf16.mxu0 %v1199
      %1367 = vmatpush1.bf16.msra.mxu0 %v1198
      %1368 = vmatprep.subr.bf16.mxu0 %v1205
      %1369 = vmatpush1.bf16.msra.mxu0 %v1204
      %1370 = vmatprep.subr.bf16.mxu0 %v1211
      %1371 = vmatpush1.bf16.msra.mxu0 %v1210
      %1372 = vmatprep.subr.bf16.mxu0 %v1217
      %1373 = vmatpush1.bf16.msra.mxu0 %v1216
      %1374 = vmatprep.subr.bf16.mxu0 %v1223
      %1375 = vmatpush1.bf16.msra.mxu0 %v1222
      %1376 = vmatprep.subr.bf16.mxu0 %v1229
      %1377 = vmatpush1.bf16.msra.mxu0 %v1228
      %1378 = vmatprep.subr.bf16.mxu0 %v1235
      %1379 = vmatpush1.bf16.msra.mxu0 %v1234
      %1380 = vmatprep.subr.bf16.mxu0 %v1241
      %1381 = vmatpush1.bf16.msra.mxu0 %v1240
      %1382 = vmatprep.subr.bf16.mxu0 %v1247
      %1383 = vmatpush1.bf16.msra.mxu0 %v1246
      %1384 = vmatprep.subr.bf16.mxu0 %v1253
      %1385 = vmatpush1.bf16.msra.mxu0 %v1252
      %1386 = vmatprep.mubr.bf16.mxu0 %v775
      %1387 = vmatmul.mubr.bf16.gmra.mrb[0].mxu0 %v774
      %v1388 = vpop.f32.mrb[0].mxu0
      %v1389 = vadd.f32 0.0, %v1388
      %v1390 = vpop.f32.mrb[0].mxu0
      %v1391 = vadd.f32 0.0, %v1390
      %v1392 = vpop.f32.mrb[0].mxu0
      %v1393 = vpop.f32.mrb[0].mxu0
      %1394 = vdwg.mxu0
      %1395 = vmatprep.subr.bf16.mxu0 %v1165
      %1396 = vmatpush1.bf16.msra.mxu0 %v1164
      %1397 = vmatprep.subr.bf16.mxu0 %v1171
      %1398 = vmatpush1.bf16.msra.mxu0 %v1170
      %1399 = vmatprep.subr.bf16.mxu0 %v1177
      %1400 = vmatpush1.bf16.msra.mxu0 %v1176
      %1401 = vmatprep.subr.bf16.mxu0 %v1183
      %1402 = vmatpush1.bf16.msra.mxu0 %v1182
      %1403 = vmatprep.subr.bf16.mxu0 %v1189
      %1404 = vmatpush1.bf16.msra.mxu0 %v1188
      %1405 = vmatprep.subr.bf16.mxu0 %v1195
      %1406 = vmatpush1.bf16.msra.mxu0 %v1194
      %1407 = vmatprep.subr.bf16.mxu0 %v1201
      %1408 = vmatpush1.bf16.msra.mxu0 %v1200
      %1409 = vmatprep.subr.bf16.mxu0 %v1207
      %1410 = vmatpush1.bf16.msra.mxu0 %v1206
      %1411 = vmatprep.subr.bf16.mxu0 %v1213
      %1412 = vmatpush1.bf16.msra.mxu0 %v1212
      %1413 = vmatprep.subr.bf16.mxu0 %v1219
      %1414 = vmatpush1.bf16.msra.mxu0 %v1218
      %1415 = vmatprep.subr.bf16.mxu0 %v1225
      %1416 = vmatpush1.bf16.msra.mxu0 %v1224
      %1417 = vmatprep.subr.bf16.mxu0 %v1231
      %1418 = vmatpush1.bf16.msra.mxu0 %v1230
      %1419 = vmatprep.subr.bf16.mxu0 %v1237
      %1420 = vmatpush1.bf16.msra.mxu0 %v1236
      %1421 = vmatprep.subr.bf16.mxu0 %v1243
      %1422 = vmatpush1.bf16.msra.mxu0 %v1242
      %1423 = vmatprep.subr.bf16.mxu0 %v1249
      %1424 = vmatpush1.bf16.msra.mxu0 %v1248
      %1425 = vmatprep.subr.bf16.mxu0 %v1255
      %1426 = vmatpush1.bf16.msra.mxu0 %v1254
      %1427 = vmatprep.mubr.bf16.mxu0 %v775
      %1428 = vmatmul.mubr.bf16.gmra.mrb[0].mxu0 %v774
      %v1429 = vpop.f32.mrb[0].mxu0
      %v1430 = vadd.f32 0.0, %v1429
      %v1431 = vpop.f32.mrb[0].mxu0
      %v1432 = vadd.f32 0.0, %v1431
      %v1433 = vpop.f32.mrb[0].mxu0
      %v1434 = vpop.f32.mrb[0].mxu0
      %1435 = vdwg.mxu0
      %1436 = vmatprep.subr.bf16.mxu0 %v1167
      %1437 = vmatpush1.bf16.msra.mxu0 %v1166
      %1438 = vmatprep.subr.bf16.mxu0 %v1173
      %1439 = vmatpush1.bf16.msra.mxu0 %v1172
      %1440 = vmatprep.subr.bf16.mxu0 %v1179
      %1441 = vmatpush1.bf16.msra.mxu0 %v1178
      %1442 = vmatprep.subr.bf16.mxu0 %v1185
      %1443 = vmatpush1.bf16.msra.mxu0 %v1184
      %1444 = vmatprep.subr.bf16.mxu0 %v1191
      %1445 = vmatpush1.bf16.msra.mxu0 %v1190
      %1446 = vmatprep.subr.bf16.mxu0 %v1197
      %1447 = vmatpush1.bf16.msra.mxu0 %v1196
      %1448 = vmatprep.subr.bf16.mxu0 %v1203
      %1449 = vmatpush1.bf16.msra.mxu0 %v1202
      %1450 = vmatprep.subr.bf16.mxu0 %v1209
      %1451 = vmatpush1.bf16.msra.mxu0 %v1208
      %1452 = vmatprep.subr.bf16.mxu0 %v1215
      %1453 = vmatpush1.bf16.msra.mxu0 %v1214
      %1454 = vmatprep.subr.bf16.mxu0 %v1221
      %1455 = vmatpush1.bf16.msra.mxu0 %v1220
      %1456 = vmatprep.subr.bf16.mxu0 %v1227
      %1457 = vmatpush1.bf16.msra.mxu0 %v1226
      %1458 = vmatprep.subr.bf16.mxu0 %v1233
      %1459 = vmatpush1.bf16.msra.mxu0 %v1232
      %1460 = vmatprep.subr.bf16.mxu0 %v1239
      %1461 = vmatpush1.bf16.msra.mxu0 %v1238
      %1462 = vmatprep.subr.bf16.mxu0 %v1245
      %1463 = vmatpush1.bf16.msra.mxu0 %v1244
      %1464 = vmatprep.subr.bf16.mxu0 %v1251
      %1465 = vmatpush1.bf16.msra.mxu0 %v1250
      %1466 = vmatprep.subr.bf16.mxu0 %v1257
      %1467 = vmatpush1.bf16.msra.mxu0 %v1256
      %1468 = vmatprep.mubr.bf16.mxu0 %v775
      %1469 = vmatmul.mubr.bf16.gmra.mrb[0].mxu0 %v774
      %v1470 = vpop.f32.mrb[0].mxu0
      %v1471 = vadd.f32 0.0, %v1470
      %v1472 = vpop.f32.mrb[0].mxu0
      %v1473 = vadd.f32 0.0, %v1472
      %v1474 = vpop.f32.mrb[0].mxu0
      %v1475 = vpop.f32.mrb[0].mxu0
      %1476 = vdwg.mxu0
      %v1477 = vrot.slane %v1389, 7
      %v1478 = vrot.slane %v1391, 7
      %v1479 = vsel %vm720, 0.0, %v1477
      %v1480 = vsel %vm720, 0.0, %v1478
      %v1481 = vadd.f32 %v1479, %v1430
      %v1482 = vadd.f32 %v1480, %v1432
      %v1483 = vrot.slane %v1471, 1
      %v1484 = vrot.slane %v1473, 1
      %v1485 = vsel %vm735, 0.0, %v1483
      %v1486 = vsel %vm735, 0.0, %v1484
      %v1487 = vadd.f32 %v1481, %v1485
      %v1488 = vadd.f32 %v1482, %v1486
      %v1489 = vld [vmem:[%s4] sm:$0x3]
      %v1491 = vlaneseq
      %v1492 = vshrl.u32 %v1491, 7
      %v1493 = vsub.s32 0, %v1492
      %v1494 = vrot.slane %v1489, %v1493
      %v1495 = vlaneseq
      %v1496 = vshrl.u32 %v1495, 7
      %v1497 = vsub.s32 1, %v1496
      %v1498 = vrot.slane %v1489, %v1497
      %v1501 = vadd.f32 %v1487, %v1494
      %v1502 = vadd.f32 %v1488, %v1498
      %v1503 = vpack.c.bf16 %v1501, %v1501
      %v1504 = vpack.c.bf16 %v1502, %v1502
      %v1507 = vunpack.c.l.b16 %v1503
      %v1508 = vunpack.c.l.b16 %v1504
      %v1509 = vpack.c.b16 %v1508, %v1507
      %1511 = vst [vmem:[%s310] sm:$0xff] %v1509
      %v1512 = vld [vmem:[%s5] sm:$0xff]
      %v1513 = vld [vmem:[%s5 + $0x8] sm:$0xff]
      %v1514 = vld [vmem:[%s5 + $0x10] sm:$0xff]
      %v1515 = vld [vmem:[%s5 + $0x18] sm:$0xff]
      %v1516 = vld [vmem:[%s5 + $0x20] sm:$0xff]
      %v1517 = vld [vmem:[%s5 + $0x28] sm:$0xff]
      %v1518 = vld [vmem:[%s5 + $0x30] sm:$0xff]
      %v1519 = vld [vmem:[%s5 + $0x38] sm:$0xff]
      %v1520 = vld [vmem:[%s5 + $0x40] sm:$0xff]
      %v1521 = vld [vmem:[%s5 + $0x48] sm:$0xff]
      %v1522 = vld [vmem:[%s5 + $0x50] sm:$0xff]
      %v1523 = vld [vmem:[%s5 + $0x58] sm:$0xff]
      %v1524 = vld [vmem:[%s5 + $0x60] sm:$0xff]
      %v1525 = vld [vmem:[%s5 + $0x68] sm:$0xff]
      %v1526 = vld [vmem:[%s5 + $0x70] sm:$0xff]
      %v1527 = vld [vmem:[%s5 + $0x78] sm:$0xff]
      %v1528 = vld [vmem:[%s5 + $0x80] sm:$0xff]
      %v1529 = vld [vmem:[%s5 + $0x88] sm:$0xff]
      %v1530 = vld [vmem:[%s5 + $0x90] sm:$0xff]
      %v1531 = vld [vmem:[%s5 + $0x98] sm:$0xff]
      %v1532 = vld [vmem:[%s5 + $0xa0] sm:$0xff]
      %v1533 = vld [vmem:[%s5 + $0xa8] sm:$0xff]
      %v1534 = vld [vmem:[%s5 + $0xb0] sm:$0xff]
      %v1535 = vld [vmem:[%s5 + $0xb8] sm:$0xff]
      %v1536 = vld [vmem:[%s5 + $0xc0] sm:$0xff]
      %v1537 = vld [vmem:[%s5 + $0xc8] sm:$0xff]
      %v1538 = vld [vmem:[%s5 + $0xd0] sm:$0xff]
      %v1539 = vld [vmem:[%s5 + $0xd8] sm:$0xff]
      %v1540 = vld [vmem:[%s5 + $0xe0] sm:$0xff]
      %v1541 = vld [vmem:[%s5 + $0xe8] sm:$0xff]
      %v1542 = vld [vmem:[%s5 + $0xf0] sm:$0xff]
      %v1543 = vld [vmem:[%s5 + $0xf8] sm:$0xff]
      %v1544 = vld [vmem:[%s5 + $0x100] sm:$0xff]
      %v1545 = vld [vmem:[%s5 + $0x108] sm:$0xff]
      %v1546 = vld [vmem:[%s5 + $0x110] sm:$0xff]
      %v1547 = vld [vmem:[%s5 + $0x118] sm:$0xff]
      %v1548 = vld [vmem:[%s5 + $0x120] sm:$0xff]
      %v1549 = vld [vmem:[%s5 + $0x128] sm:$0xff]
      %v1550 = vld [vmem:[%s5 + $0x130] sm:$0xff]
      %v1551 = vld [vmem:[%s5 + $0x138] sm:$0xff]
      %v1552 = vld [vmem:[%s5 + $0x140] sm:$0xff]
      %v1553 = vld [vmem:[%s5 + $0x148] sm:$0xff]
      %v1554 = vld [vmem:[%s5 + $0x150] sm:$0xff]
      %v1555 = vld [vmem:[%s5 + $0x158] sm:$0xff]
      %v1556 = vld [vmem:[%s5 + $0x160] sm:$0xff]
      %v1557 = vld [vmem:[%s5 + $0x168] sm:$0xff]
      %v1558 = vld [vmem:[%s5 + $0x170] sm:$0xff]
      %v1559 = vld [vmem:[%s5 + $0x178] sm:$0xff]
      %v1560 = vld [vmem:[%s5 + $0x180] sm:$0xff]
      %v1561 = vld [vmem:[%s5 + $0x188] sm:$0xff]
      %v1562 = vld [vmem:[%s5 + $0x190] sm:$0xff]
      %v1563 = vld [vmem:[%s5 + $0x198] sm:$0xff]
      %v1564 = vld [vmem:[%s5 + $0x1a0] sm:$0xff]
      %v1565 = vld [vmem:[%s5 + $0x1a8] sm:$0xff]
      %v1566 = vld [vmem:[%s5 + $0x1b0] sm:$0xff]
      %v1567 = vld [vmem:[%s5 + $0x1b8] sm:$0xff]
      %v1568 = vld [vmem:[%s5 + $0x1c0] sm:$0xff]
      %v1569 = vld [vmem:[%s5 + $0x1c8] sm:$0xff]
      %v1570 = vld [vmem:[%s5 + $0x1d0] sm:$0xff]
      %v1571 = vld [vmem:[%s5 + $0x1d8] sm:$0xff]
      %v1572 = vld [vmem:[%s5 + $0x1e0] sm:$0xff]
      %v1573 = vld [vmem:[%s5 + $0x1e8] sm:$0xff]
      %v1574 = vld [vmem:[%s5 + $0x1f0] sm:$0xff]
      %v1575 = vld [vmem:[%s5 + $0x1f8] sm:$0xff]
      %v1576 = vld [vmem:[%s5 + $0x200] sm:$0xff]
      %v1577 = vld [vmem:[%s5 + $0x208] sm:$0xff]
      %v1578 = vld [vmem:[%s5 + $0x210] sm:$0xff]
      %v1579 = vld [vmem:[%s5 + $0x218] sm:$0xff]
      %v1580 = vld [vmem:[%s5 + $0x220] sm:$0xff]
      %v1581 = vld [vmem:[%s5 + $0x228] sm:$0xff]
      %v1582 = vld [vmem:[%s5 + $0x230] sm:$0xff]
      %v1583 = vld [vmem:[%s5 + $0x238] sm:$0xff]
      %v1584 = vld [vmem:[%s5 + $0x240] sm:$0xff]
      %v1585 = vld [vmem:[%s5 + $0x248] sm:$0xff]
      %v1586 = vld [vmem:[%s5 + $0x250] sm:$0xff]
      %v1587 = vld [vmem:[%s5 + $0x258] sm:$0xff]
      %v1588 = vld [vmem:[%s5 + $0x260] sm:$0xff]
      %v1589 = vld [vmem:[%s5 + $0x268] sm:$0xff]
      %v1590 = vld [vmem:[%s5 + $0x270] sm:$0xff]
      %v1591 = vld [vmem:[%s5 + $0x278] sm:$0xff]
      %v1592 = vld [vmem:[%s5 + $0x280] sm:$0xff]
      %v1593 = vld [vmem:[%s5 + $0x288] sm:$0xff]
      %v1594 = vld [vmem:[%s5 + $0x290] sm:$0xff]
      %v1595 = vld [vmem:[%s5 + $0x298] sm:$0xff]
      %v1596 = vld [vmem:[%s5 + $0x2a0] sm:$0xff]
      %v1597 = vld [vmem:[%s5 + $0x2a8] sm:$0xff]
      %v1598 = vld [vmem:[%s5 + $0x2b0] sm:$0xff]
      %v1599 = vld [vmem:[%s5 + $0x2b8] sm:$0xff]
      %v1600 = vld [vmem:[%s5 + $0x2c0] sm:$0xff]
      %v1601 = vld [vmem:[%s5 + $0x2c8] sm:$0xff]
      %v1602 = vld [vmem:[%s5 + $0x2d0] sm:$0xff]
      %v1603 = vld [vmem:[%s5 + $0x2d8] sm:$0xff]
      %v1604 = vld [vmem:[%s5 + $0x2e0] sm:$0xff]
      %v1605 = vld [vmem:[%s5 + $0x2e8] sm:$0xff]
      %v1606 = vld [vmem:[%s5 + $0x2f0] sm:$0xff]
      %v1607 = vld [vmem:[%s5 + $0x2f8] sm:$0xff]
      %v1704 = vunpack.c.l.b16 %v1512
      %v1705 = vunpack.c.h.b16 %v1512
      %v1706 = vunpack.c.l.b16 %v1513
      %v1707 = vunpack.c.h.b16 %v1513
      %v1708 = vunpack.c.l.b16 %v1514
      %v1709 = vunpack.c.h.b16 %v1514
      %v1710 = vunpack.c.l.b16 %v1515
      %v1711 = vunpack.c.h.b16 %v1515
      %v1712 = vunpack.c.l.b16 %v1516
      %v1713 = vunpack.c.h.b16 %v1516
      %v1714 = vunpack.c.l.b16 %v1517
      %v1715 = vunpack.c.h.b16 %v1517
      %v1716 = vunpack.c.l.b16 %v1518
      %v1717 = vunpack.c.h.b16 %v1518
      %v1718 = vunpack.c.l.b16 %v1519
      %v1719 = vunpack.c.h.b16 %v1519
      %v1720 = vunpack.c.l.b16 %v1520
      %v1721 = vunpack.c.h.b16 %v1520
      %v1722 = vunpack.c.l.b16 %v1521
      %v1723 = vunpack.c.h.b16 %v1521
      %v1724 = vunpack.c.l.b16 %v1522
      %v1725 = vunpack.c.h.b16 %v1522
      %v1726 = vunpack.c.l.b16 %v1523
      %v1727 = vunpack.c.h.b16 %v1523
      %v1728 = vunpack.c.l.b16 %v1524
      %v1729 = vunpack.c.h.b16 %v1524
      %v1730 = vunpack.c.l.b16 %v1525
      %v1731 = vunpack.c.h.b16 %v1525
      %v1732 = vunpack.c.l.b16 %v1526
      %v1733 = vunpack.c.h.b16 %v1526
      %v1734 = vunpack.c.l.b16 %v1527
      %v1735 = vunpack.c.h.b16 %v1527
      %v1736 = vunpack.c.l.b16 %v1528
      %v1737 = vunpack.c.h.b16 %v1528
      %v1738 = vunpack.c.l.b16 %v1529
      %v1739 = vunpack.c.h.b16 %v1529
      %v1740 = vunpack.c.l.b16 %v1530
      %v1741 = vunpack.c.h.b16 %v1530
      %v1742 = vunpack.c.l.b16 %v1531
      %v1743 = vunpack.c.h.b16 %v1531
      %v1744 = vunpack.c.l.b16 %v1532
      %v1745 = vunpack.c.h.b16 %v1532
      %v1746 = vunpack.c.l.b16 %v1533
      %v1747 = vunpack.c.h.b16 %v1533
      %v1748 = vunpack.c.l.b16 %v1534
      %v1749 = vunpack.c.h.b16 %v1534
      %v1750 = vunpack.c.l.b16 %v1535
      %v1751 = vunpack.c.h.b16 %v1535
      %v1752 = vunpack.c.l.b16 %v1536
      %v1753 = vunpack.c.h.b16 %v1536
      %v1754 = vunpack.c.l.b16 %v1537
      %v1755 = vunpack.c.h.b16 %v1537
      %v1756 = vunpack.c.l.b16 %v1538
      %v1757 = vunpack.c.h.b16 %v1538
      %v1758 = vunpack.c.l.b16 %v1539
      %v1759 = vunpack.c.h.b16 %v1539
      %v1760 = vunpack.c.l.b16 %v1540
      %v1761 = vunpack.c.h.b16 %v1540
      %v1762 = vunpack.c.l.b16 %v1541
      %v1763 = vunpack.c.h.b16 %v1541
      %v1764 = vunpack.c.l.b16 %v1542
      %v1765 = vunpack.c.h.b16 %v1542
      %v1766 = vunpack.c.l.b16 %v1543
      %v1767 = vunpack.c.h.b16 %v1543
      %v1768 = vunpack.c.l.b16 %v1544
      %v1769 = vunpack.c.h.b16 %v1544
      %v1770 = vunpack.c.l.b16 %v1545
      %v1771 = vunpack.c.h.b16 %v1545
      %v1772 = vunpack.c.l.b16 %v1546
      %v1773 = vunpack.c.h.b16 %v1546
      %v1774 = vunpack.c.l.b16 %v1547
      %v1775 = vunpack.c.h.b16 %v1547
      %v1776 = vunpack.c.l.b16 %v1548
      %v1777 = vunpack.c.h.b16 %v1548
      %v1778 = vunpack.c.l.b16 %v1549
      %v1779 = vunpack.c.h.b16 %v1549
      %v1780 = vunpack.c.l.b16 %v1550
      %v1781 = vunpack.c.h.b16 %v1550
      %v1782 = vunpack.c.l.b16 %v1551
      %v1783 = vunpack.c.h.b16 %v1551
      %v1784 = vunpack.c.l.b16 %v1552
      %v1785 = vunpack.c.h.b16 %v1552
      %v1786 = vunpack.c.l.b16 %v1553
      %v1787 = vunpack.c.h.b16 %v1553
      %v1788 = vunpack.c.l.b16 %v1554
      %v1789 = vunpack.c.h.b16 %v1554
      %v1790 = vunpack.c.l.b16 %v1555
      %v1791 = vunpack.c.h.b16 %v1555
      %v1792 = vunpack.c.l.b16 %v1556
      %v1793 = vunpack.c.h.b16 %v1556
      %v1794 = vunpack.c.l.b16 %v1557
      %v1795 = vunpack.c.h.b16 %v1557
      %v1796 = vunpack.c.l.b16 %v1558
      %v1797 = vunpack.c.h.b16 %v1558
      %v1798 = vunpack.c.l.b16 %v1559
      %v1799 = vunpack.c.h.b16 %v1559
      %v1800 = vunpack.c.l.b16 %v1560
      %v1801 = vunpack.c.h.b16 %v1560
      %v1802 = vunpack.c.l.b16 %v1561
      %v1803 = vunpack.c.h.b16 %v1561
      %v1804 = vunpack.c.l.b16 %v1562
      %v1805 = vunpack.c.h.b16 %v1562
      %v1806 = vunpack.c.l.b16 %v1563
      %v1807 = vunpack.c.h.b16 %v1563
      %v1808 = vunpack.c.l.b16 %v1564
      %v1809 = vunpack.c.h.b16 %v1564
      %v1810 = vunpack.c.l.b16 %v1565
      %v1811 = vunpack.c.h.b16 %v1565
      %v1812 = vunpack.c.l.b16 %v1566
      %v1813 = vunpack.c.h.b16 %v1566
      %v1814 = vunpack.c.l.b16 %v1567
      %v1815 = vunpack.c.h.b16 %v1567
      %v1816 = vunpack.c.l.b16 %v1568
      %v1817 = vunpack.c.h.b16 %v1568
      %v1818 = vunpack.c.l.b16 %v1569
      %v1819 = vunpack.c.h.b16 %v1569
      %v1820 = vunpack.c.l.b16 %v1570
      %v1821 = vunpack.c.h.b16 %v1570
      %v1822 = vunpack.c.l.b16 %v1571
      %v1823 = vunpack.c.h.b16 %v1571
      %v1824 = vunpack.c.l.b16 %v1572
      %v1825 = vunpack.c.h.b16 %v1572
      %v1826 = vunpack.c.l.b16 %v1573
      %v1827 = vunpack.c.h.b16 %v1573
      %v1828 = vunpack.c.l.b16 %v1574
      %v1829 = vunpack.c.h.b16 %v1574
      %v1830 = vunpack.c.l.b16 %v1575
      %v1831 = vunpack.c.h.b16 %v1575
      %v1832 = vunpack.c.l.b16 %v1576
      %v1833 = vunpack.c.h.b16 %v1576
      %v1834 = vunpack.c.l.b16 %v1577
      %v1835 = vunpack.c.h.b16 %v1577
      %v1836 = vunpack.c.l.b16 %v1578
      %v1837 = vunpack.c.h.b16 %v1578
      %v1838 = vunpack.c.l.b16 %v1579
      %v1839 = vunpack.c.h.b16 %v1579
      %v1840 = vunpack.c.l.b16 %v1580
      %v1841 = vunpack.c.h.b16 %v1580
      %v1842 = vunpack.c.l.b16 %v1581
      %v1843 = vunpack.c.h.b16 %v1581
      %v1844 = vunpack.c.l.b16 %v1582
      %v1845 = vunpack.c.h.b16 %v1582
      %v1846 = vunpack.c.l.b16 %v1583
      %v1847 = vunpack.c.h.b16 %v1583
      %v1848 = vunpack.c.l.b16 %v1584
      %v1849 = vunpack.c.h.b16 %v1584
      %v1850 = vunpack.c.l.b16 %v1585
      %v1851 = vunpack.c.h.b16 %v1585
      %v1852 = vunpack.c.l.b16 %v1586
      %v1853 = vunpack.c.h.b16 %v1586
      %v1854 = vunpack.c.l.b16 %v1587
      %v1855 = vunpack.c.h.b16 %v1587
      %v1856 = vunpack.c.l.b16 %v1588
      %v1857 = vunpack.c.h.b16 %v1588
      %v1858 = vunpack.c.l.b16 %v1589
      %v1859 = vunpack.c.h.b16 %v1589
      %v1860 = vunpack.c.l.b16 %v1590
      %v1861 = vunpack.c.h.b16 %v1590
      %v1862 = vunpack.c.l.b16 %v1591
      %v1863 = vunpack.c.h.b16 %v1591
      %v1864 = vunpack.c.l.b16 %v1592
      %v1865 = vunpack.c.h.b16 %v1592
      %v1866 = vunpack.c.l.b16 %v1593
      %v1867 = vunpack.c.h.b16 %v1593
      %v1868 = vunpack.c.l.b16 %v1594
      %v1869 = vunpack.c.h.b16 %v1594
      %v1870 = vunpack.c.l.b16 %v1595
      %v1871 = vunpack.c.h.b16 %v1595
      %v1872 = vunpack.c.l.b16 %v1596
      %v1873 = vunpack.c.h.b16 %v1596
      %v1874 = vunpack.c.l.b16 %v1597
      %v1875 = vunpack.c.h.b16 %v1597
      %v1876 = vunpack.c.l.b16 %v1598
      %v1877 = vunpack.c.h.b16 %v1598
      %v1878 = vunpack.c.l.b16 %v1599
      %v1879 = vunpack.c.h.b16 %v1599
      %v1880 = vunpack.c.l.b16 %v1600
      %v1881 = vunpack.c.h.b16 %v1600
      %v1882 = vunpack.c.l.b16 %v1601
      %v1883 = vunpack.c.h.b16 %v1601
      %v1884 = vunpack.c.l.b16 %v1602
      %v1885 = vunpack.c.h.b16 %v1602
      %v1886 = vunpack.c.l.b16 %v1603
      %v1887 = vunpack.c.h.b16 %v1603
      %v1888 = vunpack.c.l.b16 %v1604
      %v1889 = vunpack.c.h.b16 %v1604
      %v1890 = vunpack.c.l.b16 %v1605
      %v1891 = vunpack.c.h.b16 %v1605
      %v1892 = vunpack.c.l.b16 %v1606
      %v1893 = vunpack.c.h.b16 %v1606
      %v1894 = vunpack.c.l.b16 %v1607
      %v1895 = vunpack.c.h.b16 %v1607
      %v1896 = vpack.c.b16 %v1710, %v1704
      %v1897 = vpack.c.b16 %v1711, %v1705
      %v1898 = vpack.c.b16 %v1712, %v1706
      %v1899 = vpack.c.b16 %v1713, %v1707
      %v1900 = vpack.c.b16 %v1714, %v1708
      %v1901 = vpack.c.b16 %v1715, %v1709
      %v1902 = vpack.c.b16 %v1722, %v1716
      %v1903 = vpack.c.b16 %v1723, %v1717
      %v1904 = vpack.c.b16 %v1724, %v1718
      %v1905 = vpack.c.b16 %v1725, %v1719
      %v1906 = vpack.c.b16 %v1726, %v1720
      %v1907 = vpack.c.b16 %v1727, %v1721
      %v1908 = vpack.c.b16 %v1734, %v1728
      %v1909 = vpack.c.b16 %v1735, %v1729
      %v1910 = vpack.c.b16 %v1736, %v1730
      %v1911 = vpack.c.b16 %v1737, %v1731
      %v1912 = vpack.c.b16 %v1738, %v1732
      %v1913 = vpack.c.b16 %v1739, %v1733
      %v1914 = vpack.c.b16 %v1746, %v1740
      %v1915 = vpack.c.b16 %v1747, %v1741
      %v1916 = vpack.c.b16 %v1748, %v1742
      %v1917 = vpack.c.b16 %v1749, %v1743
      %v1918 = vpack.c.b16 %v1750, %v1744
      %v1919 = vpack.c.b16 %v1751, %v1745
      %v1920 = vpack.c.b16 %v1758, %v1752
      %v1921 = vpack.c.b16 %v1759, %v1753
      %v1922 = vpack.c.b16 %v1760, %v1754
      %v1923 = vpack.c.b16 %v1761, %v1755
      %v1924 = vpack.c.b16 %v1762, %v1756
      %v1925 = vpack.c.b16 %v1763, %v1757
      %v1926 = vpack.c.b16 %v1770, %v1764
      %v1927 = vpack.c.b16 %v1771, %v1765
      %v1928 = vpack.c.b16 %v1772, %v1766
      %v1929 = vpack.c.b16 %v1773, %v1767
      %v1930 = vpack.c.b16 %v1774, %v1768
      %v1931 = vpack.c.b16 %v1775, %v1769
      %v1932 = vpack.c.b16 %v1782, %v1776
      %v1933 = vpack.c.b16 %v1783, %v1777
      %v1934 = vpack.c.b16 %v1784, %v1778
      %v1935 = vpack.c.b16 %v1785, %v1779
      %v1936 = vpack.c.b16 %v1786, %v1780
      %v1937 = vpack.c.b16 %v1787, %v1781
      %v1938 = vpack.c.b16 %v1794, %v1788
      %v1939 = vpack.c.b16 %v1795, %v1789
      %v1940 = vpack.c.b16 %v1796, %v1790
      %v1941 = vpack.c.b16 %v1797, %v1791
      %v1942 = vpack.c.b16 %v1798, %v1792
      %v1943 = vpack.c.b16 %v1799, %v1793
      %v1944 = vpack.c.b16 %v1806, %v1800
      %v1945 = vpack.c.b16 %v1807, %v1801
      %v1946 = vpack.c.b16 %v1808, %v1802
      %v1947 = vpack.c.b16 %v1809, %v1803
      %v1948 = vpack.c.b16 %v1810, %v1804
      %v1949 = vpack.c.b16 %v1811, %v1805
      %v1950 = vpack.c.b16 %v1818, %v1812
      %v1951 = vpack.c.b16 %v1819, %v1813
      %v1952 = vpack.c.b16 %v1820, %v1814
      %v1953 = vpack.c.b16 %v1821, %v1815
      %v1954 = vpack.c.b16 %v1822, %v1816
      %v1955 = vpack.c.b16 %v1823, %v1817
      %v1956 = vpack.c.b16 %v1830, %v1824
      %v1957 = vpack.c.b16 %v1831, %v1825
      %v1958 = vpack.c.b16 %v1832, %v1826
      %v1959 = vpack.c.b16 %v1833, %v1827
      %v1960 = vpack.c.b16 %v1834, %v1828
      %v1961 = vpack.c.b16 %v1835, %v1829
      %v1962 = vpack.c.b16 %v1842, %v1836
      %v1963 = vpack.c.b16 %v1843, %v1837
      %v1964 = vpack.c.b16 %v1844, %v1838
      %v1965 = vpack.c.b16 %v1845, %v1839
      %v1966 = vpack.c.b16 %v1846, %v1840
      %v1967 = vpack.c.b16 %v1847, %v1841
      %v1968 = vpack.c.b16 %v1854, %v1848
      %v1969 = vpack.c.b16 %v1855, %v1849
      %v1970 = vpack.c.b16 %v1856, %v1850
      %v1971 = vpack.c.b16 %v1857, %v1851
      %v1972 = vpack.c.b16 %v1858, %v1852
      %v1973 = vpack.c.b16 %v1859, %v1853
      %v1974 = vpack.c.b16 %v1866, %v1860
      %v1975 = vpack.c.b16 %v1867, %v1861
      %v1976 = vpack.c.b16 %v1868, %v1862
      %v1977 = vpack.c.b16 %v1869, %v1863
      %v1978 = vpack.c.b16 %v1870, %v1864
      %v1979 = vpack.c.b16 %v1871, %v1865
      %v1980 = vpack.c.b16 %v1878, %v1872
      %v1981 = vpack.c.b16 %v1879, %v1873
      %v1982 = vpack.c.b16 %v1880, %v1874
      %v1983 = vpack.c.b16 %v1881, %v1875
      %v1984 = vpack.c.b16 %v1882, %v1876
      %v1985 = vpack.c.b16 %v1883, %v1877
      %v1986 = vpack.c.b16 %v1890, %v1884
      %v1987 = vpack.c.b16 %v1891, %v1885
      %v1988 = vpack.c.b16 %v1892, %v1886
      %v1989 = vpack.c.b16 %v1893, %v1887
      %v1990 = vpack.c.b16 %v1894, %v1888
      %v1991 = vpack.c.b16 %v1895, %v1889
      %2088 = vmatprep.subr.bf16.mxu0 %v1897
      %2089 = vmatpush1.bf16.msra.mxu0 %v1896
      %2090 = vmatprep.subr.bf16.mxu0 %v1903
      %2091 = vmatpush1.bf16.msra.mxu0 %v1902
      %2092 = vmatprep.subr.bf16.mxu0 %v1909
      %2093 = vmatpush1.bf16.msra.mxu0 %v1908
      %2094 = vmatprep.subr.bf16.mxu0 %v1915
      %2095 = vmatpush1.bf16.msra.mxu0 %v1914
      %2096 = vmatprep.subr.bf16.mxu0 %v1921
      %2097 = vmatpush1.bf16.msra.mxu0 %v1920
      %2098 = vmatprep.subr.bf16.mxu0 %v1927
      %2099 = vmatpush1.bf16.msra.mxu0 %v1926
      %2100 = vmatprep.subr.bf16.mxu0 %v1933
      %2101 = vmatpush1.bf16.msra.mxu0 %v1932
      %2102 = vmatprep.subr.bf16.mxu0 %v1939
      %2103 = vmatpush1.bf16.msra.mxu0 %v1938
      %2104 = vmatprep.subr.bf16.mxu0 %v1945
      %2105 = vmatpush1.bf16.msra.mxu0 %v1944
      %2106 = vmatprep.subr.bf16.mxu0 %v1951
      %2107 = vmatpush1.bf16.msra.mxu0 %v1950
      %2108 = vmatprep.subr.bf16.mxu0 %v1957
      %2109 = vmatpush1.bf16.msra.mxu0 %v1956
      %2110 = vmatprep.subr.bf16.mxu0 %v1963
      %2111 = vmatpush1.bf16.msra.mxu0 %v1962
      %2112 = vmatprep.subr.bf16.mxu0 %v1969
      %2113 = vmatpush1.bf16.msra.mxu0 %v1968
      %2114 = vmatprep.subr.bf16.mxu0 %v1975
      %2115 = vmatpush1.bf16.msra.mxu0 %v1974
      %2116 = vmatprep.subr.bf16.mxu0 %v1981
      %2117 = vmatpush1.bf16.msra.mxu0 %v1980
      %2118 = vmatprep.subr.bf16.mxu0 %v1987
      %2119 = vmatpush1.bf16.msra.mxu0 %v1986
      %2120 = vmatprep.mubr.bf16.mxu0 %v777
      %2121 = vmatmul.mubr.bf16.gmra.mrb[0].mxu0 %v776
      %v2122 = vpop.f32.mrb[0].mxu0
      %v2123 = vadd.f32 0.0, %v2122
      %v2124 = vpop.f32.mrb[0].mxu0
      %v2125 = vadd.f32 0.0, %v2124
      %v2126 = vpop.f32.mrb[0].mxu0
      %v2127 = vpop.f32.mrb[0].mxu0
      %2128 = vdwg.mxu0
      %2129 = vmatprep.subr.bf16.mxu0 %v1899
      %2130 = vmatpush1.bf16.msra.mxu0 %v1898
      %2131 = vmatprep.subr.bf16.mxu0 %v1905
      %2132 = vmatpush1.bf16.msra.mxu0 %v1904
      %2133 = vmatprep.subr.bf16.mxu0 %v1911
      %2134 = vmatpush1.bf16.msra.mxu0 %v1910
      %2135 = vmatprep.subr.bf16.mxu0 %v1917
      %2136 = vmatpush1.bf16.msra.mxu0 %v1916
      %2137 = vmatprep.subr.bf16.mxu0 %v1923
      %2138 = vmatpush1.bf16.msra.mxu0 %v1922
      %2139 = vmatprep.subr.bf16.mxu0 %v1929
      %2140 = vmatpush1.bf16.msra.mxu0 %v1928
      %2141 = vmatprep.subr.bf16.mxu0 %v1935
      %2142 = vmatpush1.bf16.msra.mxu0 %v1934
      %2143 = vmatprep.subr.bf16.mxu0 %v1941
      %2144 = vmatpush1.bf16.msra.mxu0 %v1940
      %2145 = vmatprep.subr.bf16.mxu0 %v1947
      %2146 = vmatpush1.bf16.msra.mxu0 %v1946
      %2147 = vmatprep.subr.bf16.mxu0 %v1953
      %2148 = vmatpush1.bf16.msra.mxu0 %v1952
      %2149 = vmatprep.subr.bf16.mxu0 %v1959
      %2150 = vmatpush1.bf16.msra.mxu0 %v1958
      %2151 = vmatprep.subr.bf16.mxu0 %v1965
      %2152 = vmatpush1.bf16.msra.mxu0 %v1964
      %2153 = vmatprep.subr.bf16.mxu0 %v1971
      %2154 = vmatpush1.bf16.msra.mxu0 %v1970
      %2155 = vmatprep.subr.bf16.mxu0 %v1977
      %2156 = vmatpush1.bf16.msra.mxu0 %v1976
      %2157 = vmatprep.subr.bf16.mxu0 %v1983
      %2158 = vmatpush1.bf16.msra.mxu0 %v1982
      %2159 = vmatprep.subr.bf16.mxu0 %v1989
      %2160 = vmatpush1.bf16.msra.mxu0 %v1988
      %2161 = vmatprep.mubr.bf16.mxu0 %v777
      %2162 = vmatmul.mubr.bf16.gmra.mrb[0].mxu0 %v776
      %v2163 = vpop.f32.mrb[0].mxu0
      %v2164 = vadd.f32 0.0, %v2163
      %v2165 = vpop.f32.mrb[0].mxu0
      %v2166 = vadd.f32 0.0, %v2165
      %v2167 = vpop.f32.mrb[0].mxu0
      %v2168 = vpop.f32.mrb[0].mxu0
      %2169 = vdwg.mxu0
      %2170 = vmatprep.subr.bf16.mxu0 %v1901
      %2171 = vmatpush1.bf16.msra.mxu0 %v1900
      %2172 = vmatprep.subr.bf16.mxu0 %v1907
      %2173 = vmatpush1.bf16.msra.mxu0 %v1906
      %2174 = vmatprep.subr.bf16.mxu0 %v1913
      %2175 = vmatpush1.bf16.msra.mxu0 %v1912
      %2176 = vmatprep.subr.bf16.mxu0 %v1919
      %2177 = vmatpush1.bf16.msra.mxu0 %v1918
      %2178 = vmatprep.subr.bf16.mxu0 %v1925
      %2179 = vmatpush1.bf16.msra.mxu0 %v1924
      %2180 = vmatprep.subr.bf16.mxu0 %v1931
      %2181 = vmatpush1.bf16.msra.mxu0 %v1930
      %2182 = vmatprep.subr.bf16.mxu0 %v1937
      %2183 = vmatpush1.bf16.msra.mxu0 %v1936
      %2184 = vmatprep.subr.bf16.mxu0 %v1943
      %2185 = vmatpush1.bf16.msra.mxu0 %v1942
      %2186 = vmatprep.subr.bf16.mxu0 %v1949
      %2187 = vmatpush1.bf16.msra.mxu0 %v1948
      %2188 = vmatprep.subr.bf16.mxu0 %v1955
      %2189 = vmatpush1.bf16.msra.mxu0 %v1954
      %2190 = vmatprep.subr.bf16.mxu0 %v1961
      %2191 = vmatpush1.bf16.msra.mxu0 %v1960
      %2192 = vmatprep.subr.bf16.mxu0 %v1967
      %2193 = vmatpush1.bf16.msra.mxu0 %v1966
      %2194 = vmatprep.subr.bf16.mxu0 %v1973
      %2195 = vmatpush1.bf16.msra.mxu0 %v1972
      %2196 = vmatprep.subr.bf16.mxu0 %v1979
      %2197 = vmatpush1.bf16.msra.mxu0 %v1978
      %2198 = vmatprep.subr.bf16.mxu0 %v1985
      %2199 = vmatpush1.bf16.msra.mxu0 %v1984
      %2200 = vmatprep.subr.bf16.mxu0 %v1991
      %2201 = vmatpush1.bf16.msra.mxu0 %v1990
      %2202 = vmatprep.mubr.bf16.mxu0 %v777
      %2203 = vmatmul.mubr.bf16.gmra.mrb[0].mxu0 %v776
      %v2204 = vpop.f32.mrb[0].mxu0
      %v2205 = vadd.f32 0.0, %v2204
      %v2206 = vpop.f32.mrb[0].mxu0
      %v2207 = vadd.f32 0.0, %v2206
      %v2208 = vpop.f32.mrb[0].mxu0
      %v2209 = vpop.f32.mrb[0].mxu0
      %2210 = vdwg.mxu0
      %v2211 = vrot.slane %v2123, 7
      %v2212 = vrot.slane %v2125, 7
      %v2213 = vsel %vm720, 0.0, %v2211
      %v2214 = vsel %vm720, 0.0, %v2212
      %v2215 = vadd.f32 %v2213, %v2164
      %v2216 = vadd.f32 %v2214, %v2166
      %v2217 = vrot.slane %v2205, 1
      %v2218 = vrot.slane %v2207, 1
      %v2219 = vsel %vm735, 0.0, %v2217
      %v2220 = vsel %vm735, 0.0, %v2218
      %v2221 = vadd.f32 %v2215, %v2219
      %v2222 = vadd.f32 %v2216, %v2220
      %v2223 = vld [vmem:[%s6] sm:$0x3]
      %v2225 = vlaneseq
      %v2226 = vshrl.u32 %v2225, 7
      %v2227 = vsub.s32 0, %v2226
      %v2228 = vrot.slane %v2223, %v2227
      %v2229 = vlaneseq
      %v2230 = vshrl.u32 %v2229, 7
      %v2231 = vsub.s32 1, %v2230
      %v2232 = vrot.slane %v2223, %v2231
      %v2235 = vadd.f32 %v2221, %v2228
      %v2236 = vadd.f32 %v2222, %v2232
      %2237 = vxpose.xlu0.b32.start [1/16] %v2235, 128
      %2238 = vxpose.xlu0.b32.cont [2/16] 0.0, 128
      %2239 = vxpose.xlu0.b32.cont [3/16] 0.0, 128
      %2240 = vxpose.xlu0.b32.cont [4/16] 0.0, 128
      %2241 = vxpose.xlu0.b32.cont [5/16] 0.0, 128
      %2242 = vxpose.xlu0.b32.cont [6/16] 0.0, 128
      %2243 = vxpose.xlu0.b32.cont [7/16] 0.0, 128
      %2244 = vxpose.xlu0.b32.cont [8/16] 0.0, 128
      %2245 = vxpose.xlu0.b32.cont [9/16] 0.0, 128
      %2246 = vxpose.xlu0.b32.cont [10/16] 0.0, 128
      %2247 = vxpose.xlu0.b32.cont [11/16] 0.0, 128
      %2248 = vxpose.xlu0.b32.cont [12/16] 0.0, 128
      %2249 = vxpose.xlu0.b32.cont [13/16] 0.0, 128
      %2250 = vxpose.xlu0.b32.cont [14/16] 0.0, 128
      %2251 = vxpose.xlu0.b32.cont [15/16] 0.0, 128
      %2252 = vxpose.xlu0.b32.end [16/16] 0.0, 128
      %v2253 = vpop.trf.xlu0
      %v2254 = vpop.trf.xlu0
      %v2255 = vpop.trf.xlu0
      %v2256 = vpop.trf.xlu0
      %v2257 = vpop.trf.xlu0
      %v2258 = vpop.trf.xlu0
      %v2259 = vpop.trf.xlu0
      %v2260 = vpop.trf.xlu0
      %v2261 = vpop.trf.xlu0
      %v2262 = vpop.trf.xlu0
      %v2263 = vpop.trf.xlu0
      %v2264 = vpop.trf.xlu0
      %v2265 = vpop.trf.xlu0
      %v2266 = vpop.trf.xlu0
      %v2267 = vpop.trf.xlu0
      %v2268 = vpop.trf.xlu0
      %2269 = vxpose.xlu0.b32.start [1/16] %v2236, 128
      %2270 = vxpose.xlu0.b32.cont [2/16] 0.0, 128
      %2271 = vxpose.xlu0.b32.cont [3/16] 0.0, 128
      %2272 = vxpose.xlu0.b32.cont [4/16] 0.0, 128
      %2273 = vxpose.xlu0.b32.cont [5/16] 0.0, 128
      %2274 = vxpose.xlu0.b32.cont [6/16] 0.0, 128
      %2275 = vxpose.xlu0.b32.cont [7/16] 0.0, 128
      %2276 = vxpose.xlu0.b32.cont [8/16] 0.0, 128
      %2277 = vxpose.xlu0.b32.cont [9/16] 0.0, 128
      %2278 = vxpose.xlu0.b32.cont [10/16] 0.0, 128
      %2279 = vxpose.xlu0.b32.cont [11/16] 0.0, 128
      %2280 = vxpose.xlu0.b32.cont [12/16] 0.0, 128
      %2281 = vxpose.xlu0.b32.cont [13/16] 0.0, 128
      %2282 = vxpose.xlu0.b32.cont [14/16] 0.0, 128
      %2283 = vxpose.xlu0.b32.cont [15/16] 0.0, 128
      %2284 = vxpose.xlu0.b32.end [16/16] 0.0, 128
      %v2285 = vpop.trf.xlu0
      %v2286 = vpop.trf.xlu0
      %v2287 = vpop.trf.xlu0
      %v2288 = vpop.trf.xlu0
      %v2289 = vpop.trf.xlu0
      %v2290 = vpop.trf.xlu0
      %v2291 = vpop.trf.xlu0
      %v2292 = vpop.trf.xlu0
      %v2293 = vpop.trf.xlu0
      %v2294 = vpop.trf.xlu0
      %v2295 = vpop.trf.xlu0
      %v2296 = vpop.trf.xlu0
      %v2297 = vpop.trf.xlu0
      %v2298 = vpop.trf.xlu0
      %v2299 = vpop.trf.xlu0
      %v2300 = vpop.trf.xlu0
      %v2301 = vpack.c.bf16 %v2254, %v2253
      %v2302 = vpack.c.bf16 %v2256, %v2255
      %v2303 = vpack.c.bf16 %v2258, %v2257
      %v2304 = vpack.c.bf16 %v2260, %v2259
      %v2305 = vpack.c.bf16 %v2262, %v2261
      %v2306 = vpack.c.bf16 %v2264, %v2263
      %v2307 = vpack.c.bf16 %v2266, %v2265
      %v2308 = vpack.c.bf16 %v2268, %v2267
      %v2309 = vpack.c.bf16 %v2286, %v2285
      %v2310 = vpack.c.bf16 %v2288, %v2287
      %v2311 = vpack.c.bf16 %v2290, %v2289
      %v2312 = vpack.c.bf16 %v2292, %v2291
      %v2313 = vpack.c.bf16 %v2294, %v2293
      %v2314 = vpack.c.bf16 %v2296, %v2295
      %v2315 = vpack.c.bf16 %v2298, %v2297
      %v2316 = vpack.c.bf16 %v2300, %v2299
      %v2333 = vunpack.c.l.b16 %v2301
      %v2334 = vunpack.c.h.b16 %v2301
      %v2335 = vunpack.c.l.b16 %v2302
      %v2336 = vunpack.c.h.b16 %v2302
      %v2337 = vunpack.c.l.b16 %v2303
      %v2338 = vunpack.c.h.b16 %v2303
      %v2339 = vunpack.c.l.b16 %v2304
      %v2340 = vunpack.c.h.b16 %v2304
      %v2341 = vunpack.c.l.b16 %v2305
      %v2342 = vunpack.c.h.b16 %v2305
      %v2343 = vunpack.c.l.b16 %v2306
      %v2344 = vunpack.c.h.b16 %v2306
      %v2345 = vunpack.c.l.b16 %v2307
      %v2346 = vunpack.c.h.b16 %v2307
      %v2347 = vunpack.c.l.b16 %v2308
      %v2348 = vunpack.c.h.b16 %v2308
      %v2349 = vunpack.c.l.b16 %v2309
      %v2350 = vunpack.c.h.b16 %v2309
      %v2351 = vunpack.c.l.b16 %v2310
      %v2352 = vunpack.c.h.b16 %v2310
      %v2353 = vunpack.c.l.b16 %v2311
      %v2354 = vunpack.c.h.b16 %v2311
      %v2355 = vunpack.c.l.b16 %v2312
      %v2356 = vunpack.c.h.b16 %v2312
      %v2357 = vunpack.c.l.b16 %v2313
      %v2358 = vunpack.c.h.b16 %v2313
      %v2359 = vunpack.c.l.b16 %v2314
      %v2360 = vunpack.c.h.b16 %v2314
      %v2361 = vunpack.c.l.b16 %v2315
      %v2362 = vunpack.c.h.b16 %v2315
      %v2363 = vunpack.c.l.b16 %v2316
      %v2364 = vunpack.c.h.b16 %v2316
      %v2365 = vpack.c.b16 %v2333, %v2333
      %v2366 = vpack.c.b16 %v2334, %v2334
      %v2367 = vpack.c.b16 %v2335, %v2335
      %v2368 = vpack.c.b16 %v2336, %v2336
      %v2369 = vpack.c.b16 %v2337, %v2337
      %v2370 = vpack.c.b16 %v2338, %v2338
      %v2371 = vpack.c.b16 %v2339, %v2339
      %v2372 = vpack.c.b16 %v2340, %v2340
      %v2373 = vpack.c.b16 %v2341, %v2341
      %v2374 = vpack.c.b16 %v2342, %v2342
      %v2375 = vpack.c.b16 %v2343, %v2343
      %v2376 = vpack.c.b16 %v2344, %v2344
      %v2377 = vpack.c.b16 %v2345, %v2345
      %v2378 = vpack.c.b16 %v2346, %v2346
      %v2379 = vpack.c.b16 %v2347, %v2347
      %v2380 = vpack.c.b16 %v2348, %v2348
      %v2381 = vpack.c.b16 %v2349, %v2349
      %v2382 = vpack.c.b16 %v2350, %v2350
      %v2383 = vpack.c.b16 %v2351, %v2351
      %v2384 = vpack.c.b16 %v2352, %v2352
      %v2385 = vpack.c.b16 %v2353, %v2353
      %v2386 = vpack.c.b16 %v2354, %v2354
      %v2387 = vpack.c.b16 %v2355, %v2355
      %v2388 = vpack.c.b16 %v2356, %v2356
      %v2389 = vpack.c.b16 %v2357, %v2357
      %v2390 = vpack.c.b16 %v2358, %v2358
      %v2391 = vpack.c.b16 %v2359, %v2359
      %v2392 = vpack.c.b16 %v2360, %v2360
      %v2393 = vpack.c.b16 %v2361, %v2361
      %v2394 = vpack.c.b16 %v2362, %v2362
      %v2395 = vpack.c.b16 %v2363, %v2363
      %v2396 = vpack.c.b16 %v2364, %v2364
      %vm2429 = vcmask 60416
      %2430 = vst.msk [vmem:[%s315] sm:$0xf] %vm2429, %v2365
      %2431 = vst.msk [vmem:[%s315 + $0x4] sm:$0xf] %vm2429, %v2366
      %2432 = vst.msk [vmem:[%s315 + $0x8] sm:$0xf] %vm2429, %v2367
      %2433 = vst.msk [vmem:[%s315 + $0xc] sm:$0xf] %vm2429, %v2368
      %2434 = vst.msk [vmem:[%s315 + $0x10] sm:$0xf] %vm2429, %v2369
      %2435 = vst.msk [vmem:[%s315 + $0x14] sm:$0xf] %vm2429, %v2370
      %2436 = vst.msk [vmem:[%s315 + $0x18] sm:$0xf] %vm2429, %v2371
      %2437 = vst.msk [vmem:[%s315 + $0x1c] sm:$0xf] %vm2429, %v2372
      %2438 = vst.msk [vmem:[%s315 + $0x20] sm:$0xf] %vm2429, %v2373
      %2439 = vst.msk [vmem:[%s315 + $0x24] sm:$0xf] %vm2429, %v2374
      %2440 = vst.msk [vmem:[%s315 + $0x28] sm:$0xf] %vm2429, %v2375
      %2441 = vst.msk [vmem:[%s315 + $0x2c] sm:$0xf] %vm2429, %v2376
      %2442 = vst.msk [vmem:[%s315 + $0x30] sm:$0xf] %vm2429, %v2377
      %2443 = vst.msk [vmem:[%s315 + $0x34] sm:$0xf] %vm2429, %v2378
      %2444 = vst.msk [vmem:[%s315 + $0x38] sm:$0xf] %vm2429, %v2379
      %2445 = vst.msk [vmem:[%s315 + $0x3c] sm:$0xf] %vm2429, %v2380
      %2446 = vst.msk [vmem:[%s315 + $0x40] sm:$0xf] %vm2429, %v2381
      %2447 = vst.msk [vmem:[%s315 + $0x44] sm:$0xf] %vm2429, %v2382
      %2448 = vst.msk [vmem:[%s315 + $0x48] sm:$0xf] %vm2429, %v2383
      %2449 = vst.msk [vmem:[%s315 + $0x4c] sm:$0xf] %vm2429, %v2384
      %2450 = vst.msk [vmem:[%s315 + $0x50] sm:$0xf] %vm2429, %v2385
      %2451 = vst.msk [vmem:[%s315 + $0x54] sm:$0xf] %vm2429, %v2386
      %2452 = vst.msk [vmem:[%s315 + $0x58] sm:$0xf] %vm2429, %v2387
      %2453 = vst.msk [vmem:[%s315 + $0x5c] sm:$0xf] %vm2429, %v2388
      %2454 = vst.msk [vmem:[%s315 + $0x60] sm:$0xf] %vm2429, %v2389
      %2455 = vst.msk [vmem:[%s315 + $0x64] sm:$0xf] %vm2429, %v2390
      %2456 = vst.msk [vmem:[%s315 + $0x68] sm:$0xf] %vm2429, %v2391
      %2457 = vst.msk [vmem:[%s315 + $0x6c] sm:$0xf] %vm2429, %v2392
      %2458 = vst.msk [vmem:[%s315 + $0x70] sm:$0xf] %vm2429, %v2393
      %2459 = vst.msk [vmem:[%s315 + $0x74] sm:$0xf] %vm2429, %v2394
      %2460 = vst.msk [vmem:[%s315 + $0x78] sm:$0xf] %vm2429, %v2395
      %2461 = vst.msk [vmem:[%s315 + $0x7c] sm:$0xf] %vm2429, %v2396
      %p2462 = scmp.lt.s32.totalorder %s20, 1
      %s2463 = scalar_select %p2462, %s20, 1
      %s2464 = smul.addr %s2463, 2
      %s2465 = smul.addr %s2464, 4
      %s2466 = scalar_lea.vmem %s7, %s2465
      %p2467 = scmp.lt.s32.totalorder %s20, 1
      %s2468 = scalar_select %p2467, %s20, 1
      %s2469 = smul.addr %s2468, 32
      %s2470 = smul.addr %s2469, 4
      %s2471 = scalar_lea.vmem %s8, %s2470
      // Predicated region
      $region49: #{biaffine_pairwise_forward.2} parent=47 // pred_check
        %p2472 = pneg %p190
      $region50: #{biaffine_pairwise_forward.2} parent=47 // pred_check_branch
        %2474 = sbr.rel (%p2472) target = $region52
      $region51: #{biaffine_pairwise_forward.2} parent=47 // pred_region
        _
      $region52: #{biaffine_pairwise_forward.2} parent=47 // pred_fallthru
        _
      // Predicated region
      $region53: #{biaffine_pairwise_forward.2} parent=47 // pred_check
        %p2475 = pneg %p216
      $region54: #{biaffine_pairwise_forward.2} parent=47 // pred_check_branch
        %2477 = sbr.rel (%p2475) target = $region56
      $region55: #{biaffine_pairwise_forward.2} parent=47 // pred_region
        _
      $region56: #{biaffine_pairwise_forward.2} parent=47 // pred_fallthru
        _
    $region48: #{biaffine_pairwise_forward.2} parent=5 // pred_fallthru
      _
    %p2478 = scmp.le.s32.totalorder 2, %s15
    // Predicated region
    $region57: #{biaffine_pairwise_forward.2} parent=5 // pred_check
      %p2479 = pneg %p2478
    $region58: #{biaffine_pairwise_forward.2} parent=5 // pred_check_branch
      %2481 = sbr.rel (%p2479) target = $region60
    $region59: #{biaffine_pairwise_forward.2} parent=5 // pred_region
      %s2482 = ssub.s32 %s15, 2
      // Predicated region
      $region61: #{biaffine_pairwise_forward.2} parent=59 // pred_check
        %p2483 = pneg %p196
      $region62: #{biaffine_pairwise_forward.2} parent=59 // pred_check_branch
        %2485 = sbr.rel (%p2483) target = $region64
      $region63: #{biaffine_pairwise_forward.2} parent=59 // pred_region
        %p2486 = scmp.lt.s32.totalorder %s21, 1
        %s2487 = scalar_select %p2486, %s21, 1
        %s2488 = smul.addr %s2487, 2
        %s2489 = smul.addr %s2488, 4
        %s2490 = scalar_lea.vmem %s7, %s2489
      $region64: #{biaffine_pairwise_forward.2} parent=59 // pred_fallthru
        _
      // Predicated region
      $region65: #{biaffine_pairwise_forward.2} parent=59 // pred_check
        %p2491 = pneg %p222
      $region66: #{biaffine_pairwise_forward.2} parent=59 // pred_check_branch
        %2493 = sbr.rel (%p2491) target = $region68
      $region67: #{biaffine_pairwise_forward.2} parent=59 // pred_region
        %p2494 = scmp.lt.s32.totalorder %s21, 1
        %s2495 = scalar_select %p2494, %s21, 1
        %s2496 = smul.addr %s2495, 32
        %s2497 = smul.addr %s2496, 4
        %s2498 = scalar_lea.vmem %s8, %s2497
      $region68: #{biaffine_pairwise_forward.2} parent=59 // pred_fallthru
        _
    $region60: #{biaffine_pairwise_forward.2} parent=5 // pred_fallthru
      _
  $region6: #{biaffine_pairwise_forward.2} parent=0 // loop_footer
    %s19 = sadd.s32 1, %s15
  $region7: #{biaffine_pairwise_forward.2} parent=0 // loop_footer_branch
    %14 = sbr.rel target = $region3
  $region8: #{biaffine_pairwise_forward.2} parent=0 // loop_exit
    _

// kernel: biaffine_pairwise_forward.3
$region0: #{biaffine_pairwise_forward.3}
  #allocation0 [shape = 'u32[]', space=smem, size = 0x4, offset = 0x4, fixed_abs, tag = 'smem constant byte address 0x4 - core index']
  #allocation1 [shape = 'u32[144,128]{1,0:T(1,128)}', space=vmem, size = 0x12000, scoped, tag = 'internal scratch']
  %s0 = inlined_call_operand.vmem [shape: bf16[2,8,256], index: 0, kind: input, shape index: {}]
  %s1 = inlined_call_operand.vmem [shape: bf16[2,256,8], index: 1, kind: input, shape index: {}]
  %s2 = inlined_call_operand.vmem [shape: f32[2,8,8], index: 2, kind: input, shape index: {}]
  %s3 = inlined_call_operand.vmem [shape: bf16[256,1024], index: 3, kind: input, shape index: {}]
  %s4 = inlined_call_operand.vmem [shape: f32[2,1,1,4], index: 4, kind: output, shape index: {0}]
  %s5 = inlined_call_operand.vmem [shape: bf16[2,4,8,8], index: 5, kind: output, shape index: {1}]
  %6 = xla_tuple %s4, %s5
  %s7 = sld [smem:[#allocation0]]
  $region57: #{biaffine_pairwise_forward.3} parent=0
    _
  %s9 = ssub.s32 1, %s7
  %s10 = scalar_select 0, %s9, %s7
  loop: start=0, step=1, limit=4
  $region2: #{biaffine_pairwise_forward.3} parent=0 // loop_pre_header
    _
  $region3: #{biaffine_pairwise_forward.3} parent=0 // loop_header
    %s12 = sphi 0, %s16
    %p13 = scmp.ge.s32.totalorder %s12, 4
    %s19 = sphi 0, %s31
    %s20 = sphi 0, %s27
    %s21 = sphi 0, %s19
    %s22 = sphi 0, %s20
    %s23 = sphi 0, %s21
    %s24 = sphi 0, %s22
    %s34 = sphi 0, %s36
    %s37 = sphi 0, %s34
    %s38 = sphi 0, %s37
    %s54 = sphi 0, %s38
    %s60 = sphi 0, %s62
    %s63 = sphi 0, %s60
    %s64 = sphi 0, %s63
    %s80 = sphi 0, %s64
    %s86 = sphi 0, %s88
    %s89 = sphi 0, %s86
    %s90 = sphi 0, %s89
    %s106 = sphi 0, %s90
    %s110 = sphi 0, %s110
    %s112 = sphi 0, %s110
    %s113 = sphi 0, %s112
    %s127 = sphi 0, %s113
    %s135 = sphi 0, %s137
    %s138 = sphi 0, %s135
    %s139 = sphi 0, %s138
    %s155 = sphi 0, %s139
    %s163 = sphi 0, %s165
    %s166 = sphi 0, %s163
    %s167 = sphi 0, %s166
    %s183 = sphi 0, %s167
  $region4: #{biaffine_pairwise_forward.3} parent=0 // loop_header_branch
    %15 = sbr.rel (%p13) target = $region8
  $region5: #{biaffine_pairwise_forward.3} parent=0 // loop_body
    %s17 = ssub.s32 %s12, 1
    %s18 = ssub.s32 %s12, 2
    %s25 = sadd.s32 1, %s20
    %p26 = scmp.ge.s32.totalorder %s25, 1
    %s27 = scalar_select %p26, 0, %s25
    %s28 = sadd.s32 1, %s19
    %s29 = scalar_select %p26, %s28, %s19
    %p30 = scmp.ge.s32.totalorder %s29, 2
    %s31 = scalar_select %p30, 0, %s29
    %s32 = ssub.s32 %s19, %s31
    %p33 = scmp.eq.s32.totalorder %s32, 0
    %s35 = sadd.s32 %s34, 1
    %s36 = scalar_select %p33, %s34, %s35
    %p39 = pneg %p33
    %p40 = scmp.eq.s32.totalorder %s12, 1
    %p41 = por %p39, %p40
    %p42 = scmp.ne.s32.totalorder %s34, %s37
    %p43 = scmp.eq.s32.totalorder %s12, 0
    %p44 = por %p42, %p43
    %p45 = scmp.ne.s32.totalorder %s34, %s37
    %p46 = scmp.eq.s32.totalorder %s17, 1
    %p47 = por %p45, %p46
    %p48 = scmp.ne.s32.totalorder %s37, %s38
    %p49 = scmp.eq.s32.totalorder %s17, 0
    %p50 = por %p48, %p49
    %p51 = scmp.ne.s32.totalorder %s37, %s38
    %p52 = scmp.eq.s32.totalorder %s18, 1
    %p53 = por %p51, %p52
    %p55 = scmp.ne.s32.totalorder %s38, %s54
    %p56 = scmp.eq.s32.totalorder %s18, 0
    %p57 = por %p55, %p56
    %s58 = ssub.s32 %s19, %s31
    %p59 = scmp.eq.s32.totalorder %s58, 0
    %s61 = sadd.s32 %s60, 1
    %s62 = scalar_select %p59, %s60, %s61
    %p65 = pneg %p59
    %p66 = scmp.eq.s32.totalorder %s12, 1
    %p67 = por %p65, %p66
    %p68 = scmp.ne.s32.totalorder %s60, %s63
    %p69 = scmp.eq.s32.totalorder %s12, 0
    %p70 = por %p68, %p69
    %p71 = scmp.ne.s32.totalorder %s60, %s63
    %p72 = scmp.eq.s32.totalorder %s17, 1
    %p73 = por %p71, %p72
    %p74 = scmp.ne.s32.totalorder %s63, %s64
    %p75 = scmp.eq.s32.totalorder %s17, 0
    %p76 = por %p74, %p75
    %p77 = scmp.ne.s32.totalorder %s63, %s64
    %p78 = scmp.eq.s32.totalorder %s18, 1
    %p79 = por %p77, %p78
    %p81 = scmp.ne.s32.totalorder %s64, %s80
    %p82 = scmp.eq.s32.totalorder %s18, 0
    %p83 = por %p81, %p82
    %s84 = ssub.s32 %s19, %s31
    %p85 = scmp.eq.s32.totalorder %s84, 0
    %s87 = sadd.s32 %s86, 1
    %s88 = scalar_select %p85, %s86, %s87
    %p91 = pneg %p85
    %p92 = scmp.eq.s32.totalorder %s12, 1
    %p93 = por %p91, %p92
    %p94 = scmp.ne.s32.totalorder %s86, %s89
    %p95 = scmp.eq.s32.totalorder %s12, 0
    %p96 = por %p94, %p95
    %p97 = scmp.ne.s32.totalorder %s86, %s89
    %p98 = scmp.eq.s32.totalorder %s17, 1
    %p99 = por %p97, %p98
    %p100 = scmp.ne.s32.totalorder %s89, %s90
    %p101 = scmp.eq.s32.totalorder %s17, 0
    %p102 = por %p100, %p101
    %p103 = scmp.ne.s32.totalorder %s89, %s90
    %p104 = scmp.eq.s32.totalorder %s18, 1
    %p105 = por %p103, %p104
    %p107 = scmp.ne.s32.totalorder %s90, %s106
    %p108 = scmp.eq.s32.totalorder %s18, 0
    %p109 = por %p107, %p108
    %s111 = sadd.s32 %s110, 1
    %p114 = scmp.eq.s32.totalorder %s12, 1
    %p115 = scmp.ne.s32.totalorder %s110, %s112
    %p116 = scmp.eq.s32.totalorder %s12, 0
    %p117 = por %p115, %p116
    %p118 = scmp.ne.s32.totalorder %s110, %s112
    %p119 = scmp.eq.s32.totalorder %s17, 1
    %p120 = por %p118, %p119
    %p121 = scmp.ne.s32.totalorder %s112, %s113
    %p122 = scmp.eq.s32.totalorder %s17, 0
    %p123 = por %p121, %p122
    %p124 = scmp.ne.s32.totalorder %s112, %s113
    %p125 = scmp.eq.s32.totalorder %s18, 1
    %p126 = por %p124, %p125
    %p128 = scmp.ne.s32.totalorder %s113, %s127
    %p129 = scmp.eq.s32.totalorder %s18, 0
    %p130 = por %p128, %p129
    %s131 = ssub.s32 %s19, %s31
    %s132 = ssub.s32 %s20, %s27
    %s133 = sor.u32 %s131, %s132
    %p134 = scmp.eq.s32.totalorder %s133, 0
    %s136 = sadd.s32 %s135, 1
    %s137 = scalar_select %p134, %s135, %s136
    %p140 = pneg %p134
    %p141 = scmp.eq.s32.totalorder %s12, 1
    %p142 = por %p140, %p141
    %p143 = scmp.ne.s32.totalorder %s135, %s138
    %p144 = scmp.eq.s32.totalorder %s12, 0
    %p145 = por %p143, %p144
    %p146 = scmp.ne.s32.totalorder %s135, %s138
    %p147 = scmp.eq.s32.totalorder %s17, 1
    %p148 = por %p146, %p147
    %p149 = scmp.ne.s32.totalorder %s138, %s139
    %p150 = scmp.eq.s32.totalorder %s17, 0
    %p151 = por %p149, %p150
    %p152 = scmp.ne.s32.totalorder %s138, %s139
    %p153 = scmp.eq.s32.totalorder %s18, 1
    %p154 = por %p152, %p153
    %p156 = scmp.ne.s32.totalorder %s139, %s155
    %p157 = scmp.eq.s32.totalorder %s18, 0
    %p158 = por %p156, %p157
    %s159 = ssub.s32 %s19, %s31
    %s160 = ssub.s32 %s20, %s27
    %s161 = sor.u32 %s159, %s160
    %p162 = scmp.eq.s32.totalorder %s161, 0
    %s164 = sadd.s32 %s163, 1
    %s165 = scalar_select %p162, %s163, %s164
    %p168 = pneg %p162
    %p169 = scmp.eq.s32.totalorder %s12, 1
    %p170 = por %p168, %p169
    %p171 = scmp.ne.s32.totalorder %s163, %s166
    %p172 = scmp.eq.s32.totalorder %s12, 0
    %p173 = por %p171, %p172
    %p174 = scmp.ne.s32.totalorder %s163, %s166
    %p175 = scmp.eq.s32.totalorder %s17, 1
    %p176 = por %p174, %p175
    %p177 = scmp.ne.s32.totalorder %s166, %s167
    %p178 = scmp.eq.s32.totalorder %s17, 0
    %p179 = por %p177, %p178
    %p180 = scmp.ne.s32.totalorder %s166, %s167
    %p181 = scmp.eq.s32.totalorder %s18, 1
    %p182 = por %p180, %p181
    %p184 = scmp.ne.s32.totalorder %s167, %s183
    %p185 = scmp.eq.s32.totalorder %s18, 0
    %p186 = por %p184, %p185
    %p187 = scmp.le.s32.totalorder 1, %s12
    %p188 = scmp.lt.s32.totalorder %s12, 3
    %p189 = pnand %p187, %p188
    %p190 = pneg %p189
    // Predicated region
    $region9: #{biaffine_pairwise_forward.3} parent=5 // pred_check
      _
    $region10: #{biaffine_pairwise_forward.3} parent=5 // pred_check_branch
      %192 = sbr.rel (%p189) target = $region12
    $region11: #{biaffine_pairwise_forward.3} parent=5 // pred_region
      %s193 = ssub.s32 %s12, 1
      // Predicated region
      $region13: #{biaffine_pairwise_forward.3} parent=11 // pred_check
        %p194 = pneg %p123
      $region14: #{biaffine_pairwise_forward.3} parent=11 // pred_check_branch
        %196 = sbr.rel (%p194) target = $region16
      $region15: #{biaffine_pairwise_forward.3} parent=11 // pred_region
        _
      $region16: #{biaffine_pairwise_forward.3} parent=11 // pred_fallthru
        _
    $region12: #{biaffine_pairwise_forward.3} parent=5 // pred_fallthru
      _
    %p197 = scmp.lt.s32.totalorder %s12, 2
    // Predicated region
    $region17: #{biaffine_pairwise_forward.3} parent=5 // pred_check
      %p198 = pneg %p197
    $region18: #{biaffine_pairwise_forward.3} parent=5 // pred_check_branch
      %200 = sbr.rel (%p198) target = $region20
    $region19: #{biaffine_pairwise_forward.3} parent=5 // pred_region
      // Predicated region
      $region21: #{biaffine_pairwise_forward.3} parent=19 // pred_check
        %p201 = pneg %p44
      $region22: #{biaffine_pairwise_forward.3} parent=19 // pred_check_branch
        %203 = sbr.rel (%p201) target = $region24
      $region23: #{biaffine_pairwise_forward.3} parent=19 // pred_region
        %p204 = scmp.lt.s32.totalorder %s19, 1
        %s205 = scalar_select %p204, %s19, 1
        %s206 = smul.addr %s205, 2
        %s207 = smul.addr %s206, 4
        %s208 = scalar_lea.vmem %s0, %s207
      $region24: #{biaffine_pairwise_forward.3} parent=19 // pred_fallthru
        _
      // Predicated region
      $region25: #{biaffine_pairwise_forward.3} parent=19 // pred_check
        %p209 = pneg %p70
      $region26: #{biaffine_pairwise_forward.3} parent=19 // pred_check_branch
        %211 = sbr.rel (%p209) target = $region28
      $region27: #{biaffine_pairwise_forward.3} parent=19 // pred_region
        %p212 = scmp.lt.s32.totalorder %s19, 1
        %s213 = scalar_select %p212, %s19, 1
        %s214 = smul.addr %s213, 32
        %s215 = smul.addr %s214, 4
        %s216 = scalar_lea.vmem %s1, %s215
      $region28: #{biaffine_pairwise_forward.3} parent=19 // pred_fallthru
        _
      // Predicated region
      $region29: #{biaffine_pairwise_forward.3} parent=19 // pred_check
        %p217 = pneg %p96
      $region30: #{biaffine_pairwise_forward.3} parent=19 // pred_check_branch
        %219 = sbr.rel (%p217) target = $region32
      $region31: #{biaffine_pairwise_forward.3} parent=19 // pred_region
        %p220 = scmp.lt.s32.totalorder %s19, 1
        %s221 = scalar_select %p220, %s19, 1
        %s222 = smul.addr %s221, 8
        %s223 = scalar_lea.vmem %s2, %s222
      $region32: #{biaffine_pairwise_forward.3} parent=19 // pred_fallthru
        _
    $region20: #{biaffine_pairwise_forward.3} parent=5 // pred_fallthru
      _
    %p224 = scmp.le.s32.totalorder 1, %s12
    %p225 = scmp.lt.s32.totalorder %s12, 3
    %p226 = pnand %p224, %p225
    %p227 = pneg %p226
    // Predicated region
    $region33: #{biaffine_pairwise_forward.3} parent=5 // pred_check
      _
    $region34: #{biaffine_pairwise_forward.3} parent=5 // pred_check_branch
      %229 = sbr.rel (%p226) target = $region36
    $region35: #{biaffine_pairwise_forward.3} parent=5 // pred_region
      %s230 = ssub.s32 %s12, 1
      %p231 = scmp.lt.s32.totalorder %s21, 1
      %s232 = scalar_select %p231, %s21, 1
      %s233 = smul.addr %s232, 2
      %s234 = smul.addr %s233, 4
      %s235 = scalar_lea.vmem %s0, %s234
      %p236 = pneg %p50
      %p237 = pneg %p47
      %p238 = scmp.lt.s32.totalorder %s21, 1
      %s239 = scalar_select %p238, %s21, 1
      %s240 = smul.addr %s239, 32
      %s241 = smul.addr %s240, 4
      %s242 = scalar_lea.vmem %s1, %s241
      %p243 = pneg %p76
      %p244 = pneg %p73
      %p245 = scmp.lt.s32.totalorder %s21, 1
      %s246 = scalar_select %p245, %s21, 1
      %s247 = smul.addr %s246, 8
      %s248 = scalar_lea.vmem %s2, %s247
      %p249 = pneg %p102
      %p250 = pneg %p99
      %p251 = pneg %p123
      %p252 = pneg %p120
      %p253 = pneg %p151
      %p254 = pneg %p148
      %p255 = scmp.lt.s32.totalorder %s21, 1
      %s256 = scalar_select %p255, %s21, 1
      %p257 = scmp.lt.s32.totalorder %s22, 0
      %s258 = scalar_select %p257, %s22, 0
      %s259 = sadd.s32 %s258, %s256
      %s260 = scalar_lea.vmem %s4, %s259
      %p261 = pneg %p179
      %p262 = pneg %p176
      %s263 = smul.u32 4, %s22
      %p264 = scmp.lt.s32.totalorder %s21, 1
      %s265 = scalar_select %p264, %s21, 1
      %p266 = scmp.lt.s32.totalorder %s263, 3
      %s267 = scalar_select %p266, %s263, 3
      %s268 = smul.addr %s265, 4
      %s269 = sadd.s32 %s267, %s268
      %s270 = smul.addr %s269, 4
      %s271 = scalar_lea.vmem %s5, %s270
      %p272 = scmp.lt.s32.totalorder %s21, 1
      %s273 = scalar_select %p272, %s21, 1
      %s274 = smul.addr %s273, 2
      %s275 = smul.addr %s274, 4
      %s276 = scalar_lea.vmem %s0, %s275
      %p277 = scmp.lt.s32.totalorder %s21, 1
      %s278 = scalar_select %p277, %s21, 1
      %s279 = smul.addr %s278, 32
      %s280 = smul.addr %s279, 4
      %s281 = scalar_lea.vmem %s1, %s280
      %p282 = scmp.lt.s32.totalorder %s21, 1
      %s283 = scalar_select %p282, %s21, 1
      %s284 = smul.addr %s283, 8
      %s285 = scalar_lea.vmem %s2, %s284
      %p286 = scmp.lt.s32.totalorder %s21, 1
      %s287 = scalar_select %p286, %s21, 1
      %p288 = scmp.lt.s32.totalorder %s22, 0
      %s289 = scalar_select %p288, %s22, 0
      %s290 = sadd.s32 %s289, %s287
      %s291 = scalar_lea.vmem %s4, %s290
      %s292 = smul.u32 4, %s22
      %p293 = scmp.lt.s32.totalorder %s21, 1
      %s294 = scalar_select %p293, %s21, 1
      %p295 = scmp.lt.s32.totalorder %s292, 3
      %s296 = scalar_select %p295, %s292, 3
      %s297 = smul.addr %s294, 4
      %s298 = sadd.s32 %s296, %s297
      %s299 = smul.addr %s298, 4
      %s300 = scalar_lea.vmem %s5, %s299
      %s301 = smul.u32 4, %s22
      %v303 = vld [vmem:[%s276] sm:$0xff]
      %v304 = vld [vmem:[%s281] sm:$0xf]
      %v305 = vld [vmem:[%s281 + $0x4] sm:$0xf]
      %v306 = vld [vmem:[%s281 + $0x8] sm:$0xf]
      %v307 = vld [vmem:[%s281 + $0xc] sm:$0xf]
      %v308 = vld [vmem:[%s281 + $0x10] sm:$0xf]
      %v309 = vld [vmem:[%s281 + $0x14] sm:$0xf]
      %v310 = vld [vmem:[%s281 + $0x18] sm:$0xf]
      %v311 = vld [vmem:[%s281 + $0x1c] sm:$0xf]
      %v312 = vld [vmem:[%s281 + $0x20] sm:$0xf]
      %v313 = vld [vmem:[%s281 + $0x24] sm:$0xf]
      %v314 = vld [vmem:[%s281 + $0x28] sm:$0xf]
      %v315 = vld [vmem:[%s281 + $0x2c] sm:$0xf]
      %v316 = vld [vmem:[%s281 + $0x30] sm:$0xf]
      %v317 = vld [vmem:[%s281 + $0x34] sm:$0xf]
      %v318 = vld [vmem:[%s281 + $0x38] sm:$0xf]
      %v319 = vld [vmem:[%s281 + $0x3c] sm:$0xf]
      %v320 = vld [vmem:[%s281 + $0x40] sm:$0xf]
      %v321 = vld [vmem:[%s281 + $0x44] sm:$0xf]
      %v322 = vld [vmem:[%s281 + $0x48] sm:$0xf]
      %v323 = vld [vmem:[%s281 + $0x4c] sm:$0xf]
      %v324 = vld [vmem:[%s281 + $0x50] sm:$0xf]
      %v325 = vld [vmem:[%s281 + $0x54] sm:$0xf]
      %v326 = vld [vmem:[%s281 + $0x58] sm:$0xf]
      %v327 = vld [vmem:[%s281 + $0x5c] sm:$0xf]
      %v328 = vld [vmem:[%s281 + $0x60] sm:$0xf]
      %v329 = vld [vmem:[%s281 + $0x64] sm:$0xf]
      %v330 = vld [vmem:[%s281 + $0x68] sm:$0xf]
      %v331 = vld [vmem:[%s281 + $0x6c] sm:$0xf]
      %v332 = vld [vmem:[%s281 + $0x70] sm:$0xf]
      %v333 = vld [vmem:[%s281 + $0x74] sm:$0xf]
      %v334 = vld [vmem:[%s281 + $0x78] sm:$0xf]
      %v335 = vld [vmem:[%s281 + $0x7c] sm:$0xf]
      %v336 = vld [vmem:[%s285] sm:$0xff]
      %s337 = smul.u32 %s22, 1024
      %s338 = sshra.s32 %s337, 7
      %s339 = sand.u32 %s337, 127
      %s340 = smul.addr %s338, 4
      %s341 = scalar_lea.vmem %s3, %s340
      %v342 = vld [vmem:[%s341] sm:$0xff]
      %v343 = vld [vmem:[%s341 + $0x8] sm:$0xff]
      %v344 = vld [vmem:[%s341 + $0x10] sm:$0xff]
      %v345 = vld [vmem:[%s341 + $0x18] sm:$0xff]
      %v346 = vld [vmem:[%s341 + $0x20] sm:$0xff]
      %v347 = vld [vmem:[%s341 + $0x28] sm:$0xff]
      %v348 = vld [vmem:[%s341 + $0x30] sm:$0xff]
      %v349 = vld [vmem:[%s341 + $0x38] sm:$0xff]
      %v350 = vld [vmem:[%s341 + $0x40] sm:$0xff]
      %v351 = vld [vmem:[%s341 + $0x48] sm:$0xff]
      %v352 = vld [vmem:[%s341 + $0x50] sm:$0xff]
      %v353 = vld [vmem:[%s341 + $0x58] sm:$0xff]
      %v354 = vld [vmem:[%s341 + $0x60] sm:$0xff]
      %v355 = vld [vmem:[%s341 + $0x68] sm:$0xff]
      %v356 = vld [vmem:[%s341 + $0x70] sm:$0xff]
      %v357 = vld [vmem:[%s341 + $0x78] sm:$0xff]
      %v358 = vld [vmem:[%s341 + $0x80] sm:$0xff]
      %v359 = vld [vmem:[%s341 + $0x88] sm:$0xff]
      %v360 = vld [vmem:[%s341 + $0x90] sm:$0xff]
      %v361 = vld [vmem:[%s341 + $0x98] sm:$0xff]
      %v362 = vld [vmem:[%s341 + $0xa0] sm:$0xff]
      %v363 = vld [vmem:[%s341 + $0xa8] sm:$0xff]
      %v364 = vld [vmem:[%s341 + $0xb0] sm:$0xff]
      %v365 = vld [vmem:[%s341 + $0xb8] sm:$0xff]
      %v366 = vld [vmem:[%s341 + $0xc0] sm:$0xff]
      %v367 = vld [vmem:[%s341 + $0xc8] sm:$0xff]
      %v368 = vld [vmem:[%s341 + $0xd0] sm:$0xff]
      %v369 = vld [vmem:[%s341 + $0xd8] sm:$0xff]
      %v370 = vld [vmem:[%s341 + $0xe0] sm:$0xff]
      %v371 = vld [vmem:[%s341 + $0xe8] sm:$0xff]
      %v372 = vld [vmem:[%s341 + $0xf0] sm:$0xff]
      %v373 = vld [vmem:[%s341 + $0xf8] sm:$0xff]
      %v374 = vld [vmem:[%s341 + $0x100] sm:$0xff]
      %v375 = vld [vmem:[%s341 + $0x108] sm:$0xff]
      %v376 = vld [vmem:[%s341 + $0x110] sm:$0xff]
      %v377 = vld [vmem:[%s341 + $0x118] sm:$0xff]
      %v378 = vld [vmem:[%s341 + $0x120] sm:$0xff]
      %v379 = vld [vmem:[%s341 + $0x128] sm:$0xff]
      %v380 = vld [vmem:[%s341 + $0x130] sm:$0xff]
      %v381 = vld [vmem:[%s341 + $0x138] sm:$0xff]
      %v382 = vld [vmem:[%s341 + $0x140] sm:$0xff]
      %v383 = vld [vmem:[%s341 + $0x148] sm:$0xff]
      %v384 = vld [vmem:[%s341 + $0x150] sm:$0xff]
      %v385 = vld [vmem:[%s341 + $0x158] sm:$0xff]
      %v386 = vld [vmem:[%s341 + $0x160] sm:$0xff]
      %v387 = vld [vmem:[%s341 + $0x168] sm:$0xff]
      %v388 = vld [vmem:[%s341 + $0x170] sm:$0xff]
      %v389 = vld [vmem:[%s341 + $0x178] sm:$0xff]
      %v390 = vld [vmem:[%s341 + $0x180] sm:$0xff]
      %v391 = vld [vmem:[%s341 + $0x188] sm:$0xff]
      %v392 = vld [vmem:[%s341 + $0x190] sm:$0xff]
      %v393 = vld [vmem:[%s341 + $0x198] sm:$0xff]
      %v394 = vld [vmem:[%s341 + $0x1a0] sm:$0xff]
      %v395 = vld [vmem:[%s341 + $0x1a8] sm:$0xff]
      %v396 = vld [vmem:[%s341 + $0x1b0] sm:$0xff]
      %v397 = vld [vmem:[%s341 + $0x1b8] sm:$0xff]
      %v398 = vld [vmem:[%s341 + $0x1c0] sm:$0xff]
      %v399 = vld [vmem:[%s341 + $0x1c8] sm:$0xff]
      %v400 = vld [vmem:[%s341 + $0x1d0] sm:$0xff]
      %v401 = vld [vmem:[%s341 + $0x1d8] sm:$0xff]
      %v402 = vld [vmem:[%s341 + $0x1e0] sm:$0xff]
      %v403 = vld [vmem:[%s341 + $0x1e8] sm:$0xff]
      %v404 = vld [vmem:[%s341 + $0x1f0] sm:$0xff]
      %v405 = vld [vmem:[%s341 + $0x1f8] sm:$0xff]
      %v406 = vld [vmem:[%s341 + $0x200] sm:$0xff]
      %v407 = vld [vmem:[%s341 + $0x208] sm:$0xff]
      %v408 = vld [vmem:[%s341 + $0x210] sm:$0xff]
      %v409 = vld [vmem:[%s341 + $0x218] sm:$0xff]
      %v410 = vld [vmem:[%s341 + $0x220] sm:$0xff]
      %v411 = vld [vmem:[%s341 + $0x228] sm:$0xff]
      %v412 = vld [vmem:[%s341 + $0x230] sm:$0xff]
      %v413 = vld [vmem:[%s341 + $0x238] sm:$0xff]
      %v414 = vld [vmem:[%s341 + $0x240] sm:$0xff]
      %v415 = vld [vmem:[%s341 + $0x248] sm:$0xff]
      %v416 = vld [vmem:[%s341 + $0x250] sm:$0xff]
      %v417 = vld [vmem:[%s341 + $0x258] sm:$0xff]
      %v418 = vld [vmem:[%s341 + $0x260] sm:$0xff]
      %v419 = vld [vmem:[%s341 + $0x268] sm:$0xff]
      %v420 = vld [vmem:[%s341 + $0x270] sm:$0xff]
      %v421 = vld [vmem:[%s341 + $0x278] sm:$0xff]
      %v422 = vld [vmem:[%s341 + $0x280] sm:$0xff]
      %v423 = vld [vmem:[%s341 + $0x288] sm:$0xff]
      %v424 = vld [vmem:[%s341 + $0x290] sm:$0xff]
      %v425 = vld [vmem:[%s341 + $0x298] sm:$0xff]
      %v426 = vld [vmem:[%s341 + $0x2a0] sm:$0xff]
      %v427 = vld [vmem:[%s341 + $0x2a8] sm:$0xff]
      %v428 = vld [vmem:[%s341 + $0x2b0] sm:$0xff]
      %v429 = vld [vmem:[%s341 + $0x2b8] sm:$0xff]
      %v430 = vld [vmem:[%s341 + $0x2c0] sm:$0xff]
      %v431 = vld [vmem:[%s341 + $0x2c8] sm:$0xff]
      %v432 = vld [vmem:[%s341 + $0x2d0] sm:$0xff]
      %v433 = vld [vmem:[%s341 + $0x2d8] sm:$0xff]
      %v434 = vld [vmem:[%s341 + $0x2e0] sm:$0xff]
      %v435 = vld [vmem:[%s341 + $0x2e8] sm:$0xff]
      %v436 = vld [vmem:[%s341 + $0x2f0] sm:$0xff]
      %v437 = vld [vmem:[%s341 + $0x2f8] sm:$0xff]
      %v438 = vld [vmem:[%s341 + $0x300] sm:$0xff]
      %v439 = vld [vmem:[%s341 + $0x308] sm:$0xff]
      %v440 = vld [vmem:[%s341 + $0x310] sm:$0xff]
      %v441 = vld [vmem:[%s341 + $0x318] sm:$0xff]
      %v442 = vld [vmem:[%s341 + $0x320] sm:$0xff]
      %v443 = vld [vmem:[%s341 + $0x328] sm:$0xff]
      %v444 = vld [vmem:[%s341 + $0x330] sm:$0xff]
      %v445 = vld [vmem:[%s341 + $0x338] sm:$0xff]
      %v446 = vld [vmem:[%s341 + $0x340] sm:$0xff]
      %v447 = vld [vmem:[%s341 + $0x348] sm:$0xff]
      %v448 = vld [vmem:[%s341 + $0x350] sm:$0xff]
      %v449 = vld [vmem:[%s341 + $0x358] sm:$0xff]
      %v450 = vld [vmem:[%s341 + $0x360] sm:$0xff]
      %v451 = vld [vmem:[%s341 + $0x368] sm:$0xff]
      %v452 = vld [vmem:[%s341 + $0x370] sm:$0xff]
      %v453 = vld [vmem:[%s341 + $0x378] sm:$0xff]
      %v454 = vld [vmem:[%s341 + $0x380] sm:$0xff]
      %v455 = vld [vmem:[%s341 + $0x388] sm:$0xff]
      %v456 = vld [vmem:[%s341 + $0x390] sm:$0xff]
      %v457 = vld [vmem:[%s341 + $0x398] sm:$0xff]
      %v458 = vld [vmem:[%s341 + $0x3a0] sm:$0xff]
      %v459 = vld [vmem:[%s341 + $0x3a8] sm:$0xff]
      %v460 = vld [vmem:[%s341 + $0x3b0] sm:$0xff]
      %v461 = vld [vmem:[%s341 + $0x3b8] sm:$0xff]
      %v462 = vld [vmem:[%s341 + $0x3c0] sm:$0xff]
      %v463 = vld [vmem:[%s341 + $0x3c8] sm:$0xff]
      %v464 = vld [vmem:[%s341 + $0x3d0] sm:$0xff]
      %v465 = vld [vmem:[%s341 + $0x3d8] sm:$0xff]
      %v466 = vld [vmem:[%s341 + $0x3e0] sm:$0xff]
      %v467 = vld [vmem:[%s341 + $0x3e8] sm:$0xff]
      %v468 = vld [vmem:[%s341 + $0x3f0] sm:$0xff]
      %v469 = vld [vmem:[%s341 + $0x3f8] sm:$0xff]
      %v471 = vunpack.c.l.b16 %v303
      %v472 = vunpack.c.h.b16 %v303
      %v473 = vpack.c.b16 %v471, %v471
      %v474 = vpack.c.b16 %v472, %v472
      %v605 = vunpack.c.l.b16 %v342
      %v606 = vunpack.c.h.b16 %v342
      %v607 = vunpack.c.l.b16 %v343
      %v608 = vunpack.c.h.b16 %v343
      %v609 = vunpack.c.l.b16 %v344
      %v610 = vunpack.c.h.b16 %v344
      %v611 = vunpack.c.l.b16 %v345
      %v612 = vunpack.c.h.b16 %v345
      %v613 = vunpack.c.l.b16 %v346
      %v614 = vunpack.c.h.b16 %v346
      %v615 = vunpack.c.l.b16 %v347
      %v616 = vunpack.c.h.b16 %v347
      %v617 = vunpack.c.l.b16 %v348
      %v618 = vunpack.c.h.b16 %v348
      %v619 = vunpack.c.l.b16 %v349
      %v620 = vunpack.c.h.b16 %v349
      %v621 = vunpack.c.l.b16 %v350
      %v622 = vunpack.c.h.b16 %v350
      %v623 = vunpack.c.l.b16 %v351
      %v624 = vunpack.c.h.b16 %v351
      %v625 = vunpack.c.l.b16 %v352
      %v626 = vunpack.c.h.b16 %v352
      %v627 = vunpack.c.l.b16 %v353
      %v628 = vunpack.c.h.b16 %v353
      %v629 = vunpack.c.l.b16 %v354
      %v630 = vunpack.c.h.b16 %v354
      %v631 = vunpack.c.l.b16 %v355
      %v632 = vunpack.c.h.b16 %v355
      %v633 = vunpack.c.l.b16 %v356
      %v634 = vunpack.c.h.b16 %v356
      %v635 = vunpack.c.l.b16 %v357
      %v636 = vunpack.c.h.b16 %v357
      %v637 = vunpack.c.l.b16 %v358
      %v638 = vunpack.c.h.b16 %v358
      %v639 = vunpack.c.l.b16 %v359
      %v640 = vunpack.c.h.b16 %v359
      %v641 = vunpack.c.l.b16 %v360
      %v642 = vunpack.c.h.b16 %v360
      %v643 = vunpack.c.l.b16 %v361
      %v644 = vunpack.c.h.b16 %v361
      %v645 = vunpack.c.l.b16 %v362
      %v646 = vunpack.c.h.b16 %v362
      %v647 = vunpack.c.l.b16 %v363
      %v648 = vunpack.c.h.b16 %v363
      %v649 = vunpack.c.l.b16 %v364
      %v650 = vunpack.c.h.b16 %v364
      %v651 = vunpack.c.l.b16 %v365
      %v652 = vunpack.c.h.b16 %v365
      %v653 = vunpack.c.l.b16 %v366
      %v654 = vunpack.c.h.b16 %v366
      %v655 = vunpack.c.l.b16 %v367
      %v656 = vunpack.c.h.b16 %v367
      %v657 = vunpack.c.l.b16 %v368
      %v658 = vunpack.c.h.b16 %v368
      %v659 = vunpack.c.l.b16 %v369
      %v660 = vunpack.c.h.b16 %v369
      %v661 = vunpack.c.l.b16 %v370
      %v662 = vunpack.c.h.b16 %v370
      %v663 = vunpack.c.l.b16 %v371
      %v664 = vunpack.c.h.b16 %v371
      %v665 = vunpack.c.l.b16 %v372
      %v666 = vunpack.c.h.b16 %v372
      %v667 = vunpack.c.l.b16 %v373
      %v668 = vunpack.c.h.b16 %v373
      %v669 = vunpack.c.l.b16 %v374
      %v670 = vunpack.c.h.b16 %v374
      %v671 = vunpack.c.l.b16 %v375
      %v672 = vunpack.c.h.b16 %v375
      %v673 = vunpack.c.l.b16 %v376
      %v674 = vunpack.c.h.b16 %v376
      %v675 = vunpack.c.l.b16 %v377
      %v676 = vunpack.c.h.b16 %v377
      %v677 = vunpack.c.l.b16 %v378
      %v678 = vunpack.c.h.b16 %v378
      %v679 = vunpack.c.l.b16 %v379
      %v680 = vunpack.c.h.b16 %v379
      %v681 = vunpack.c.l.b16 %v380
      %v682 = vunpack.c.h.b16 %v380
      %v683 = vunpack.c.l.b16 %v381
      %v684 = vunpack.c.h.b16 %v381
      %v685 = vunpack.c.l.b16 %v382
      %v686 = vunpack.c.h.b16 %v382
      %v687 = vunpack.c.l.b16 %v383
      %v688 = vunpack.c.h.b16 %v383
      %v689 = vunpack.c.l.b16 %v384
      %v690 = vunpack.c.h.b16 %v384
      %v691 = vunpack.c.l.b16 %v385
      %v692 = vunpack.c.h.b16 %v385
      %v693 = vunpack.c.l.b16 %v386
      %v694 = vunpack.c.h.b16 %v386
      %v695 = vunpack.c.l.b16 %v387
      %v696 = vunpack.c.h.b16 %v387
      %v697 = vunpack.c.l.b16 %v388
      %v698 = vunpack.c.h.b16 %v388
      %v699 = vunpack.c.l.b16 %v389
      %v700 = vunpack.c.h.b16 %v389
      %v701 = vunpack.c.l.b16 %v390
      %v702 = vunpack.c.h.b16 %v390
      %v703 = vunpack.c.l.b16 %v391
      %v704 = vunpack.c.h.b16 %v391
      %v705 = vunpack.c.l.b16 %v392
      %v706 = vunpack.c.h.b16 %v392
      %v707 = vunpack.c.l.b16 %v393
      %v708 = vunpack.c.h.b16 %v393
      %v709 = vunpack.c.l.b16 %v394
      %v710 = vunpack.c.h.b16 %v394
      %v711 = vunpack.c.l.b16 %v395
      %v712 = vunpack.c.h.b16 %v395
      %v713 = vunpack.c.l.b16 %v396
      %v714 = vunpack.c.h.b16 %v396
      %v715 = vunpack.c.l.b16 %v397
      %v716 = vunpack.c.h.b16 %v397
      %v717 = vunpack.c.l.b16 %v398
      %v718 = vunpack.c.h.b16 %v398
      %v719 = vunpack.c.l.b16 %v399
      %v720 = vunpack.c.h.b16 %v399
      %v721 = vunpack.c.l.b16 %v400
      %v722 = vunpack.c.h.b16 %v400
      %v723 = vunpack.c.l.b16 %v401
      %v724 = vunpack.c.h.b16 %v401
      %v725 = vunpack.c.l.b16 %v402
      %v726 = vunpack.c.h.b16 %v402
      %v727 = vunpack.c.l.b16 %v403
      %v728 = vunpack.c.h.b16 %v403
      %v729 = vunpack.c.l.b16 %v404
      %v730 = vunpack.c.h.b16 %v404
      %v731 = vunpack.c.l.b16 %v405
      %v732 = vunpack.c.h.b16 %v405
      %v733 = vunpack.c.l.b16 %v406
      %v734 = vunpack.c.h.b16 %v406
      %v735 = vunpack.c.l.b16 %v407
      %v736 = vunpack.c.h.b16 %v407
      %v737 = vunpack.c.l.b16 %v408
      %v738 = vunpack.c.h.b16 %v408
      %v739 = vunpack.c.l.b16 %v409
      %v740 = vunpack.c.h.b16 %v409
      %v741 = vunpack.c.l.b16 %v410
      %v742 = vunpack.c.h.b16 %v410
      %v743 = vunpack.c.l.b16 %v411
      %v744 = vunpack.c.h.b16 %v411
      %v745 = vunpack.c.l.b16 %v412
      %v746 = vunpack.c.h.b16 %v412
      %v747 = vunpack.c.l.b16 %v413
      %v748 = vunpack.c.h.b16 %v413
      %v749 = vunpack.c.l.b16 %v414
      %v750 = vunpack.c.h.b16 %v414
      %v751 = vunpack.c.l.b16 %v415
      %v752 = vunpack.c.h.b16 %v415
      %v753 = vunpack.c.l.b16 %v416
      %v754 = vunpack.c.h.b16 %v416
      %v755 = vunpack.c.l.b16 %v417
      %v756 = vunpack.c.h.b16 %v417
      %v757 = vunpack.c.l.b16 %v418
      %v758 = vunpack.c.h.b16 %v418
      %v759 = vunpack.c.l.b16 %v419
      %v760 = vunpack.c.h.b16 %v419
      %v761 = vunpack.c.l.b16 %v420
      %v762 = vunpack.c.h.b16 %v420
      %v763 = vunpack.c.l.b16 %v421
      %v764 = vunpack.c.h.b16 %v421
      %v765 = vunpack.c.l.b16 %v422
      %v766 = vunpack.c.h.b16 %v422
      %v767 = vunpack.c.l.b16 %v423
      %v768 = vunpack.c.h.b16 %v423
      %v769 = vunpack.c.l.b16 %v424
      %v770 = vunpack.c.h.b16 %v424
      %v771 = vunpack.c.l.b16 %v425
      %v772 = vunpack.c.h.b16 %v425
      %v773 = vunpack.c.l.b16 %v426
      %v774 = vunpack.c.h.b16 %v426
      %v775 = vunpack.c.l.b16 %v427
      %v776 = vunpack.c.h.b16 %v427
      %v777 = vunpack.c.l.b16 %v428
      %v778 = vunpack.c.h.b16 %v428
      %v779 = vunpack.c.l.b16 %v429
      %v780 = vunpack.c.h.b16 %v429
      %v781 = vunpack.c.l.b16 %v430
      %v782 = vunpack.c.h.b16 %v430
      %v783 = vunpack.c.l.b16 %v431
      %v784 = vunpack.c.h.b16 %v431
      %v785 = vunpack.c.l.b16 %v432
      %v786 = vunpack.c.h.b16 %v432
      %v787 = vunpack.c.l.b16 %v433
      %v788 = vunpack.c.h.b16 %v433
      %v789 = vunpack.c.l.b16 %v434
      %v790 = vunpack.c.h.b16 %v434
      %v791 = vunpack.c.l.b16 %v435
      %v792 = vunpack.c.h.b16 %v435
      %v793 = vunpack.c.l.b16 %v436
      %v794 = vunpack.c.h.b16 %v436
      %v795 = vunpack.c.l.b16 %v437
      %v796 = vunpack.c.h.b16 %v437
      %v797 = vunpack.c.l.b16 %v438
      %v798 = vunpack.c.h.b16 %v438
      %v799 = vunpack.c.l.b16 %v439
      %v800 = vunpack.c.h.b16 %v439
      %v801 = vunpack.c.l.b16 %v440
      %v802 = vunpack.c.h.b16 %v440
      %v803 = vunpack.c.l.b16 %v441
      %v804 = vunpack.c.h.b16 %v441
      %v805 = vunpack.c.l.b16 %v442
      %v806 = vunpack.c.h.b16 %v442
      %v807 = vunpack.c.l.b16 %v443
      %v808 = vunpack.c.h.b16 %v443
      %v809 = vunpack.c.l.b16 %v444
      %v810 = vunpack.c.h.b16 %v444
      %v811 = vunpack.c.l.b16 %v445
      %v812 = vunpack.c.h.b16 %v445
      %v813 = vunpack.c.l.b16 %v446
      %v814 = vunpack.c.h.b16 %v446
      %v815 = vunpack.c.l.b16 %v447
      %v816 = vunpack.c.h.b16 %v447
      %v817 = vunpack.c.l.b16 %v448
      %v818 = vunpack.c.h.b16 %v448
      %v819 = vunpack.c.l.b16 %v449
      %v820 = vunpack.c.h.b16 %v449
      %v821 = vunpack.c.l.b16 %v450
      %v822 = vunpack.c.h.b16 %v450
      %v823 = vunpack.c.l.b16 %v451
      %v824 = vunpack.c.h.b16 %v451
      %v825 = vunpack.c.l.b16 %v452
      %v826 = vunpack.c.h.b16 %v452
      %v827 = vunpack.c.l.b16 %v453
      %v828 = vunpack.c.h.b16 %v453
      %v829 = vunpack.c.l.b16 %v454
      %v830 = vunpack.c.h.b16 %v454
      %v831 = vunpack.c.l.b16 %v455
      %v832 = vunpack.c.h.b16 %v455
      %v833 = vunpack.c.l.b16 %v456
      %v834 = vunpack.c.h.b16 %v456
      %v835 = vunpack.c.l.b16 %v457
      %v836 = vunpack.c.h.b16 %v457
      %v837 = vunpack.c.l.b16 %v458
      %v838 = vunpack.c.h.b16 %v458
      %v839 = vunpack.c.l.b16 %v459
      %v840 = vunpack.c.h.b16 %v459
      %v841 = vunpack.c.l.b16 %v460
      %v842 = vunpack.c.h.b16 %v460
      %v843 = vunpack.c.l.b16 %v461
      %v844 = vunpack.c.h.b16 %v461
      %v845 = vunpack.c.l.b16 %v462
      %v846 = vunpack.c.h.b16 %v462
      %v847 = vunpack.c.l.b16 %v463
      %v848 = vunpack.c.h.b16 %v463
      %v849 = vunpack.c.l.b16 %v464
      %v850 = vunpack.c.h.b16 %v464
      %v851 = vunpack.c.l.b16 %v465
      %v852 = vunpack.c.h.b16 %v465
      %v853 = vunpack.c.l.b16 %v466
      %v854 = vunpack.c.h.b16 %v466
      %v855 = vunpack.c.l.b16 %v467
      %v856 = vunpack.c.h.b16 %v467
      %v857 = vunpack.c.l.b16 %v468
      %v858 = vunpack.c.h.b16 %v468
      %v859 = vunpack.c.l.b16 %v469
      %v860 = vunpack.c.h.b16 %v469
      %v861 = vpack.c.b16 %v613, %v605
      %v862 = vpack.c.b16 %v614, %v606
      %v863 = vpack.c.b16 %v615, %v607
      %v864 = vpack.c.b16 %v616, %v608
      %v865 = vpack.c.b16 %v617, %v609
      %v866 = vpack.c.b16 %v618, %v610
      %v867 = vpack.c.b16 %v619, %v611
      %v868 = vpack.c.b16 %v620, %v612
      %v869 = vpack.c.b16 %v629, %v621
      %v870 = vpack.c.b16 %v630, %v622
      %v871 = vpack.c.b16 %v631, %v623
      %v872 = vpack.c.b16 %v632, %v624
      %v873 = vpack.c.b16 %v633, %v625
      %v874 = vpack.c.b16 %v634, %v626
      %v875 = vpack.c.b16 %v635, %v627
      %v876 = vpack.c.b16 %v636, %v628
      %v877 = vpack.c.b16 %v645, %v637
      %v878 = vpack.c.b16 %v646, %v638
      %v879 = vpack.c.b16 %v647, %v639
      %v880 = vpack.c.b16 %v648, %v640
      %v881 = vpack.c.b16 %v649, %v641
      %v882 = vpack.c.b16 %v650, %v642
      %v883 = vpack.c.b16 %v651, %v643
      %v884 = vpack.c.b16 %v652, %v644
      %v885 = vpack.c.b16 %v661, %v653
      %v886 = vpack.c.b16 %v662, %v654
      %v887 = vpack.c.b16 %v663, %v655
      %v888 = vpack.c.b16 %v664, %v656
      %v889 = vpack.c.b16 %v665, %v657
      %v890 = vpack.c.b16 %v666, %v658
      %v891 = vpack.c.b16 %v667, %v659
      %v892 = vpack.c.b16 %v668, %v660
      %v893 = vpack.c.b16 %v677, %v669
      %v894 = vpack.c.b16 %v678, %v670
      %v895 = vpack.c.b16 %v679, %v671
      %v896 = vpack.c.b16 %v680, %v672
      %v897 = vpack.c.b16 %v681, %v673
      %v898 = vpack.c.b16 %v682, %v674
      %v899 = vpack.c.b16 %v683, %v675
      %v900 = vpack.c.b16 %v684, %v676
      %v901 = vpack.c.b16 %v693, %v685
      %v902 = vpack.c.b16 %v694, %v686
      %v903 = vpack.c.b16 %v695, %v687
      %v904 = vpack.c.b16 %v696, %v688
      %v905 = vpack.c.b16 %v697, %v689
      %v906 = vpack.c.b16 %v698, %v690
      %v907 = vpack.c.b16 %v699, %v691
      %v908 = vpack.c.b16 %v700, %v692
      %v909 = vpack.c.b16 %v709, %v701
      %v910 = vpack.c.b16 %v710, %v702
      %v911 = vpack.c.b16 %v711, %v703
      %v912 = vpack.c.b16 %v712, %v704
      %v913 = vpack.c.b16 %v713, %v705
      %v914 = vpack.c.b16 %v714, %v706
      %v915 = vpack.c.b16 %v715, %v707
      %v916 = vpack.c.b16 %v716, %v708
      %v917 = vpack.c.b16 %v725, %v717
      %v918 = vpack.c.b16 %v726, %v718
      %v919 = vpack.c.b16 %v727, %v719
      %v920 = vpack.c.b16 %v728, %v720
      %v921 = vpack.c.b16 %v729, %v721
      %v922 = vpack.c.b16 %v730, %v722
      %v923 = vpack.c.b16 %v731, %v723
      %v924 = vpack.c.b16 %v732, %v724
      %v925 = vpack.c.b16 %v741, %v733
      %v926 = vpack.c.b16 %v742, %v734
      %v927 = vpack.c.b16 %v743, %v735
      %v928 = vpack.c.b16 %v744, %v736
      %v929 = vpack.c.b16 %v745, %v737
      %v930 = vpack.c.b16 %v746, %v738
      %v931 = vpack.c.b16 %v747, %v739
      %v932 = vpack.c.b16 %v748, %v740
      %v933 = vpack.c.b16 %v757, %v749
      %v934 = vpack.c.b16 %v758, %v750
      %v935 = vpack.c.b16 %v759, %v751
      %v936 = vpack.c.b16 %v760, %v752
      %v937 = vpack.c.b16 %v761, %v753
      %v938 = vpack.c.b16 %v762, %v754
      %v939 = vpack.c.b16 %v763, %v755
      %v940 = vpack.c.b16 %v764, %v756
      %v941 = vpack.c.b16 %v773, %v765
      %v942 = vpack.c.b16 %v774, %v766
      %v943 = vpack.c.b16 %v775, %v767
      %v944 = vpack.c.b16 %v776, %v768
      %v945 = vpack.c.b16 %v777, %v769
      %v946 = vpack.c.b16 %v778, %v770
      %v947 = vpack.c.b16 %v779, %v771
      %v948 = vpack.c.b16 %v780, %v772
      %v949 = vpack.c.b16 %v789, %v781
      %v950 = vpack.c.b16 %v790, %v782
      %v951 = vpack.c.b16 %v791, %v783
      %v952 = vpack.c.b16 %v792, %v784
      %v953 = vpack.c.b16 %v793, %v785
      %v954 = vpack.c.b16 %v794, %v786
      %v955 = vpack.c.b16 %v795, %v787
      %v956 = vpack.c.b16 %v796, %v788
      %v957 = vpack.c.b16 %v805, %v797
      %v958 = vpack.c.b16 %v806, %v798
      %v959 = vpack.c.b16 %v807, %v799
      %v960 = vpack.c.b16 %v808, %v800
      %v961 = vpack.c.b16 %v809, %v801
      %v962 = vpack.c.b16 %v810, %v802
      %v963 = vpack.c.b16 %v811, %v803
      %v964 = vpack.c.b16 %v812, %v804
      %v965 = vpack.c.b16 %v821, %v813
      %v966 = vpack.c.b16 %v822, %v814
      %v967 = vpack.c.b16 %v823, %v815
      %v968 = vpack.c.b16 %v824, %v816
      %v969 = vpack.c.b16 %v825, %v817
      %v970 = vpack.c.b16 %v826, %v818
      %v971 = vpack.c.b16 %v827, %v819
      %v972 = vpack.c.b16 %v828, %v820
      %v973 = vpack.c.b16 %v837, %v829
      %v974 = vpack.c.b16 %v838, %v830
      %v975 = vpack.c.b16 %v839, %v831
      %v976 = vpack.c.b16 %v840, %v832
      %v977 = vpack.c.b16 %v841, %v833
      %v978 = vpack.c.b16 %v842, %v834
      %v979 = vpack.c.b16 %v843, %v835
      %v980 = vpack.c.b16 %v844, %v836
      %v981 = vpack.c.b16 %v853, %v845
      %v982 = vpack.c.b16 %v854, %v846
      %v983 = vpack.c.b16 %v855, %v847
      %v984 = vpack.c.b16 %v856, %v848
      %v985 = vpack.c.b16 %v857, %v849
      %v986 = vpack.c.b16 %v858, %v850
      %v987 = vpack.c.b16 %v859, %v851
      %v988 = vpack.c.b16 %v860, %v852
      %1117 = vmatprep.subr.bf16.mxu0 %v862
      %1118 = vmatpush1.bf16.msra.mxu0 %v861
      %1119 = vmatprep.subr.bf16.mxu0 %v870
      %1120 = vmatpush1.bf16.msra.mxu0 %v869
      %1121 = vmatprep.subr.bf16.mxu0 %v878
      %1122 = vmatpush1.bf16.msra.mxu0 %v877
      %1123 = vmatprep.subr.bf16.mxu0 %v886
      %1124 = vmatpush1.bf16.msra.mxu0 %v885
      %1125 = vmatprep.subr.bf16.mxu0 %v894
      %1126 = vmatpush1.bf16.msra.mxu0 %v893
      %1127 = vmatprep.subr.bf16.mxu0 %v902
      %1128 = vmatpush1.bf16.msra.mxu0 %v901
      %1129 = vmatprep.subr.bf16.mxu0 %v910
      %1130 = vmatpush1.bf16.msra.mxu0 %v909
      %1131 = vmatprep.subr.bf16.mxu0 %v918
      %1132 = vmatpush1.bf16.msra.mxu0 %v917
      %1133 = vmatprep.subr.bf16.mxu0 %v926
      %1134 = vmatpush1.bf16.msra.mxu0 %v925
      %1135 = vmatprep.subr.bf16.mxu0 %v934
      %1136 = vmatpush1.bf16.msra.mxu0 %v933
      %1137 = vmatprep.subr.bf16.mxu0 %v942
      %1138 = vmatpush1.bf16.msra.mxu0 %v941
      %1139 = vmatprep.subr.bf16.mxu0 %v950
      %1140 = vmatpush1.bf16.msra.mxu0 %v949
      %1141 = vmatprep.subr.bf16.mxu0 %v958
      %1142 = vmatpush1.bf16.msra.mxu0 %v957
      %1143 = vmatprep.subr.bf16.mxu0 %v966
      %1144 = vmatpush1.bf16.msra.mxu0 %v965
      %1145 = vmatprep.subr.bf16.mxu0 %v974
      %1146 = vmatpush1.bf16.msra.mxu0 %v973
      %1147 = vmatprep.subr.bf16.mxu0 %v982
      %1148 = vmatpush1.bf16.msra.mxu0 %v981
      %1149 = vmatprep.mubr.bf16.mxu0 %v474
      %1150 = vmatmul.mubr.bf16.gmra.mrb[0].mxu0 %v473
      %v1151 = vpop.f32.mrb[0].mxu0
      %v1152 = vadd.f32 0.0, %v1151
      %v1153 = vpop.f32.mrb[0].mxu0
      %v1154 = vadd.f32 0.0, %v1153
      %v1155 = vpop.f32.mrb[0].mxu0
      %v1156 = vpop.f32.mrb[0].mxu0
      %1157 = vdwg.mxu0
      %1158 = vmatprep.subr.bf16.mxu0 %v864
      %1159 = vmatpush1.bf16.msra.mxu0 %v863
      %1160 = vmatprep.subr.bf16.mxu0 %v872
      %1161 = vmatpush1.bf16.msra.mxu0 %v871
      %1162 = vmatprep.subr.bf16.mxu0 %v880
      %1163 = vmatpush1.bf16.msra.mxu0 %v879
      %1164 = vmatprep.subr.bf16.mxu0 %v888
      %1165 = vmatpush1.bf16.msra.mxu0 %v887
      %1166 = vmatprep.subr.bf16.mxu0 %v896
      %1167 = vmatpush1.bf16.msra.mxu0 %v895
      %1168 = vmatprep.subr.bf16.mxu0 %v904
      %1169 = vmatpush1.bf16.msra.mxu0 %v903
      %1170 = vmatprep.subr.bf16.mxu0 %v912
      %1171 = vmatpush1.bf16.msra.mxu0 %v911
      %1172 = vmatprep.subr.bf16.mxu0 %v920
      %1173 = vmatpush1.bf16.msra.mxu0 %v919
      %1174 = vmatprep.subr.bf16.mxu0 %v928
      %1175 = vmatpush1.bf16.msra.mxu0 %v927
      %1176 = vmatprep.subr.bf16.mxu0 %v936
      %1177 = vmatpush1.bf16.msra.mxu0 %v935
      %1178 = vmatprep.subr.bf16.mxu0 %v944
      %1179 = vmatpush1.bf16.msra.mxu0 %v943
      %1180 = vmatprep.subr.bf16.mxu0 %v952
      %1181 = vmatpush1.bf16.msra.mxu0 %v951
      %1182 = vmatprep.subr.bf16.mxu0 %v960
      %1183 = vmatpush1.bf16.msra.mxu0 %v959
      %1184 = vmatprep.subr.bf16.mxu0 %v968
      %1185 = vmatpush1.bf16.msra.mxu0 %v967
      %1186 = vmatprep.subr.bf16.mxu0 %v976
      %1187 = vmatpush1.bf16.msra.mxu0 %v975
      %1188 = vmatprep.subr.bf16.mxu0 %v984
      %1189 = vmatpush1.bf16.msra.mxu0 %v983
      %1190 = vmatprep.mubr.bf16.mxu0 %v474
      %1191 = vmatmul.mubr.bf16.gmra.mrb[0].mxu0 %v473
      %v1192 = vpop.f32.mrb[0].mxu0
      %v1193 = vadd.f32 0.0, %v1192
      %v1194 = vpop.f32.mrb[0].mxu0
      %v1195 = vadd.f32 0.0, %v1194
      %v1196 = vpop.f32.mrb[0].mxu0
      %v1197 = vpop.f32.mrb[0].mxu0
      %1198 = vdwg.mxu0
      %1199 = vmatprep.subr.bf16.mxu0 %v866
      %1200 = vmatpush1.bf16.msra.mxu0 %v865
      %1201 = vmatprep.subr.bf16.mxu0 %v874
      %1202 = vmatpush1.bf16.msra.mxu0 %v873
      %1203 = vmatprep.subr.bf16.mxu0 %v882
      %1204 = vmatpush1.bf16.msra.mxu0 %v881
      %1205 = vmatprep.subr.bf16.mxu0 %v890
      %1206 = vmatpush1.bf16.msra.mxu0 %v889
      %1207 = vmatprep.subr.bf16.mxu0 %v898
      %1208 = vmatpush1.bf16.msra.mxu0 %v897
      %1209 = vmatprep.subr.bf16.mxu0 %v906
      %1210 = vmatpush1.bf16.msra.mxu0 %v905
      %1211 = vmatprep.subr.bf16.mxu0 %v914
      %1212 = vmatpush1.bf16.msra.mxu0 %v913
      %1213 = vmatprep.subr.bf16.mxu0 %v922
      %1214 = vmatpush1.bf16.msra.mxu0 %v921
      %1215 = vmatprep.subr.bf16.mxu0 %v930
      %1216 = vmatpush1.bf16.msra.mxu0 %v929
      %1217 = vmatprep.subr.bf16.mxu0 %v938
      %1218 = vmatpush1.bf16.msra.mxu0 %v937
      %1219 = vmatprep.subr.bf16.mxu0 %v946
      %1220 = vmatpush1.bf16.msra.mxu0 %v945
      %1221 = vmatprep.subr.bf16.mxu0 %v954
      %1222 = vmatpush1.bf16.msra.mxu0 %v953
      %1223 = vmatprep.subr.bf16.mxu0 %v962
      %1224 = vmatpush1.bf16.msra.mxu0 %v961
      %1225 = vmatprep.subr.bf16.mxu0 %v970
      %1226 = vmatpush1.bf16.msra.mxu0 %v969
      %1227 = vmatprep.subr.bf16.mxu0 %v978
      %1228 = vmatpush1.bf16.msra.mxu0 %v977
      %1229 = vmatprep.subr.bf16.mxu0 %v986
      %1230 = vmatpush1.bf16.msra.mxu0 %v985
      %1231 = vmatprep.mubr.bf16.mxu0 %v474
      %1232 = vmatmul.mubr.bf16.gmra.mrb[0].mxu0 %v473
      %v1233 = vpop.f32.mrb[0].mxu0
      %v1234 = vadd.f32 0.0, %v1233
      %v1235 = vpop.f32.mrb[0].mxu0
      %v1236 = vadd.f32 0.0, %v1235
      %v1237 = vpop.f32.mrb[0].mxu0
      %v1238 = vpop.f32.mrb[0].mxu0
      %1239 = vdwg.mxu0
      %1240 = vmatprep.subr.bf16.mxu0 %v868
      %1241 = vmatpush1.bf16.msra.mxu0 %v867
      %1242 = vmatprep.subr.bf16.mxu0 %v876
      %1243 = vmatpush1.bf16.msra.mxu0 %v875
      %1244 = vmatprep.subr.bf16.mxu0 %v884
      %1245 = vmatpush1.bf16.msra.mxu0 %v883
      %1246 = vmatprep.subr.bf16.mxu0 %v892
      %1247 = vmatpush1.bf16.msra.mxu0 %v891
      %1248 = vmatprep.subr.bf16.mxu0 %v900
      %1249 = vmatpush1.bf16.msra.mxu0 %v899
      %1250 = vmatprep.subr.bf16.mxu0 %v908
      %1251 = vmatpush1.bf16.msra.mxu0 %v907
      %1252 = vmatprep.subr.bf16.mxu0 %v916
      %1253 = vmatpush1.bf16.msra.mxu0 %v915
      %1254 = vmatprep.subr.bf16.mxu0 %v924
      %1255 = vmatpush1.bf16.msra.mxu0 %v923
      %1256 = vmatprep.subr.bf16.mxu0 %v932
      %1257 = vmatpush1.bf16.msra.mxu0 %v931
      %1258 = vmatprep.subr.bf16.mxu0 %v940
      %1259 = vmatpush1.bf16.msra.mxu0 %v939
      %1260 = vmatprep.subr.bf16.mxu0 %v948
      %1261 = vmatpush1.bf16.msra.mxu0 %v947
      %1262 = vmatprep.subr.bf16.mxu0 %v956
      %1263 = vmatpush1.bf16.msra.mxu0 %v955
      %1264 = vmatprep.subr.bf16.mxu0 %v964
      %1265 = vmatpush1.bf16.msra.mxu0 %v963
      %1266 = vmatprep.subr.bf16.mxu0 %v972
      %1267 = vmatpush1.bf16.msra.mxu0 %v971
      %1268 = vmatprep.subr.bf16.mxu0 %v980
      %1269 = vmatpush1.bf16.msra.mxu0 %v979
      %1270 = vmatprep.subr.bf16.mxu0 %v988
      %1271 = vmatpush1.bf16.msra.mxu0 %v987
      %1272 = vmatprep.mubr.bf16.mxu0 %v474
      %1273 = vmatmul.mubr.bf16.gmra.mrb[0].mxu0 %v473
      %v1274 = vpop.f32.mrb[0].mxu0
      %v1275 = vadd.f32 0.0, %v1274
      %v1276 = vpop.f32.mrb[0].mxu0
      %v1277 = vadd.f32 0.0, %v1276
      %v1278 = vpop.f32.mrb[0].mxu0
      %v1279 = vpop.f32.mrb[0].mxu0
      %1280 = vdwg.mxu0
      %v1281 = vpack.c.bf16 %v1152, %v1152
      %v1282 = vpack.c.bf16 %v1154, %v1154
      %v1283 = vpack.c.bf16 %v1193, %v1193
      %v1284 = vpack.c.bf16 %v1195, %v1195
      %v1285 = vpack.c.bf16 %v1234, %v1234
      %v1286 = vpack.c.bf16 %v1236, %v1236
      %v1287 = vpack.c.bf16 %v1275, %v1275
      %v1288 = vpack.c.bf16 %v1277, %v1277
      %v1289 = vlaneseq
      %v1290 = vand.u32 %v1289, 127
      %v1323 = vunpack.c.l.b16 %v304
      %v1324 = vunpack.c.l.b16 %v305
      %v1325 = vunpack.c.l.b16 %v306
      %v1326 = vunpack.c.l.b16 %v307
      %v1327 = vunpack.c.l.b16 %v308
      %v1328 = vunpack.c.l.b16 %v309
      %v1329 = vunpack.c.l.b16 %v310
      %v1330 = vunpack.c.l.b16 %v311
      %v1331 = vunpack.c.l.b16 %v312
      %v1332 = vunpack.c.l.b16 %v313
      %v1333 = vunpack.c.l.b16 %v314
      %v1334 = vunpack.c.l.b16 %v315
      %v1335 = vunpack.c.l.b16 %v316
      %v1336 = vunpack.c.l.b16 %v317
      %v1337 = vunpack.c.l.b16 %v318
      %v1338 = vunpack.c.l.b16 %v319
      %v1339 = vunpack.c.l.b16 %v320
      %v1340 = vunpack.c.l.b16 %v321
      %v1341 = vunpack.c.l.b16 %v322
      %v1342 = vunpack.c.l.b16 %v323
      %v1343 = vunpack.c.l.b16 %v324
      %v1344 = vunpack.c.l.b16 %v325
      %v1345 = vunpack.c.l.b16 %v326
      %v1346 = vunpack.c.l.b16 %v327
      %v1347 = vunpack.c.l.b16 %v328
      %v1348 = vunpack.c.l.b16 %v329
      %v1349 = vunpack.c.l.b16 %v330
      %v1350 = vunpack.c.l.b16 %v331
      %v1351 = vunpack.c.l.b16 %v332
      %v1352 = vunpack.c.l.b16 %v333
      %v1353 = vunpack.c.l.b16 %v334
      %v1354 = vunpack.c.l.b16 %v335
      %v1355 = vpack.c.b16 %v1324, %v1323
      %v1356 = vpack.c.b16 %v1326, %v1325
      %v1357 = vpack.c.b16 %v1328, %v1327
      %v1358 = vpack.c.b16 %v1330, %v1329
      %v1359 = vpack.c.b16 %v1332, %v1331
      %v1360 = vpack.c.b16 %v1334, %v1333
      %v1361 = vpack.c.b16 %v1336, %v1335
      %v1362 = vpack.c.b16 %v1338, %v1337
      %v1363 = vpack.c.b16 %v1340, %v1339
      %v1364 = vpack.c.b16 %v1342, %v1341
      %v1365 = vpack.c.b16 %v1344, %v1343
      %v1366 = vpack.c.b16 %v1346, %v1345
      %v1367 = vpack.c.b16 %v1348, %v1347
      %v1368 = vpack.c.b16 %v1350, %v1349
      %v1369 = vpack.c.b16 %v1352, %v1351
      %v1370 = vpack.c.b16 %v1354, %v1353
      %1387 = vmatprep.subr.bf16.mxu0 0
      %1388 = vmatpush1.bf16.msra.mxu0 %v1355
      %1389 = vmatprep.subr.bf16.mxu0 0
      %1390 = vmatpush1.bf16.msra.mxu0 %v1356
      %1391 = vmatprep.subr.bf16.mxu0 0
      %1392 = vmatpush1.bf16.msra.mxu0 %v1357
      %1393 = vmatprep.subr.bf16.mxu0 0
      %1394 = vmatpush1.bf16.msra.mxu0 %v1358
      %1395 = vmatprep.subr.bf16.mxu0 0
      %1396 = vmatpush1.bf16.msra.mxu0 %v1359
      %1397 = vmatprep.subr.bf16.mxu0 0
      %1398 = vmatpush1.bf16.msra.mxu0 %v1360
      %1399 = vmatprep.subr.bf16.mxu0 0
      %1400 = vmatpush1.bf16.msra.mxu0 %v1361
      %1401 = vmatprep.subr.bf16.mxu0 0
      %1402 = vmatpush1.bf16.msra.mxu0 %v1362
      %1403 = vmatprep.subr.bf16.mxu0 0
      %1404 = vmatpush1.bf16.msra.mxu0 %v1363
      %1405 = vmatprep.subr.bf16.mxu0 0
      %1406 = vmatpush1.bf16.msra.mxu0 %v1364
      %1407 = vmatprep.subr.bf16.mxu0 0
      %1408 = vmatpush1.bf16.msra.mxu0 %v1365
      %1409 = vmatprep.subr.bf16.mxu0 0
      %1410 = vmatpush1.bf16.msra.mxu0 %v1366
      %1411 = vmatprep.subr.bf16.mxu0 0
      %1412 = vmatpush1.bf16.msra.mxu0 %v1367
      %1413 = vmatprep.subr.bf16.mxu0 0
      %1414 = vmatpush1.bf16.msra.mxu0 %v1368
      %1415 = vmatprep.subr.bf16.mxu0 0
      %1416 = vmatpush1.bf16.msra.mxu0 %v1369
      %1417 = vmatprep.subr.bf16.mxu0 0
      %1418 = vmatpush1.bf16.msra.mxu0 %v1370
      %1419 = vmatprep.mubr.bf16.mxu0 %v1282
      %1420 = vmatmul.mubr.bf16.gmra.mrb[0].mxu0 %v1281
      %v1421 = vpop.f32.mrb[0].mxu0
      %v1422 = vadd.f32 %v336, %v1421
      %v1423 = vpop.f32.mrb[0].mxu0
      %v1424 = vpop.f32.mrb[0].mxu0
      %v1425 = vpop.f32.mrb[0].mxu0
      %1426 = vdwg.mxu0
      %v1427 = vpack.c.bf16 %v1422, %v1422
      %vm1428 = vcmask 60416
      %1429 = vst.msk [vmem:[%s300] sm:$0xf] %vm1428, %v1427
      %vm1430 = vcmask 64512
      %v1431 = vsel %vm1430, %v1422, -inf
      %1432 = vmax.xlane.f32.xlu0 %v1431
      %v1433 = vpop.xlane.xlu0 %1432
      %v1434 = vrot.slane %v1433, 4
      %v1435 = vmax.f32 %v1433, %v1434
      %v1436 = vrot.slane %v1435, 2
      %v1437 = vmax.f32 %v1435, %v1436
      %v1438 = vrot.slane %v1437, 1
      %v1439 = vmax.f32 %v1437, %v1438
      %v1440 = vsub.f32 %v1422, %v1439
      %v1441 = vmul.f32 %v1440, 1.442695
      %v1442 = vpow.pop %v1441
      %v1443 = vsel %vm1430, %v1442, 0.0
      %1444 = vadd.xlane.f32.xlu0 %v1443
      %v1445 = vpop.xlane.xlu0 %1444
      %v1446 = vrot.slane %v1445, 4
      %v1447 = vadd.f32 %v1445, %v1446
      %v1448 = vrot.slane %v1447, 2
      %v1449 = vadd.f32 %v1447, %v1448
      %v1450 = vrot.slane %v1449, 1
      %v1451 = vadd.f32 %v1449, %v1450
      %v1452 = vlog2.pop %v1451
      %v1453 = vmul.f32 %v1452, 0.6931472
      %v1454 = vadd.f32 %v1439, %v1453
      %vm1455 = vcmp.eq.s32.totalorder %v1290, 0
      %v1456 = vsel %vm1455, %v1454, 0.0
      %v1457 = vadd.f32 %v1456, 0.0
      %1458 = vmatprep.subr.bf16.mxu0 0
      %1459 = vmatpush1.bf16.msra.mxu0 %v1355
      %1460 = vmatprep.subr.bf16.mxu0 0
      %1461 = vmatpush1.bf16.msra.mxu0 %v1356
      %1462 = vmatprep.subr.bf16.mxu0 0
      %1463 = vmatpush1.bf16.msra.mxu0 %v1357
      %1464 = vmatprep.subr.bf16.mxu0 0
      %1465 = vmatpush1.bf16.msra.mxu0 %v1358
      %1466 = vmatprep.subr.bf16.mxu0 0
      %1467 = vmatpush1.bf16.msra.mxu0 %v1359
      %1468 = vmatprep.subr.bf16.mxu0 0
      %1469 = vmatpush1.bf16.msra.mxu0 %v1360
      %1470 = vmatprep.subr.bf16.mxu0 0
      %1471 = vmatpush1.bf16.msra.mxu0 %v1361
      %1472 = vmatprep.subr.bf16.mxu0 0
      %1473 = vmatpush1.bf16.msra.mxu0 %v1362
      %1474 = vmatprep.subr.bf16.mxu0 0
      %1475 = vmatpush1.bf16.msra.mxu0 %v1363
      %1476 = vmatprep.subr.bf16.mxu0 0
      %1477 = vmatpush1.bf16.msra.mxu0 %v1364
      %1478 = vmatprep.subr.bf16.mxu0 0
      %1479 = vmatpush1.bf16.msra.mxu0 %v1365
      %1480 = vmatprep.subr.bf16.mxu0 0
      %1481 = vmatpush1.bf16.msra.mxu0 %v1366
      %1482 = vmatprep.subr.bf16.mxu0 0
      %1483 = vmatpush1.bf16.msra.mxu0 %v1367
      %1484 = vmatprep.subr.bf16.mxu0 0
      %1485 = vmatpush1.bf16.msra.mxu0 %v1368
      %1486 = vmatprep.subr.bf16.mxu0 0
      %1487 = vmatpush1.bf16.msra.mxu0 %v1369
      %1488 = vmatprep.subr.bf16.mxu0 0
      %1489 = vmatpush1.bf16.msra.mxu0 %v1370
      %1490 = vmatprep.mubr.bf16.mxu0 %v1284
      %1491 = vmatmul.mubr.bf16.gmra.mrb[0].mxu0 %v1283
      %v1492 = vpop.f32.mrb[0].mxu0
      %v1493 = vadd.f32 %v336, %v1492
      %v1494 = vpop.f32.mrb[0].mxu0
      %v1495 = vpop.f32.mrb[0].mxu0
      %v1496 = vpop.f32.mrb[0].mxu0
      %1497 = vdwg.mxu0
      %v1498 = vpack.c.bf16 %v1493, %v1493
      %s1499 = scalar_lea.vmem %s300, 4
      %1500 = vst.msk [vmem:[%s1499] sm:$0xf] %vm1428, %v1498
      %v1501 = vsel %vm1430, %v1493, -inf
      %1502 = vmax.xlane.f32.xlu0 %v1501
      %v1503 = vpop.xlane.xlu0 %1502
      %v1504 = vrot.slane %v1503, 4
      %v1505 = vmax.f32 %v1503, %v1504
      %v1506 = vrot.slane %v1505, 2
      %v1507 = vmax.f32 %v1505, %v1506
      %v1508 = vrot.slane %v1507, 1
      %v1509 = vmax.f32 %v1507, %v1508
      %v1510 = vsub.f32 %v1493, %v1509
      %v1511 = vmul.f32 %v1510, 1.442695
      %v1512 = vpow.pop %v1511
      %v1513 = vsel %vm1430, %v1512, 0.0
      %1514 = vadd.xlane.f32.xlu0 %v1513
      %v1515 = vpop.xlane.xlu0 %1514
      %v1516 = vrot.slane %v1515, 4
      %v1517 = vadd.f32 %v1515, %v1516
      %v1518 = vrot.slane %v1517, 2
      %v1519 = vadd.f32 %v1517, %v1518
      %v1520 = vrot.slane %v1519, 1
      %v1521 = vadd.f32 %v1519, %v1520
      %v1522 = vlog2.pop %v1521
      %v1523 = vmul.f32 %v1522, 0.6931472
      %v1524 = vadd.f32 %v1509, %v1523
      %vm1525 = vcmp.eq.s32.totalorder %v1290, 1
      %v1526 = vsel %vm1525, %v1524, 0.0
      %v1527 = vadd.f32 %v1457, %v1526
      %1528 = vmatprep.subr.bf16.mxu0 0
      %1529 = vmatpush1.bf16.msra.mxu0 %v1355
      %1530 = vmatprep.subr.bf16.mxu0 0
      %1531 = vmatpush1.bf16.msra.mxu0 %v1356
      %1532 = vmatprep.subr.bf16.mxu0 0
      %1533 = vmatpush1.bf16.msra.mxu0 %v1357
      %1534 = vmatprep.subr.bf16.mxu0 0
      %1535 = vmatpush1.bf16.msra.mxu0 %v1358
      %1536 = vmatprep.subr.bf16.mxu0 0
      %1537 = vmatpush1.bf16.msra.mxu0 %v1359
      %1538 = vmatprep.subr.bf16.mxu0 0
      %1539 = vmatpush1.bf16.msra.mxu0 %v1360
      %1540 = vmatprep.subr.bf16.mxu0 0
      %1541 = vmatpush1.bf16.msra.mxu0 %v1361
      %1542 = vmatprep.subr.bf16.mxu0 0
      %1543 = vmatpush1.bf16.msra.mxu0 %v1362
      %1544 = vmatprep.subr.bf16.mxu0 0
      %1545 = vmatpush1.bf16.msra.mxu0 %v1363
      %1546 = vmatprep.subr.bf16.mxu0 0
      %1547 = vmatpush1.bf16.msra.mxu0 %v1364
      %1548 = vmatprep.subr.bf16.mxu0 0
      %1549 = vmatpush1.bf16.msra.mxu0 %v1365
      %1550 = vmatprep.subr.bf16.mxu0 0
      %1551 = vmatpush1.bf16.msra.mxu0 %v1366
      %1552 = vmatprep.subr.bf16.mxu0 0
      %1553 = vmatpush1.bf16.msra.mxu0 %v1367
      %1554 = vmatprep.subr.bf16.mxu0 0
      %1555 = vmatpush1.bf16.msra.mxu0 %v1368
      %1556 = vmatprep.subr.bf16.mxu0 0
      %1557 = vmatpush1.bf16.msra.mxu0 %v1369
      %1558 = vmatprep.subr.bf16.mxu0 0
      %1559 = vmatpush1.bf16.msra.mxu0 %v1370
      %1560 = vmatprep.mubr.bf16.mxu0 %v1286
      %1561 = vmatmul.mubr.bf16.gmra.mrb[0].mxu0 %v1285
      %v1562 = vpop.f32.mrb[0].mxu0
      %v1563 = vadd.f32 %v336, %v1562
      %v1564 = vpop.f32.mrb[0].mxu0
      %v1565 = vpop.f32.mrb[0].mxu0
      %v1566 = vpop.f32.mrb[0].mxu0
      %1567 = vdwg.mxu0
      %v1568 = vpack.c.bf16 %v1563, %v1563
      %s1569 = scalar_lea.vmem %s300, 8
      %1570 = vst.msk [vmem:[%s1569] sm:$0xf] %vm1428, %v1568
      %v1571 = vsel %vm1430, %v1563, -inf
      %1572 = vmax.xlane.f32.xlu0 %v1571
      %v1573 = vpop.xlane.xlu0 %1572
      %v1574 = vrot.slane %v1573, 4
      %v1575 = vmax.f32 %v1573, %v1574
      %v1576 = vrot.slane %v1575, 2
      %v1577 = vmax.f32 %v1575, %v1576
      %v1578 = vrot.slane %v1577, 1
      %v1579 = vmax.f32 %v1577, %v1578
      %v1580 = vsub.f32 %v1563, %v1579
      %v1581 = vmul.f32 %v1580, 1.442695
      %v1582 = vpow.pop %v1581
      %v1583 = vsel %vm1430, %v1582, 0.0
      %1584 = vadd.xlane.f32.xlu0 %v1583
      %v1585 = vpop.xlane.xlu0 %1584
      %v1586 = vrot.slane %v1585, 4
      %v1587 = vadd.f32 %v1585, %v1586
      %v1588 = vrot.slane %v1587, 2
      %v1589 = vadd.f32 %v1587, %v1588
      %v1590 = vrot.slane %v1589, 1
      %v1591 = vadd.f32 %v1589, %v1590
      %v1592 = vlog2.pop %v1591
      %v1593 = vmul.f32 %v1592, 0.6931472
      %v1594 = vadd.f32 %v1579, %v1593
      %vm1595 = vcmp.eq.s32.totalorder %v1290, 2
      %v1596 = vsel %vm1595, %v1594, 0.0
      %v1597 = vadd.f32 %v1527, %v1596
      %1598 = vmatprep.subr.bf16.mxu0 0
      %1599 = vmatpush1.bf16.msra.mxu0 %v1355
      %1600 = vmatprep.subr.bf16.mxu0 0
      %1601 = vmatpush1.bf16.msra.mxu0 %v1356
      %1602 = vmatprep.subr.bf16.mxu0 0
      %1603 = vmatpush1.bf16.msra.mxu0 %v1357
      %1604 = vmatprep.subr.bf16.mxu0 0
      %1605 = vmatpush1.bf16.msra.mxu0 %v1358
      %1606 = vmatprep.subr.bf16.mxu0 0
      %1607 = vmatpush1.bf16.msra.mxu0 %v1359
      %1608 = vmatprep.subr.bf16.mxu0 0
      %1609 = vmatpush1.bf16.msra.mxu0 %v1360
      %1610 = vmatprep.subr.bf16.mxu0 0
      %1611 = vmatpush1.bf16.msra.mxu0 %v1361
      %1612 = vmatprep.subr.bf16.mxu0 0
      %1613 = vmatpush1.bf16.msra.mxu0 %v1362
      %1614 = vmatprep.subr.bf16.mxu0 0
      %1615 = vmatpush1.bf16.msra.mxu0 %v1363
      %1616 = vmatprep.subr.bf16.mxu0 0
      %1617 = vmatpush1.bf16.msra.mxu0 %v1364
      %1618 = vmatprep.subr.bf16.mxu0 0
      %1619 = vmatpush1.bf16.msra.mxu0 %v1365
      %1620 = vmatprep.subr.bf16.mxu0 0
      %1621 = vmatpush1.bf16.msra.mxu0 %v1366
      %1622 = vmatprep.subr.bf16.mxu0 0
      %1623 = vmatpush1.bf16.msra.mxu0 %v1367
      %1624 = vmatprep.subr.bf16.mxu0 0
      %1625 = vmatpush1.bf16.msra.mxu0 %v1368
      %1626 = vmatprep.subr.bf16.mxu0 0
      %1627 = vmatpush1.bf16.msra.mxu0 %v1369
      %1628 = vmatprep.subr.bf16.mxu0 0
      %1629 = vmatpush1.bf16.msra.mxu0 %v1370
      %1630 = vmatprep.mubr.bf16.mxu0 %v1288
      %1631 = vmatmul.mubr.bf16.gmra.mrb[0].mxu0 %v1287
      %v1632 = vpop.f32.mrb[0].mxu0
      %v1633 = vadd.f32 %v336, %v1632
      %v1634 = vpop.f32.mrb[0].mxu0
      %v1635 = vpop.f32.mrb[0].mxu0
      %v1636 = vpop.f32.mrb[0].mxu0
      %1637 = vdwg.mxu0
      %v1638 = vpack.c.bf16 %v1633, %v1633
      %s1639 = scalar_lea.vmem %s300, 12
      %1640 = vst.msk [vmem:[%s1639] sm:$0xf] %vm1428, %v1638
      %v1641 = vsel %vm1430, %v1633, -inf
      %1642 = vmax.xlane.f32.xlu0 %v1641
      %v1643 = vpop.xlane.xlu0 %1642
      %v1644 = vrot.slane %v1643, 4
      %v1645 = vmax.f32 %v1643, %v1644
      %v1646 = vrot.slane %v1645, 2
      %v1647 = vmax.f32 %v1645, %v1646
      %v1648 = vrot.slane %v1647, 1
      %v1649 = vmax.f32 %v1647, %v1648
      %v1650 = vsub.f32 %v1633, %v1649
      %v1651 = vmul.f32 %v1650, 1.442695
      %v1652 = vpow.pop %v1651
      %v1653 = vsel %vm1430, %v1652, 0.0
      %1654 = vadd.xlane.f32.xlu0 %v1653
      %v1655 = vpop.xlane.xlu0 %1654
      %v1656 = vrot.slane %v1655, 4
      %v1657 = vadd.f32 %v1655, %v1656
      %v1658 = vrot.slane %v1657, 2
      %v1659 = vadd.f32 %v1657, %v1658
      %v1660 = vrot.slane %v1659, 1
      %v1661 = vadd.f32 %v1659, %v1660
      %v1662 = vlog2.pop %v1661
      %v1663 = vmul.f32 %v1662, 0.6931472
      %v1664 = vadd.f32 %v1649, %v1663
      %vm1665 = vcmp.eq.s32.totalorder %v1290, 3
      %v1666 = vsel %vm1665, %v1664, 0.0
      %v1667 = vadd.f32 %v1597, %v1666
      %vm1668 = vcmask 24576
      %1669 = vst.msk [vmem:[%s291] sm:$0x1] %vm1668, %v1667
      %p1670 = scmp.lt.s32.totalorder %s21, 1
      %s1671 = scalar_select %p1670, %s21, 1
      %p1672 = scmp.lt.s32.totalorder %s22, 0
      %s1673 = scalar_select %p1672, %s22, 0
      %s1674 = sadd.s32 %s1673, %s1671
      %s1675 = scalar_lea.vmem %s4, %s1674
      %s1676 = smul.u32 4, %s22
      %p1677 = scmp.lt.s32.totalorder %s21, 1
      %s1678 = scalar_select %p1677, %s21, 1
      %p1679 = scmp.lt.s32.totalorder %s1676, 3
      %s1680 = scalar_select %p1679, %s1676, 3
      %s1681 = smul.addr %s1678, 4
      %s1682 = sadd.s32 %s1680, %s1681
      %s1683 = smul.addr %s1682, 4
      %s1684 = scalar_lea.vmem %s5, %s1683
      // Predicated region
      $region37: #{biaffine_pairwise_forward.3} parent=35 // pred_check
        %p1685 = pneg %p148
      $region38: #{biaffine_pairwise_forward.3} parent=35 // pred_check_branch
        %1687 = sbr.rel (%p1685) target = $region40
      $region39: #{biaffine_pairwise_forward.3} parent=35 // pred_region
        _
      $region40: #{biaffine_pairwise_forward.3} parent=35 // pred_fallthru
        _
      // Predicated region
      $region41: #{biaffine_pairwise_forward.3} parent=35 // pred_check
        %p1688 = pneg %p176
      $region42: #{biaffine_pairwise_forward.3} parent=35 // pred_check_branch
        %1690 = sbr.rel (%p1688) target = $region44
      $region43: #{biaffine_pairwise_forward.3} parent=35 // pred_region
        %s1691 = smul.u32 4, %s22
      $region44: #{biaffine_pairwise_forward.3} parent=35 // pred_fallthru
        _
    $region36: #{biaffine_pairwise_forward.3} parent=5 // pred_fallthru
      _
    %p1692 = scmp.le.s32.totalorder 2, %s12
    // Predicated region
    $region45: #{biaffine_pairwise_forward.3} parent=5 // pred_check
      %p1693 = pneg %p1692
    $region46: #{biaffine_pairwise_forward.3} parent=5 // pred_check_branch
      %1695 = sbr.rel (%p1693) target = $region48
    $region47: #{biaffine_pairwise_forward.3} parent=5 // pred_region
      %s1696 = ssub.s32 %s12, 2
      // Predicated region
      $region49: #{biaffine_pairwise_forward.3} parent=47 // pred_check
        %p1697 = pneg %p154
      $region50: #{biaffine_pairwise_forward.3} parent=47 // pred_check_branch
        %1699 = sbr.rel (%p1697) target = $region52
      $region51: #{biaffine_pairwise_forward.3} parent=47 // pred_region
        %p1700 = scmp.lt.s32.totalorder %s23, 1
        %s1701 = scalar_select %p1700, %s23, 1
        %p1702 = scmp.lt.s32.totalorder %s24, 0
        %s1703 = scalar_select %p1702, %s24, 0
        %s1704 = sadd.s32 %s1703, %s1701
        %s1705 = scalar_lea.vmem %s4, %s1704
      $region52: #{biaffine_pairwise_forward.3} parent=47 // pred_fallthru
        _
      // Predicated region
      $region53: #{biaffine_pairwise_forward.3} parent=47 // pred_check
        %p1706 = pneg %p182
      $region54: #{biaffine_pairwise_forward.3} parent=47 // pred_check_branch
        %1708 = sbr.rel (%p1706) target = $region56
      $region55: #{biaffine_pairwise_forward.3} parent=47 // pred_region
        %s1709 = smul.u32 4, %s24
        %p1710 = scmp.lt.s32.totalorder %s23, 1
        %s1711 = scalar_select %p1710, %s23, 1
        %p1712 = scmp.lt.s32.totalorder %s1709, 3
        %s1713 = scalar_select %p1712, %s1709, 3
        %s1714 = smul.addr %s1711, 4
        %s1715 = sadd.s32 %s1713, %s1714
        %s1716 = smul.addr %s1715, 4
        %s1717 = scalar_lea.vmem %s5, %s1716
      $region56: #{biaffine_pairwise_forward.3} parent=47 // pred_fallthru
        _
    $region48: #{biaffine_pairwise_forward.3} parent=5 // pred_fallthru
      _
  $region6: #{biaffine_pairwise_forward.3} parent=0 // loop_footer
    %s16 = sadd.s32 1, %s12
  $region7: #{biaffine_pairwise_forward.3} parent=0 // loop_footer_branch
    %11 = sbr.rel target = $region3
  $region8: #{biaffine_pairwise_forward.3} parent=0 // loop_exit
    _

</llo_original>
